<compile_context>
chip_gen: v7x
topology: tpu7x:2x2x1
jax: 0.10.0
libtpu: 0.0.40
codegen_flags: <defaults>
</compile_context>

<pallas_src>
import functools

import jax
import jax.numpy as jnp
from jax.experimental import pallas as pl
from jax.experimental.pallas import tpu as pltpu


# ----------------------------------------------------------------------------
# Kernel: B images per grid step, K*K accumulating per-tap MXU dots.
# ----------------------------------------------------------------------------
def _conv_relu_kernel(x_ref, w_ref, b_ref, o_ref, *scratch,
                      B, K, d, p, H, W, Wp, Hout, Wout, HWw,
                      Cin, Cin_p, Lb, direct, compute_dtype):
    # x_ref:   (B, Cin, H*W)         channels on sublanes, flat spatial on lanes
    # w_ref:   (K*K, Cout, Cin_p)    per-tap weight matrices (compute dtype)
    # b_ref:   (Cout, 1)             f32 bias
    # o_ref:   (B, Cout, Hout*Wout)  lane-dense, already cropped output
    # scratch: ((B, Cin_p, Lb),) zero-padded activation window (absent if direct)
    bias = b_ref[...]                                        # hoisted (Cout, 1) f32

    pad_tail = Cin_p - Cin
    zero_rows = None
    if (not direct) and pad_tail:
        zero_rows = jnp.zeros((pad_tail, W), compute_dtype)  # hoisted once

    for b in range(B):                                       # static unroll, B small
        if direct:
            # 1x1 conv / no padding: dot straight from the input block.
            acc = jnp.dot(w_ref[0], x_ref[b].astype(compute_dtype),
                          preferred_element_type=jnp.float32)
        else:
            xpad_ref = scratch[0]
            # Pre-zero the padded window (borders, padded channels, tail rows).
            xpad_ref[b] = jnp.zeros((Cin_p, Lb), compute_dtype)
            # Scatter image rows into the interior of the padded window.
            # TODO(synk): switch to lax.fori_loop + pl.ds for very large H.
            for h in range(H):
                dst = (h + p) * Wp + p                       # static lane offset
                row = x_ref[b, :, h * W:(h + 1) * W].astype(compute_dtype)
                if pad_tail:
                    row = jnp.concatenate([row, zero_rows], axis=0)
                xpad_ref[b, :, dst:dst + W] = row
            # K*K accumulating per-tap dots from contiguous lane slices
            # (no materialized im2col; v7x MRB accumulates in-place).
            acc = None
            for kh in range(K):
                for kw in range(K):
                    t = kh * K + kw
                    off = kh * d * Wp + kw * d               # static lane offset
                    part = jnp.dot(w_ref[t], xpad_ref[b, :, off:off + HWw],
                                   preferred_element_type=jnp.float32)
                    acc = part if acc is None else acc + part

        acc = jnp.maximum(acc + bias, 0.0)                   # bias + ReLU in f32

        if Wp == Wout:
            o_ref[b] = acc.astype(o_ref.dtype)               # no halo columns
        else:
            # Crop the horizontal halo columns while storing (no wrapper crop).
            for h in range(Hout):
                o_ref[b, :, h * Wout:(h + 1) * Wout] = (
                    acc[:, h * Wp:h * Wp + Wout].astype(o_ref.dtype))


def _pick_images_per_step(n, per_image_bytes, budget_bytes=4 << 20, max_b=8):
    best = 1
    for cand in range(2, min(n, max_b) + 1):
        if n % cand == 0 and cand * per_image_bytes <= budget_bytes:
            best = cand
    return best


# ----------------------------------------------------------------------------
# Wrapper: conv_relu forward (NCHW in, NCHW out), stride must be 1.
# ----------------------------------------------------------------------------
@functools.partial(jax.jit, static_argnames=(
    "kernel_size", "dilation_rate", "padding", "stride", "use_bf16_mxu",
    "out_dtype"))
def conv_relu(x, w, b, *, kernel_size, dilation_rate=1, padding=0, stride=1,
              use_bf16_mxu=True, out_dtype=None):
    """x: (N, Cin, H, W); w: (Cout, Cin, K, K) (PyTorch layout); b: (Cout,)."""
    if stride != 1:
        # TODO(synk): stride > 1 not implemented (esdnet's conv_relu uses stride=1).
        raise NotImplementedError("stride != 1 is not supported by this kernel")
    N, Cin, H, W = x.shape
    Cout = w.shape[0]
    K, d, p = int(kernel_size), int(dilation_rate), int(padding)
    odt = x.dtype if out_dtype is None else jnp.dtype(out_dtype)

    Hp, Wp = H + 2 * p, W + 2 * p
    tail = d * (K - 1)
    Hout, Wout = Hp - tail, Wp - tail
    assert Hout >= 1 and Wout >= 1

    Cin_p = -(-Cin // 8) * 8                      # pad channels to a sublane tile
    extra_rows = -(-tail // Wp) if tail else 0    # spare rows so the largest tap
    Lb = (Hp + extra_rows) * Wp                   # slice stays in-bounds
    HWw = Hout * Wp
    needs_zero = (p > 0) or (Cin_p != Cin) or (extra_rows > 0)
    direct = not needs_zero                       # implies K == 1, no padding

    compute_dtype = jnp.bfloat16 if use_bf16_mxu else x.dtype
    cdt = jnp.dtype(compute_dtype)

    # Free reshape of the activation (contiguous minor-dim merge, no HBM copy).
    x3 = x.reshape(N, Cin, H * W)
    # Weights: (Cout, Cin, K, K) -> (K*K, Cout, Cin_p), cast ONCE here.
    wt = jnp.transpose(w, (2, 3, 0, 1)).reshape(K * K, Cout, Cin)
    if Cin_p != Cin:
        wt = jnp.pad(wt, ((0, 0), (0, 0), (0, Cin_p - Cin)))
    w3 = wt.astype(compute_dtype)
    b2 = b.reshape(Cout, 1).astype(jnp.float32)

    xsz = jnp.dtype(x.dtype).itemsize
    osz = jnp.dtype(odt).itemsize
    csz = cdt.itemsize

    per_image = (Cin * H * W * xsz + Cout * Hout * Wout * osz
                 + (0 if direct else Cin_p * Lb * csz))
    B = _pick_images_per_step(N, per_image)
    grid = (N // B,)

    kernel = functools.partial(
        _conv_relu_kernel, B=B, K=K, d=d, p=p, H=H, W=W, Wp=Wp, Hout=Hout,
        Wout=Wout, HWw=HWw, Cin=Cin, Cin_p=Cin_p, Lb=Lb, direct=direct,
        compute_dtype=compute_dtype)

    # Explicit VMEM budget: double-buffered in/out blocks + weights + scratch.
    x_blk = B * Cin * H * W * xsz
    o_blk = B * Cout * Hout * Wout * osz
    w_bytes = K * K * Cout * Cin_p * csz
    scratch_bytes = 0 if direct else B * Cin_p * Lb * csz
    needed = 2 * x_blk + 2 * o_blk + 2 * w_bytes + 2 * Cout * 4 + scratch_bytes
    vmem_limit = int(min(100 << 20, max(needed + (4 << 20), 16 << 20)))

    flops = 2 * N * Cout * K * K * Cin * Hout * Wout
    bytes_accessed = int(x.size * xsz + w.size * csz + b.size * 4
                         + N * Cout * Hout * Wout * osz)

    out3 = pl.pallas_call(
        kernel,
        out_shape=jax.ShapeDtypeStruct((N, Cout, Hout * Wout), odt),
        grid_spec=pltpu.PrefetchScalarGridSpec(
            num_scalar_prefetch=0,
            grid=grid,
            in_specs=[
                pl.BlockSpec((B, Cin, H * W), lambda i: (i, 0, 0)),
                pl.BlockSpec((K * K, Cout, Cin_p), lambda i: (0, 0, 0)),
                pl.BlockSpec((Cout, 1), lambda i: (0, 0)),
            ],
            out_specs=pl.BlockSpec((B, Cout, Hout * Wout), lambda i: (i, 0, 0)),
            scratch_shapes=([] if direct
                            else [pltpu.VMEM((B, Cin_p, Lb), compute_dtype)]),
        ),
        compiler_params=pltpu.CompilerParams(
            dimension_semantics=("parallel",),
            vmem_limit_bytes=vmem_limit),
        cost_estimate=pl.CostEstimate(flops=flops, transcendentals=0,
                                      bytes_accessed=bytes_accessed),
    )(x3, w3, b2)

    # Free reshape back to NCHW (split of the minor dim, no HBM copy).
    return out3.reshape(N, Cout, Hout, Wout)


# ----------------------------------------------------------------------------
# Reference (for in-script correctness check).
# ----------------------------------------------------------------------------
def _conv_relu_reference(x, w, b, *, dilation_rate=1, padding=0, stride=1):
    out = jax.lax.conv_general_dilated(
        x, w,
        window_strides=(stride, stride),
        padding=((padding, padding), (padding, padding)),
        rhs_dilation=(dilation_rate, dilation_rate),
        dimension_numbers=("NCHW", "OIHW", "NCHW"),
        precision=jax.lax.Precision.HIGHEST,
    )
    return jnp.maximum(out + b.reshape(1, -1, 1, 1), 0.0)


if __name__ == "__main__":
    key = jax.random.PRNGKey(0)
    N, Cin, H, W = 2, 4, 16, 16
    Cout, K, d = 8, 3, 2                       # dilated 3x3 "same" conv, esdnet-style
    kx, k_w, k_b, k_w1, k_b1 = jax.random.split(key, 5)

    x = jax.random.normal(kx, (N, Cin, H, W), jnp.float32)
    w = 0.05 * jax.random.normal(k_w, (Cout, Cin, K, K), jnp.float32)
    b = 0.05 * jax.random.normal(k_b, (Cout,), jnp.float32)
    w1 = 0.05 * jax.random.normal(k_w1, (Cin, Cout, 1, 1), jnp.float32)
    b1 = 0.05 * jax.random.normal(k_b1, (Cin,), jnp.float32)

    ref = _conv_relu_reference(x, w, b, dilation_rate=d, padding=d)

    # conv_relu(in=4, out=8, kernel_size=3, dilation_rate=2, padding=2)
    # default path: bf16 MXU operands, f32 accumulation.
    out = jax.block_until_ready(
        conv_relu(x, w, b, kernel_size=K, dilation_rate=d, padding=d))
    assert out.shape == (N, Cout, H, W), out.shape
    assert float(jnp.max(jnp.abs(out - ref))) < 2e-2

    # Full-f32 path (exact to reference up to MXU rounding).
    out_f32 = jax.block_until_ready(
        conv_relu(x, w, b, kernel_size=K, dilation_rate=d, padding=d,
                  use_bf16_mxu=False))
    assert float(jnp.max(jnp.abs(out_f32 - ref))) < 1e-4

    # conv_relu(in=8, out=4, kernel_size=1) chained on the previous output
    # (exercises the direct 1x1 fast path).
    out1 = jax.block_until_ready(conv_relu(out, w1, b1, kernel_size=1))
    assert out1.shape == (N, Cin, H, W), out1.shape
    ref1 = _conv_relu_reference(out, w1, b1, dilation_rate=1, padding=0)
    assert float(jnp.max(jnp.abs(out1 - ref1))) < 2e-2

    print("KERNEL_OK")
</pallas_src>

<mosaic_0001>
module attributes {stable_mosaic.version = 11 : i64} {
  func.func @_conv_relu_kernel(%arg0: i32, %arg1: memref<2x4x256xf32, #tpu.memory_space<vmem>>, %arg2: memref<9x8x8xbf16, #tpu.memory_space<vmem>>, %arg3: memref<8x1xf32, #tpu.memory_space<vmem>>, %arg4: memref<2x8x256xf32, #tpu.memory_space<vmem>>, %arg5: memref<2x8x420xbf16, #tpu.memory_space<vmem>>) attributes {dimension_semantics = [#tpu.dimension_semantics<parallel>], iteration_bounds = array<i64: 1>, scalar_prefetch = 0 : i64, scratch_operands = 1 : i64, tpu.core_type = #tpu.core_type<tc>, window_params = [{transform_indices = @transform_0, window_bounds = array<i64: 2, 4, 256>}, {pipeline_mode = #tpu.pipeline_mode<synchronous>, transform_indices = @transform_1, window_bounds = array<i64: 9, 8, 8>}, {pipeline_mode = #tpu.pipeline_mode<synchronous>, transform_indices = @transform_2, window_bounds = array<i64: 8, 1>}, {transform_indices = @transform_3, window_bounds = array<i64: 2, 8, 256>}]} {
    %c0 = arith.constant 0 : index
    %c0_0 = arith.constant 0 : index
    %0 = vector.load %arg3[%c0, %c0_0] : memref<8x1xf32, #tpu.memory_space<vmem>>, vector<8x1xf32>
    %cst = arith.constant 0.000000e+00 : bf16
    %1 = vector.broadcast %cst : bf16 to vector<4x16xbf16>
    %cst_1 = arith.constant 0.000000e+00 : bf16
    %2 = vector.broadcast %cst_1 : bf16 to vector<8x420xbf16>
    %c0_2 = arith.constant 0 : index
    %c0_3 = arith.constant 0 : index
    %c0_4 = arith.constant 0 : index
    %3 = vector.load %arg5[%c0_2, %c0_3, %c0_4] : memref<2x8x420xbf16, #tpu.memory_space<vmem>>, vector<1x8x420xbf16>
    %4 = vector.shape_cast %3 : vector<1x8x420xbf16> to vector<8x420xbf16>
    %5 = vector.shape_cast %2 : vector<8x420xbf16> to vector<1x8x420xbf16>
    tpu.vector_store %arg5[%c0_2, %c0_3, %c0_4], %5 {strides = array<i32>} : memref<2x8x420xbf16, #tpu.memory_space<vmem>>, vector<1x8x420xbf16>,
    %c0_5 = arith.constant 0 : index
    %c0_6 = arith.constant 0 : index
    %c0_7 = arith.constant 0 : index
    %6 = vector.load %arg1[%c0_5, %c0_6, %c0_7] : memref<2x4x256xf32, #tpu.memory_space<vmem>>, vector<1x4x16xf32>
    %7 = vector.shape_cast %6 : vector<1x4x16xf32> to vector<4x16xf32>
    %8 = arith.truncf %7 : vector<4x16xf32> to vector<4x16xbf16>
    %9 = tpu.concatenate %8, %1 in 0 : vector<4x16xbf16>, vector<4x16xbf16> -> vector<8x16xbf16>
    %c0_8 = arith.constant 0 : index
    %c0_9 = arith.constant 0 : index
    %c42 = arith.constant 42 : index
    %10 = vector.load %arg5[%c0_8, %c0_9, %c42] : memref<2x8x420xbf16, #tpu.memory_space<vmem>>, vector<1x8x16xbf16>
    %11 = vector.shape_cast %10 : vector<1x8x16xbf16> to vector<8x16xbf16>
    %12 = vector.shape_cast %9 : vector<8x16xbf16> to vector<1x8x16xbf16>
    tpu.vector_store %arg5[%c0_8, %c0_9, %c42], %12 {strides = array<i32>} : memref<2x8x420xbf16, #tpu.memory_space<vmem>>, vector<1x8x16xbf16>,
    %c0_10 = arith.constant 0 : index
    %c0_11 = arith.constant 0 : index
    %c16 = arith.constant 16 : index
    %13 = vector.load %arg1[%c0_10, %c0_11, %c16] : memref<2x4x256xf32, #tpu.memory_space<vmem>>, vector<1x4x16xf32>
    %14 = vector.shape_cast %13 : vector<1x4x16xf32> to vector<4x16xf32>
    %15 = arith.truncf %14 : vector<4x16xf32> to vector<4x16xbf16>
    %16 = tpu.concatenate %15, %1 in 0 : vector<4x16xbf16>, vector<4x16xbf16> -> vector<8x16xbf16>
    %c0_12 = arith.constant 0 : index
    %c0_13 = arith.constant 0 : index
    %c62 = arith.constant 62 : index
    %17 = vector.load %arg5[%c0_12, %c0_13, %c62] : memref<2x8x420xbf16, #tpu.memory_space<vmem>>, vector<1x8x16xbf16>
    %18 = vector.shape_cast %17 : vector<1x8x16xbf16> to vector<8x16xbf16>
    %19 = vector.shape_cast %16 : vector<8x16xbf16> to vector<1x8x16xbf16>
    tpu.vector_store %arg5[%c0_12, %c0_13, %c62], %19 {strides = array<i32>} : memref<2x8x420xbf16, #tpu.memory_space<vmem>>, vector<1x8x16xbf16>,
    %c0_14 = arith.constant 0 : index
    %c0_15 = arith.constant 0 : index
    %c32 = arith.constant 32 : index
    %20 = vector.load %arg1[%c0_14, %c0_15, %c32] : memref<2x4x256xf32, #tpu.memory_space<vmem>>, vector<1x4x16xf32>
    %21 = vector.shape_cast %20 : vector<1x4x16xf32> to vector<4x16xf32>
    %22 = arith.truncf %21 : vector<4x16xf32> to vector<4x16xbf16>
    %23 = tpu.concatenate %22, %1 in 0 : vector<4x16xbf16>, vector<4x16xbf16> -> vector<8x16xbf16>
    %c0_16 = arith.constant 0 : index
    %c0_17 = arith.constant 0 : index
    %c82 = arith.constant 82 : index
    %24 = vector.load %arg5[%c0_16, %c0_17, %c82] : memref<2x8x420xbf16, #tpu.memory_space<vmem>>, vector<1x8x16xbf16>
    %25 = vector.shape_cast %24 : vector<1x8x16xbf16> to vector<8x16xbf16>
    %26 = vector.shape_cast %23 : vector<8x16xbf16> to vector<1x8x16xbf16>
    tpu.vector_store %arg5[%c0_16, %c0_17, %c82], %26 {strides = array<i32>} : memref<2x8x420xbf16, #tpu.memory_space<vmem>>, vector<1x8x16xbf16>,
    %c0_18 = arith.constant 0 : index
    %c0_19 = arith.constant 0 : index
    %c48 = arith.constant 48 : index
    %27 = vector.load %arg1[%c0_18, %c0_19, %c48] : memref<2x4x256xf32, #tpu.memory_space<vmem>>, vector<1x4x16xf32>
    %28 = vector.shape_cast %27 : vector<1x4x16xf32> to vector<4x16xf32>
    %29 = arith.truncf %28 : vector<4x16xf32> to vector<4x16xbf16>
    %30 = tpu.concatenate %29, %1 in 0 : vector<4x16xbf16>, vector<4x16xbf16> -> vector<8x16xbf16>
    %c0_20 = arith.constant 0 : index
    %c0_21 = arith.constant 0 : index
    %c102 = arith.constant 102 : index
    %31 = vector.load %arg5[%c0_20, %c0_21, %c102] : memref<2x8x420xbf16, #tpu.memory_space<vmem>>, vector<1x8x16xbf16>
    %32 = vector.shape_cast %31 : vector<1x8x16xbf16> to vector<8x16xbf16>
    %33 = vector.shape_cast %30 : vector<8x16xbf16> to vector<1x8x16xbf16>
    tpu.vector_store %arg5[%c0_20, %c0_21, %c102], %33 {strides = array<i32>} : memref<2x8x420xbf16, #tpu.memory_space<vmem>>, vector<1x8x16xbf16>,
    %c0_22 = arith.constant 0 : index
    %c0_23 = arith.constant 0 : index
    %c64 = arith.constant 64 : index
    %34 = vector.load %arg1[%c0_22, %c0_23, %c64] : memref<2x4x256xf32, #tpu.memory_space<vmem>>, vector<1x4x16xf32>
    %35 = vector.shape_cast %34 : vector<1x4x16xf32> to vector<4x16xf32>
    %36 = arith.truncf %35 : vector<4x16xf32> to vector<4x16xbf16>
    %37 = tpu.concatenate %36, %1 in 0 : vector<4x16xbf16>, vector<4x16xbf16> -> vector<8x16xbf16>
    %c0_24 = arith.constant 0 : index
    %c0_25 = arith.constant 0 : index
    %c122 = arith.constant 122 : index
    %38 = vector.load %arg5[%c0_24, %c0_25, %c122] : memref<2x8x420xbf16, #tpu.memory_space<vmem>>, vector<1x8x16xbf16>
    %39 = vector.shape_cast %38 : vector<1x8x16xbf16> to vector<8x16xbf16>
    %40 = vector.shape_cast %37 : vector<8x16xbf16> to vector<1x8x16xbf16>
    tpu.vector_store %arg5[%c0_24, %c0_25, %c122], %40 {strides = array<i32>} : memref<2x8x420xbf16, #tpu.memory_space<vmem>>, vector<1x8x16xbf16>,
    %c0_26 = arith.constant 0 : index
    %c0_27 = arith.constant 0 : index
    %c80 = arith.constant 80 : index
    %41 = vector.load %arg1[%c0_26, %c0_27, %c80] : memref<2x4x256xf32, #tpu.memory_space<vmem>>, vector<1x4x16xf32>
    %42 = vector.shape_cast %41 : vector<1x4x16xf32> to vector<4x16xf32>
    %43 = arith.truncf %42 : vector<4x16xf32> to vector<4x16xbf16>
    %44 = tpu.concatenate %43, %1 in 0 : vector<4x16xbf16>, vector<4x16xbf16> -> vector<8x16xbf16>
    %c0_28 = arith.constant 0 : index
    %c0_29 = arith.constant 0 : index
    %c142 = arith.constant 142 : index
    %45 = vector.load %arg5[%c0_28, %c0_29, %c142] : memref<2x8x420xbf16, #tpu.memory_space<vmem>>, vector<1x8x16xbf16>
    %46 = vector.shape_cast %45 : vector<1x8x16xbf16> to vector<8x16xbf16>
    %47 = vector.shape_cast %44 : vector<8x16xbf16> to vector<1x8x16xbf16>
    tpu.vector_store %arg5[%c0_28, %c0_29, %c142], %47 {strides = array<i32>} : memref<2x8x420xbf16, #tpu.memory_space<vmem>>, vector<1x8x16xbf16>,
    %c0_30 = arith.constant 0 : index
    %c0_31 = arith.constant 0 : index
    %c96 = arith.constant 96 : index
    %48 = vector.load %arg1[%c0_30, %c0_31, %c96] : memref<2x4x256xf32, #tpu.memory_space<vmem>>, vector<1x4x16xf32>
    %49 = vector.shape_cast %48 : vector<1x4x16xf32> to vector<4x16xf32>
    %50 = arith.truncf %49 : vector<4x16xf32> to vector<4x16xbf16>
    %51 = tpu.concatenate %50, %1 in 0 : vector<4x16xbf16>, vector<4x16xbf16> -> vector<8x16xbf16>
    %c0_32 = arith.constant 0 : index
    %c0_33 = arith.constant 0 : index
    %c162 = arith.constant 162 : index
    %52 = vector.load %arg5[%c0_32, %c0_33, %c162] : memref<2x8x420xbf16, #tpu.memory_space<vmem>>, vector<1x8x16xbf16>
    %53 = vector.shape_cast %52 : vector<1x8x16xbf16> to vector<8x16xbf16>
    %54 = vector.shape_cast %51 : vector<8x16xbf16> to vector<1x8x16xbf16>
    tpu.vector_store %arg5[%c0_32, %c0_33, %c162], %54 {strides = array<i32>} : memref<2x8x420xbf16, #tpu.memory_space<vmem>>, vector<1x8x16xbf16>,
    %c0_34 = arith.constant 0 : index
    %c0_35 = arith.constant 0 : index
    %c112 = arith.constant 112 : index
    %55 = vector.load %arg1[%c0_34, %c0_35, %c112] : memref<2x4x256xf32, #tpu.memory_space<vmem>>, vector<1x4x16xf32>
    %56 = vector.shape_cast %55 : vector<1x4x16xf32> to vector<4x16xf32>
    %57 = arith.truncf %56 : vector<4x16xf32> to vector<4x16xbf16>
    %58 = tpu.concatenate %57, %1 in 0 : vector<4x16xbf16>, vector<4x16xbf16> -> vector<8x16xbf16>
    %c0_36 = arith.constant 0 : index
    %c0_37 = arith.constant 0 : index
    %c182 = arith.constant 182 : index
    %59 = vector.load %arg5[%c0_36, %c0_37, %c182] : memref<2x8x420xbf16, #tpu.memory_space<vmem>>, vector<1x8x16xbf16>
    %60 = vector.shape_cast %59 : vector<1x8x16xbf16> to vector<8x16xbf16>
    %61 = vector.shape_cast %58 : vector<8x16xbf16> to vector<1x8x16xbf16>
    tpu.vector_store %arg5[%c0_36, %c0_37, %c182], %61 {strides = array<i32>} : memref<2x8x420xbf16, #tpu.memory_space<vmem>>, vector<1x8x16xbf16>,
    %c0_38 = arith.constant 0 : index
    %c0_39 = arith.constant 0 : index
    %c128 = arith.constant 128 : index
    %62 = vector.load %arg1[%c0_38, %c0_39, %c128] : memref<2x4x256xf32, #tpu.memory_space<vmem>>, vector<1x4x16xf32>
    %63 = vector.shape_cast %62 : vector<1x4x16xf32> to vector<4x16xf32>
    %64 = arith.truncf %63 : vector<4x16xf32> to vector<4x16xbf16>
    %65 = tpu.concatenate %64, %1 in 0 : vector<4x16xbf16>, vector<4x16xbf16> -> vector<8x16xbf16>
    %c0_40 = arith.constant 0 : index
    %c0_41 = arith.constant 0 : index
    %c202 = arith.constant 202 : index
    %66 = vector.load %arg5[%c0_40, %c0_41, %c202] : memref<2x8x420xbf16, #tpu.memory_space<vmem>>, vector<1x8x16xbf16>
    %67 = vector.shape_cast %66 : vector<1x8x16xbf16> to vector<8x16xbf16>
    %68 = vector.shape_cast %65 : vector<8x16xbf16> to vector<1x8x16xbf16>
    tpu.vector_store %arg5[%c0_40, %c0_41, %c202], %68 {strides = array<i32>} : memref<2x8x420xbf16, #tpu.memory_space<vmem>>, vector<1x8x16xbf16>,
    %c0_42 = arith.constant 0 : index
    %c0_43 = arith.constant 0 : index
    %c144 = arith.constant 144 : index
    %69 = vector.load %arg1[%c0_42, %c0_43, %c144] : memref<2x4x256xf32, #tpu.memory_space<vmem>>, vector<1x4x16xf32>
    %70 = vector.shape_cast %69 : vector<1x4x16xf32> to vector<4x16xf32>
    %71 = arith.truncf %70 : vector<4x16xf32> to vector<4x16xbf16>
    %72 = tpu.concatenate %71, %1 in 0 : vector<4x16xbf16>, vector<4x16xbf16> -> vector<8x16xbf16>
    %c0_44 = arith.constant 0 : index
    %c0_45 = arith.constant 0 : index
    %c222 = arith.constant 222 : index
    %73 = vector.load %arg5[%c0_44, %c0_45, %c222] : memref<2x8x420xbf16, #tpu.memory_space<vmem>>, vector<1x8x16xbf16>
    %74 = vector.shape_cast %73 : vector<1x8x16xbf16> to vector<8x16xbf16>
    %75 = vector.shape_cast %72 : vector<8x16xbf16> to vector<1x8x16xbf16>
    tpu.vector_store %arg5[%c0_44, %c0_45, %c222], %75 {strides = array<i32>} : memref<2x8x420xbf16, #tpu.memory_space<vmem>>, vector<1x8x16xbf16>,
    %c0_46 = arith.constant 0 : index
    %c0_47 = arith.constant 0 : index
    %c160 = arith.constant 160 : index
    %76 = vector.load %arg1[%c0_46, %c0_47, %c160] : memref<2x4x256xf32, #tpu.memory_space<vmem>>, vector<1x4x16xf32>
    %77 = vector.shape_cast %76 : vector<1x4x16xf32> to vector<4x16xf32>
    %78 = arith.truncf %77 : vector<4x16xf32> to vector<4x16xbf16>
    %79 = tpu.concatenate %78, %1 in 0 : vector<4x16xbf16>, vector<4x16xbf16> -> vector<8x16xbf16>
    %c0_48 = arith.constant 0 : index
    %c0_49 = arith.constant 0 : index
    %c242 = arith.constant 242 : index
    %80 = vector.load %arg5[%c0_48, %c0_49, %c242] : memref<2x8x420xbf16, #tpu.memory_space<vmem>>, vector<1x8x16xbf16>
    %81 = vector.shape_cast %80 : vector<1x8x16xbf16> to vector<8x16xbf16>
    %82 = vector.shape_cast %79 : vector<8x16xbf16> to vector<1x8x16xbf16>
    tpu.vector_store %arg5[%c0_48, %c0_49, %c242], %82 {strides = array<i32>} : memref<2x8x420xbf16, #tpu.memory_space<vmem>>, vector<1x8x16xbf16>,
    %c0_50 = arith.constant 0 : index
    %c0_51 = arith.constant 0 : index
    %c176 = arith.constant 176 : index
    %83 = vector.load %arg1[%c0_50, %c0_51, %c176] : memref<2x4x256xf32, #tpu.memory_space<vmem>>, vector<1x4x16xf32>
    %84 = vector.shape_cast %83 : vector<1x4x16xf32> to vector<4x16xf32>
    %85 = arith.truncf %84 : vector<4x16xf32> to vector<4x16xbf16>
    %86 = tpu.concatenate %85, %1 in 0 : vector<4x16xbf16>, vector<4x16xbf16> -> vector<8x16xbf16>
    %c0_52 = arith.constant 0 : index
    %c0_53 = arith.constant 0 : index
    %c262 = arith.constant 262 : index
    %87 = vector.load %arg5[%c0_52, %c0_53, %c262] : memref<2x8x420xbf16, #tpu.memory_space<vmem>>, vector<1x8x16xbf16>
    %88 = vector.shape_cast %87 : vector<1x8x16xbf16> to vector<8x16xbf16>
    %89 = vector.shape_cast %86 : vector<8x16xbf16> to vector<1x8x16xbf16>
    tpu.vector_store %arg5[%c0_52, %c0_53, %c262], %89 {strides = array<i32>} : memref<2x8x420xbf16, #tpu.memory_space<vmem>>, vector<1x8x16xbf16>,
    %c0_54 = arith.constant 0 : index
    %c0_55 = arith.constant 0 : index
    %c192 = arith.constant 192 : index
    %90 = vector.load %arg1[%c0_54, %c0_55, %c192] : memref<2x4x256xf32, #tpu.memory_space<vmem>>, vector<1x4x16xf32>
    %91 = vector.shape_cast %90 : vector<1x4x16xf32> to vector<4x16xf32>
    %92 = arith.truncf %91 : vector<4x16xf32> to vector<4x16xbf16>
    %93 = tpu.concatenate %92, %1 in 0 : vector<4x16xbf16>, vector<4x16xbf16> -> vector<8x16xbf16>
    %c0_56 = arith.constant 0 : index
    %c0_57 = arith.constant 0 : index
    %c282 = arith.constant 282 : index
    %94 = vector.load %arg5[%c0_56, %c0_57, %c282] : memref<2x8x420xbf16, #tpu.memory_space<vmem>>, vector<1x8x16xbf16>
    %95 = vector.shape_cast %94 : vector<1x8x16xbf16> to vector<8x16xbf16>
    %96 = vector.shape_cast %93 : vector<8x16xbf16> to vector<1x8x16xbf16>
    tpu.vector_store %arg5[%c0_56, %c0_57, %c282], %96 {strides = array<i32>} : memref<2x8x420xbf16, #tpu.memory_space<vmem>>, vector<1x8x16xbf16>,
    %c0_58 = arith.constant 0 : index
    %c0_59 = arith.constant 0 : index
    %c208 = arith.constant 208 : index
    %97 = vector.load %arg1[%c0_58, %c0_59, %c208] : memref<2x4x256xf32, #tpu.memory_space<vmem>>, vector<1x4x16xf32>
    %98 = vector.shape_cast %97 : vector<1x4x16xf32> to vector<4x16xf32>
    %99 = arith.truncf %98 : vector<4x16xf32> to vector<4x16xbf16>
    %100 = tpu.concatenate %99, %1 in 0 : vector<4x16xbf16>, vector<4x16xbf16> -> vector<8x16xbf16>
    %c0_60 = arith.constant 0 : index
    %c0_61 = arith.constant 0 : index
    %c302 = arith.constant 302 : index
    %101 = vector.load %arg5[%c0_60, %c0_61, %c302] : memref<2x8x420xbf16, #tpu.memory_space<vmem>>, vector<1x8x16xbf16>
    %102 = vector.shape_cast %101 : vector<1x8x16xbf16> to vector<8x16xbf16>
    %103 = vector.shape_cast %100 : vector<8x16xbf16> to vector<1x8x16xbf16>
    tpu.vector_store %arg5[%c0_60, %c0_61, %c302], %103 {strides = array<i32>} : memref<2x8x420xbf16, #tpu.memory_space<vmem>>, vector<1x8x16xbf16>,
    %c0_62 = arith.constant 0 : index
    %c0_63 = arith.constant 0 : index
    %c224 = arith.constant 224 : index
    %104 = vector.load %arg1[%c0_62, %c0_63, %c224] : memref<2x4x256xf32, #tpu.memory_space<vmem>>, vector<1x4x16xf32>
    %105 = vector.shape_cast %104 : vector<1x4x16xf32> to vector<4x16xf32>
    %106 = arith.truncf %105 : vector<4x16xf32> to vector<4x16xbf16>
    %107 = tpu.concatenate %106, %1 in 0 : vector<4x16xbf16>, vector<4x16xbf16> -> vector<8x16xbf16>
    %c0_64 = arith.constant 0 : index
    %c0_65 = arith.constant 0 : index
    %c322 = arith.constant 322 : index
    %108 = vector.load %arg5[%c0_64, %c0_65, %c322] : memref<2x8x420xbf16, #tpu.memory_space<vmem>>, vector<1x8x16xbf16>
    %109 = vector.shape_cast %108 : vector<1x8x16xbf16> to vector<8x16xbf16>
    %110 = vector.shape_cast %107 : vector<8x16xbf16> to vector<1x8x16xbf16>
    tpu.vector_store %arg5[%c0_64, %c0_65, %c322], %110 {strides = array<i32>} : memref<2x8x420xbf16, #tpu.memory_space<vmem>>, vector<1x8x16xbf16>,
    %c0_66 = arith.constant 0 : index
    %c0_67 = arith.constant 0 : index
    %c240 = arith.constant 240 : index
    %111 = vector.load %arg1[%c0_66, %c0_67, %c240] : memref<2x4x256xf32, #tpu.memory_space<vmem>>, vector<1x4x16xf32>
    %112 = vector.shape_cast %111 : vector<1x4x16xf32> to vector<4x16xf32>
    %113 = arith.truncf %112 : vector<4x16xf32> to vector<4x16xbf16>
    %114 = tpu.concatenate %113, %1 in 0 : vector<4x16xbf16>, vector<4x16xbf16> -> vector<8x16xbf16>
    %c0_68 = arith.constant 0 : index
    %c0_69 = arith.constant 0 : index
    %c342 = arith.constant 342 : index
    %115 = vector.load %arg5[%c0_68, %c0_69, %c342] : memref<2x8x420xbf16, #tpu.memory_space<vmem>>, vector<1x8x16xbf16>
    %116 = vector.shape_cast %115 : vector<1x8x16xbf16> to vector<8x16xbf16>
    %117 = vector.shape_cast %114 : vector<8x16xbf16> to vector<1x8x16xbf16>
    tpu.vector_store %arg5[%c0_68, %c0_69, %c342], %117 {strides = array<i32>} : memref<2x8x420xbf16, #tpu.memory_space<vmem>>, vector<1x8x16xbf16>,
    %c0_70 = arith.constant 0 : index
    %c0_71 = arith.constant 0 : index
    %c0_72 = arith.constant 0 : index
    %118 = vector.load %arg2[%c0_70, %c0_71, %c0_72] : memref<9x8x8xbf16, #tpu.memory_space<vmem>>, vector<1x8x8xbf16>
    %119 = vector.shape_cast %118 : vector<1x8x8xbf16> to vector<8x8xbf16>
    %c0_73 = arith.constant 0 : index
    %c0_74 = arith.constant 0 : index
    %c0_75 = arith.constant 0 : index
    %120 = vector.load %arg5[%c0_73, %c0_74, %c0_75] : memref<2x8x420xbf16, #tpu.memory_space<vmem>>, vector<1x8x320xbf16>
    %121 = vector.shape_cast %120 : vector<1x8x320xbf16> to vector<8x320xbf16>
    %cst_76 = arith.constant dense<0.000000e+00> : vector<8x320xf32>
    %122 = tpu.matmul %119, %121, %cst_76 {dimension_numbers = #tpu.dot_dimension_numbers<[1], [0], [0], [1], [0, 0, 1, 1], [], []>} : vector<8x8xbf16>, vector<8x320xbf16>, vector<8x320xf32> -> vector<8x320xf32>
    %c1 = arith.constant 1 : index
    %c0_77 = arith.constant 0 : index
    %c0_78 = arith.constant 0 : index
    %123 = vector.load %arg2[%c1, %c0_77, %c0_78] : memref<9x8x8xbf16, #tpu.memory_space<vmem>>, vector<1x8x8xbf16>
    %124 = vector.shape_cast %123 : vector<1x8x8xbf16> to vector<8x8xbf16>
    %c0_79 = arith.constant 0 : index
    %c0_80 = arith.constant 0 : index
    %c2 = arith.constant 2 : index
    %125 = vector.load %arg5[%c0_79, %c0_80, %c2] : memref<2x8x420xbf16, #tpu.memory_space<vmem>>, vector<1x8x320xbf16>
    %126 = vector.shape_cast %125 : vector<1x8x320xbf16> to vector<8x320xbf16>
    %cst_81 = arith.constant dense<0.000000e+00> : vector<8x320xf32>
    %127 = tpu.matmul %124, %126, %cst_81 {dimension_numbers = #tpu.dot_dimension_numbers<[1], [0], [0], [1], [0, 0, 1, 1], [], []>} : vector<8x8xbf16>, vector<8x320xbf16>, vector<8x320xf32> -> vector<8x320xf32>
    %128 = arith.addf %122, %127 : vector<8x320xf32>
    %c2_82 = arith.constant 2 : index
    %c0_83 = arith.constant 0 : index
    %c0_84 = arith.constant 0 : index
    %129 = vector.load %arg2[%c2_82, %c0_83, %c0_84] : memref<9x8x8xbf16, #tpu.memory_space<vmem>>, vector<1x8x8xbf16>
    %130 = vector.shape_cast %129 : vector<1x8x8xbf16> to vector<8x8xbf16>
    %c0_85 = arith.constant 0 : index
    %c0_86 = arith.constant 0 : index
    %c4 = arith.constant 4 : index
    %131 = vector.load %arg5[%c0_85, %c0_86, %c4] : memref<2x8x420xbf16, #tpu.memory_space<vmem>>, vector<1x8x320xbf16>
    %132 = vector.shape_cast %131 : vector<1x8x320xbf16> to vector<8x320xbf16>
    %cst_87 = arith.constant dense<0.000000e+00> : vector<8x320xf32>
    %133 = tpu.matmul %130, %132, %cst_87 {dimension_numbers = #tpu.dot_dimension_numbers<[1], [0], [0], [1], [0, 0, 1, 1], [], []>} : vector<8x8xbf16>, vector<8x320xbf16>, vector<8x320xf32> -> vector<8x320xf32>
    %134 = arith.addf %128, %133 : vector<8x320xf32>
    %c3 = arith.constant 3 : index
    %c0_88 = arith.constant 0 : index
    %c0_89 = arith.constant 0 : index
    %135 = vector.load %arg2[%c3, %c0_88, %c0_89] : memref<9x8x8xbf16, #tpu.memory_space<vmem>>, vector<1x8x8xbf16>
    %136 = vector.shape_cast %135 : vector<1x8x8xbf16> to vector<8x8xbf16>
    %c0_90 = arith.constant 0 : index
    %c0_91 = arith.constant 0 : index
    %c40 = arith.constant 40 : index
    %137 = vector.load %arg5[%c0_90, %c0_91, %c40] : memref<2x8x420xbf16, #tpu.memory_space<vmem>>, vector<1x8x320xbf16>
    %138 = vector.shape_cast %137 : vector<1x8x320xbf16> to vector<8x320xbf16>
    %cst_92 = arith.constant dense<0.000000e+00> : vector<8x320xf32>
    %139 = tpu.matmul %136, %138, %cst_92 {dimension_numbers = #tpu.dot_dimension_numbers<[1], [0], [0], [1], [0, 0, 1, 1], [], []>} : vector<8x8xbf16>, vector<8x320xbf16>, vector<8x320xf32> -> vector<8x320xf32>
    %140 = arith.addf %134, %139 : vector<8x320xf32>
    %c4_93 = arith.constant 4 : index
    %c0_94 = arith.constant 0 : index
    %c0_95 = arith.constant 0 : index
    %141 = vector.load %arg2[%c4_93, %c0_94, %c0_95] : memref<9x8x8xbf16, #tpu.memory_space<vmem>>, vector<1x8x8xbf16>
    %142 = vector.shape_cast %141 : vector<1x8x8xbf16> to vector<8x8xbf16>
    %c0_96 = arith.constant 0 : index
    %c0_97 = arith.constant 0 : index
    %c42_98 = arith.constant 42 : index
    %143 = vector.load %arg5[%c0_96, %c0_97, %c42_98] : memref<2x8x420xbf16, #tpu.memory_space<vmem>>, vector<1x8x320xbf16>
    %144 = vector.shape_cast %143 : vector<1x8x320xbf16> to vector<8x320xbf16>
    %cst_99 = arith.constant dense<0.000000e+00> : vector<8x320xf32>
    %145 = tpu.matmul %142, %144, %cst_99 {dimension_numbers = #tpu.dot_dimension_numbers<[1], [0], [0], [1], [0, 0, 1, 1], [], []>} : vector<8x8xbf16>, vector<8x320xbf16>, vector<8x320xf32> -> vector<8x320xf32>
    %146 = arith.addf %140, %145 : vector<8x320xf32>
    %c5 = arith.constant 5 : index
    %c0_100 = arith.constant 0 : index
    %c0_101 = arith.constant 0 : index
    %147 = vector.load %arg2[%c5, %c0_100, %c0_101] : memref<9x8x8xbf16, #tpu.memory_space<vmem>>, vector<1x8x8xbf16>
    %148 = vector.shape_cast %147 : vector<1x8x8xbf16> to vector<8x8xbf16>
    %c0_102 = arith.constant 0 : index
    %c0_103 = arith.constant 0 : index
    %c44 = arith.constant 44 : index
    %149 = vector.load %arg5[%c0_102, %c0_103, %c44] : memref<2x8x420xbf16, #tpu.memory_space<vmem>>, vector<1x8x320xbf16>
    %150 = vector.shape_cast %149 : vector<1x8x320xbf16> to vector<8x320xbf16>
    %cst_104 = arith.constant dense<0.000000e+00> : vector<8x320xf32>
    %151 = tpu.matmul %148, %150, %cst_104 {dimension_numbers = #tpu.dot_dimension_numbers<[1], [0], [0], [1], [0, 0, 1, 1], [], []>} : vector<8x8xbf16>, vector<8x320xbf16>, vector<8x320xf32> -> vector<8x320xf32>
    %152 = arith.addf %146, %151 : vector<8x320xf32>
    %c6 = arith.constant 6 : index
    %c0_105 = arith.constant 0 : index
    %c0_106 = arith.constant 0 : index
    %153 = vector.load %arg2[%c6, %c0_105, %c0_106] : memref<9x8x8xbf16, #tpu.memory_space<vmem>>, vector<1x8x8xbf16>
    %154 = vector.shape_cast %153 : vector<1x8x8xbf16> to vector<8x8xbf16>
    %c0_107 = arith.constant 0 : index
    %c0_108 = arith.constant 0 : index
    %c80_109 = arith.constant 80 : index
    %155 = vector.load %arg5[%c0_107, %c0_108, %c80_109] : memref<2x8x420xbf16, #tpu.memory_space<vmem>>, vector<1x8x320xbf16>
    %156 = vector.shape_cast %155 : vector<1x8x320xbf16> to vector<8x320xbf16>
    %cst_110 = arith.constant dense<0.000000e+00> : vector<8x320xf32>
    %157 = tpu.matmul %154, %156, %cst_110 {dimension_numbers = #tpu.dot_dimension_numbers<[1], [0], [0], [1], [0, 0, 1, 1], [], []>} : vector<8x8xbf16>, vector<8x320xbf16>, vector<8x320xf32> -> vector<8x320xf32>
    %158 = arith.addf %152, %157 : vector<8x320xf32>
    %c7 = arith.constant 7 : index
    %c0_111 = arith.constant 0 : index
    %c0_112 = arith.constant 0 : index
    %159 = vector.load %arg2[%c7, %c0_111, %c0_112] : memref<9x8x8xbf16, #tpu.memory_space<vmem>>, vector<1x8x8xbf16>
    %160 = vector.shape_cast %159 : vector<1x8x8xbf16> to vector<8x8xbf16>
    %c0_113 = arith.constant 0 : index
    %c0_114 = arith.constant 0 : index
    %c82_115 = arith.constant 82 : index
    %161 = vector.load %arg5[%c0_113, %c0_114, %c82_115] : memref<2x8x420xbf16, #tpu.memory_space<vmem>>, vector<1x8x320xbf16>
    %162 = vector.shape_cast %161 : vector<1x8x320xbf16> to vector<8x320xbf16>
    %cst_116 = arith.constant dense<0.000000e+00> : vector<8x320xf32>
    %163 = tpu.matmul %160, %162, %cst_116 {dimension_numbers = #tpu.dot_dimension_numbers<[1], [0], [0], [1], [0, 0, 1, 1], [], []>} : vector<8x8xbf16>, vector<8x320xbf16>, vector<8x320xf32> -> vector<8x320xf32>
    %164 = arith.addf %158, %163 : vector<8x320xf32>
    %c8 = arith.constant 8 : index
    %c0_117 = arith.constant 0 : index
    %c0_118 = arith.constant 0 : index
    %165 = vector.load %arg2[%c8, %c0_117, %c0_118] : memref<9x8x8xbf16, #tpu.memory_space<vmem>>, vector<1x8x8xbf16>
    %166 = vector.shape_cast %165 : vector<1x8x8xbf16> to vector<8x8xbf16>
    %c0_119 = arith.constant 0 : index
    %c0_120 = arith.constant 0 : index
    %c84 = arith.constant 84 : index
    %167 = vector.load %arg5[%c0_119, %c0_120, %c84] : memref<2x8x420xbf16, #tpu.memory_space<vmem>>, vector<1x8x320xbf16>
    %168 = vector.shape_cast %167 : vector<1x8x320xbf16> to vector<8x320xbf16>
    %cst_121 = arith.constant dense<0.000000e+00> : vector<8x320xf32>
    %169 = tpu.matmul %166, %168, %cst_121 {dimension_numbers = #tpu.dot_dimension_numbers<[1], [0], [0], [1], [0, 0, 1, 1], [], []>} : vector<8x8xbf16>, vector<8x320xbf16>, vector<8x320xf32> -> vector<8x320xf32>
    %170 = arith.addf %164, %169 : vector<8x320xf32>
    %171 = vector.broadcast %0 : vector<8x1xf32> to vector<8x320xf32>
    %172 = arith.addf %170, %171 : vector<8x320xf32>
    %cst_122 = arith.constant 0.000000e+00 : f32
    %173 = vector.broadcast %cst_122 : f32 to vector<8x320xf32>
    %174 = arith.maximumf %172, %173 : vector<8x320xf32>
    %175 = vector.extract_strided_slice %174 {offsets = [0, 0], sizes = [8, 16], strides = [1, 1]} : vector<8x320xf32> to vector<8x16xf32>
    %c0_123 = arith.constant 0 : index
    %c0_124 = arith.constant 0 : index
    %c0_125 = arith.constant 0 : index
    %176 = vector.load %arg4[%c0_123, %c0_124, %c0_125] : memref<2x8x256xf32, #tpu.memory_space<vmem>>, vector<1x8x16xf32>
    %177 = vector.shape_cast %176 : vector<1x8x16xf32> to vector<8x16xf32>
    %178 = vector.shape_cast %175 : vector<8x16xf32> to vector<1x8x16xf32>
    tpu.vector_store %arg4[%c0_123, %c0_124, %c0_125], %178 {strides = array<i32>} : memref<2x8x256xf32, #tpu.memory_space<vmem>>, vector<1x8x16xf32>,
    %179 = vector.extract_strided_slice %174 {offsets = [0, 20], sizes = [8, 16], strides = [1, 1]} : vector<8x320xf32> to vector<8x16xf32>
    %c0_126 = arith.constant 0 : index
    %c0_127 = arith.constant 0 : index
    %c16_128 = arith.constant 16 : index
    %180 = vector.load %arg4[%c0_126, %c0_127, %c16_128] : memref<2x8x256xf32, #tpu.memory_space<vmem>>, vector<1x8x16xf32>
    %181 = vector.shape_cast %180 : vector<1x8x16xf32> to vector<8x16xf32>
    %182 = vector.shape_cast %179 : vector<8x16xf32> to vector<1x8x16xf32>
    tpu.vector_store %arg4[%c0_126, %c0_127, %c16_128], %182 {strides = array<i32>} : memref<2x8x256xf32, #tpu.memory_space<vmem>>, vector<1x8x16xf32>,
    %183 = vector.extract_strided_slice %174 {offsets = [0, 40], sizes = [8, 16], strides = [1, 1]} : vector<8x320xf32> to vector<8x16xf32>
    %c0_129 = arith.constant 0 : index
    %c0_130 = arith.constant 0 : index
    %c32_131 = arith.constant 32 : index
    %184 = vector.load %arg4[%c0_129, %c0_130, %c32_131] : memref<2x8x256xf32, #tpu.memory_space<vmem>>, vector<1x8x16xf32>
    %185 = vector.shape_cast %184 : vector<1x8x16xf32> to vector<8x16xf32>
    %186 = vector.shape_cast %183 : vector<8x16xf32> to vector<1x8x16xf32>
    tpu.vector_store %arg4[%c0_129, %c0_130, %c32_131], %186 {strides = array<i32>} : memref<2x8x256xf32, #tpu.memory_space<vmem>>, vector<1x8x16xf32>,
    %187 = vector.extract_strided_slice %174 {offsets = [0, 60], sizes = [8, 16], strides = [1, 1]} : vector<8x320xf32> to vector<8x16xf32>
    %c0_132 = arith.constant 0 : index
    %c0_133 = arith.constant 0 : index
    %c48_134 = arith.constant 48 : index
    %188 = vector.load %arg4[%c0_132, %c0_133, %c48_134] : memref<2x8x256xf32, #tpu.memory_space<vmem>>, vector<1x8x16xf32>
    %189 = vector.shape_cast %188 : vector<1x8x16xf32> to vector<8x16xf32>
    %190 = vector.shape_cast %187 : vector<8x16xf32> to vector<1x8x16xf32>
    tpu.vector_store %arg4[%c0_132, %c0_133, %c48_134], %190 {strides = array<i32>} : memref<2x8x256xf32, #tpu.memory_space<vmem>>, vector<1x8x16xf32>,
    %191 = vector.extract_strided_slice %174 {offsets = [0, 80], sizes = [8, 16], strides = [1, 1]} : vector<8x320xf32> to vector<8x16xf32>
    %c0_135 = arith.constant 0 : index
    %c0_136 = arith.constant 0 : index
    %c64_137 = arith.constant 64 : index
    %192 = vector.load %arg4[%c0_135, %c0_136, %c64_137] : memref<2x8x256xf32, #tpu.memory_space<vmem>>, vector<1x8x16xf32>
    %193 = vector.shape_cast %192 : vector<1x8x16xf32> to vector<8x16xf32>
    %194 = vector.shape_cast %191 : vector<8x16xf32> to vector<1x8x16xf32>
    tpu.vector_store %arg4[%c0_135, %c0_136, %c64_137], %194 {strides = array<i32>} : memref<2x8x256xf32, #tpu.memory_space<vmem>>, vector<1x8x16xf32>,
    %195 = vector.extract_strided_slice %174 {offsets = [0, 100], sizes = [8, 16], strides = [1, 1]} : vector<8x320xf32> to vector<8x16xf32>
    %c0_138 = arith.constant 0 : index
    %c0_139 = arith.constant 0 : index
    %c80_140 = arith.constant 80 : index
    %196 = vector.load %arg4[%c0_138, %c0_139, %c80_140] : memref<2x8x256xf32, #tpu.memory_space<vmem>>, vector<1x8x16xf32>
    %197 = vector.shape_cast %196 : vector<1x8x16xf32> to vector<8x16xf32>
    %198 = vector.shape_cast %195 : vector<8x16xf32> to vector<1x8x16xf32>
    tpu.vector_store %arg4[%c0_138, %c0_139, %c80_140], %198 {strides = array<i32>} : memref<2x8x256xf32, #tpu.memory_space<vmem>>, vector<1x8x16xf32>,
    %199 = vector.extract_strided_slice %174 {offsets = [0, 120], sizes = [8, 16], strides = [1, 1]} : vector<8x320xf32> to vector<8x16xf32>
    %c0_141 = arith.constant 0 : index
    %c0_142 = arith.constant 0 : index
    %c96_143 = arith.constant 96 : index
    %200 = vector.load %arg4[%c0_141, %c0_142, %c96_143] : memref<2x8x256xf32, #tpu.memory_space<vmem>>, vector<1x8x16xf32>
    %201 = vector.shape_cast %200 : vector<1x8x16xf32> to vector<8x16xf32>
    %202 = vector.shape_cast %199 : vector<8x16xf32> to vector<1x8x16xf32>
    tpu.vector_store %arg4[%c0_141, %c0_142, %c96_143], %202 {strides = array<i32>} : memref<2x8x256xf32, #tpu.memory_space<vmem>>, vector<1x8x16xf32>,
    %203 = vector.extract_strided_slice %174 {offsets = [0, 140], sizes = [8, 16], strides = [1, 1]} : vector<8x320xf32> to vector<8x16xf32>
    %c0_144 = arith.constant 0 : index
    %c0_145 = arith.constant 0 : index
    %c112_146 = arith.constant 112 : index
    %204 = vector.load %arg4[%c0_144, %c0_145, %c112_146] : memref<2x8x256xf32, #tpu.memory_space<vmem>>, vector<1x8x16xf32>
    %205 = vector.shape_cast %204 : vector<1x8x16xf32> to vector<8x16xf32>
    %206 = vector.shape_cast %203 : vector<8x16xf32> to vector<1x8x16xf32>
    tpu.vector_store %arg4[%c0_144, %c0_145, %c112_146], %206 {strides = array<i32>} : memref<2x8x256xf32, #tpu.memory_space<vmem>>, vector<1x8x16xf32>,
    %207 = vector.extract_strided_slice %174 {offsets = [0, 160], sizes = [8, 16], strides = [1, 1]} : vector<8x320xf32> to vector<8x16xf32>
    %c0_147 = arith.constant 0 : index
    %c0_148 = arith.constant 0 : index
    %c128_149 = arith.constant 128 : index
    %208 = vector.load %arg4[%c0_147, %c0_148, %c128_149] : memref<2x8x256xf32, #tpu.memory_space<vmem>>, vector<1x8x16xf32>
    %209 = vector.shape_cast %208 : vector<1x8x16xf32> to vector<8x16xf32>
    %210 = vector.shape_cast %207 : vector<8x16xf32> to vector<1x8x16xf32>
    tpu.vector_store %arg4[%c0_147, %c0_148, %c128_149], %210 {strides = array<i32>} : memref<2x8x256xf32, #tpu.memory_space<vmem>>, vector<1x8x16xf32>,
    %211 = vector.extract_strided_slice %174 {offsets = [0, 180], sizes = [8, 16], strides = [1, 1]} : vector<8x320xf32> to vector<8x16xf32>
    %c0_150 = arith.constant 0 : index
    %c0_151 = arith.constant 0 : index
    %c144_152 = arith.constant 144 : index
    %212 = vector.load %arg4[%c0_150, %c0_151, %c144_152] : memref<2x8x256xf32, #tpu.memory_space<vmem>>, vector<1x8x16xf32>
    %213 = vector.shape_cast %212 : vector<1x8x16xf32> to vector<8x16xf32>
    %214 = vector.shape_cast %211 : vector<8x16xf32> to vector<1x8x16xf32>
    tpu.vector_store %arg4[%c0_150, %c0_151, %c144_152], %214 {strides = array<i32>} : memref<2x8x256xf32, #tpu.memory_space<vmem>>, vector<1x8x16xf32>,
    %215 = vector.extract_strided_slice %174 {offsets = [0, 200], sizes = [8, 16], strides = [1, 1]} : vector<8x320xf32> to vector<8x16xf32>
    %c0_153 = arith.constant 0 : index
    %c0_154 = arith.constant 0 : index
    %c160_155 = arith.constant 160 : index
    %216 = vector.load %arg4[%c0_153, %c0_154, %c160_155] : memref<2x8x256xf32, #tpu.memory_space<vmem>>, vector<1x8x16xf32>
    %217 = vector.shape_cast %216 : vector<1x8x16xf32> to vector<8x16xf32>
    %218 = vector.shape_cast %215 : vector<8x16xf32> to vector<1x8x16xf32>
    tpu.vector_store %arg4[%c0_153, %c0_154, %c160_155], %218 {strides = array<i32>} : memref<2x8x256xf32, #tpu.memory_space<vmem>>, vector<1x8x16xf32>,
    %219 = vector.extract_strided_slice %174 {offsets = [0, 220], sizes = [8, 16], strides = [1, 1]} : vector<8x320xf32> to vector<8x16xf32>
    %c0_156 = arith.constant 0 : index
    %c0_157 = arith.constant 0 : index
    %c176_158 = arith.constant 176 : index
    %220 = vector.load %arg4[%c0_156, %c0_157, %c176_158] : memref<2x8x256xf32, #tpu.memory_space<vmem>>, vector<1x8x16xf32>
    %221 = vector.shape_cast %220 : vector<1x8x16xf32> to vector<8x16xf32>
    %222 = vector.shape_cast %219 : vector<8x16xf32> to vector<1x8x16xf32>
    tpu.vector_store %arg4[%c0_156, %c0_157, %c176_158], %222 {strides = array<i32>} : memref<2x8x256xf32, #tpu.memory_space<vmem>>, vector<1x8x16xf32>,
    %223 = vector.extract_strided_slice %174 {offsets = [0, 240], sizes = [8, 16], strides = [1, 1]} : vector<8x320xf32> to vector<8x16xf32>
    %c0_159 = arith.constant 0 : index
    %c0_160 = arith.constant 0 : index
    %c192_161 = arith.constant 192 : index
    %224 = vector.load %arg4[%c0_159, %c0_160, %c192_161] : memref<2x8x256xf32, #tpu.memory_space<vmem>>, vector<1x8x16xf32>
    %225 = vector.shape_cast %224 : vector<1x8x16xf32> to vector<8x16xf32>
    %226 = vector.shape_cast %223 : vector<8x16xf32> to vector<1x8x16xf32>
    tpu.vector_store %arg4[%c0_159, %c0_160, %c192_161], %226 {strides = array<i32>} : memref<2x8x256xf32, #tpu.memory_space<vmem>>, vector<1x8x16xf32>,
    %227 = vector.extract_strided_slice %174 {offsets = [0, 260], sizes = [8, 16], strides = [1, 1]} : vector<8x320xf32> to vector<8x16xf32>
    %c0_162 = arith.constant 0 : index
    %c0_163 = arith.constant 0 : index
    %c208_164 = arith.constant 208 : index
    %228 = vector.load %arg4[%c0_162, %c0_163, %c208_164] : memref<2x8x256xf32, #tpu.memory_space<vmem>>, vector<1x8x16xf32>
    %229 = vector.shape_cast %228 : vector<1x8x16xf32> to vector<8x16xf32>
    %230 = vector.shape_cast %227 : vector<8x16xf32> to vector<1x8x16xf32>
    tpu.vector_store %arg4[%c0_162, %c0_163, %c208_164], %230 {strides = array<i32>} : memref<2x8x256xf32, #tpu.memory_space<vmem>>, vector<1x8x16xf32>,
    %231 = vector.extract_strided_slice %174 {offsets = [0, 280], sizes = [8, 16], strides = [1, 1]} : vector<8x320xf32> to vector<8x16xf32>
    %c0_165 = arith.constant 0 : index
    %c0_166 = arith.constant 0 : index
    %c224_167 = arith.constant 224 : index
    %232 = vector.load %arg4[%c0_165, %c0_166, %c224_167] : memref<2x8x256xf32, #tpu.memory_space<vmem>>, vector<1x8x16xf32>
    %233 = vector.shape_cast %232 : vector<1x8x16xf32> to vector<8x16xf32>
    %234 = vector.shape_cast %231 : vector<8x16xf32> to vector<1x8x16xf32>
    tpu.vector_store %arg4[%c0_165, %c0_166, %c224_167], %234 {strides = array<i32>} : memref<2x8x256xf32, #tpu.memory_space<vmem>>, vector<1x8x16xf32>,
    %235 = vector.extract_strided_slice %174 {offsets = [0, 300], sizes = [8, 16], strides = [1, 1]} : vector<8x320xf32> to vector<8x16xf32>
    %c0_168 = arith.constant 0 : index
    %c0_169 = arith.constant 0 : index
    %c240_170 = arith.constant 240 : index
    %236 = vector.load %arg4[%c0_168, %c0_169, %c240_170] : memref<2x8x256xf32, #tpu.memory_space<vmem>>, vector<1x8x16xf32>
    %237 = vector.shape_cast %236 : vector<1x8x16xf32> to vector<8x16xf32>
    %238 = vector.shape_cast %235 : vector<8x16xf32> to vector<1x8x16xf32>
    tpu.vector_store %arg4[%c0_168, %c0_169, %c240_170], %238 {strides = array<i32>} : memref<2x8x256xf32, #tpu.memory_space<vmem>>, vector<1x8x16xf32>,
    %cst_171 = arith.constant 0.000000e+00 : bf16
    %239 = vector.broadcast %cst_171 : bf16 to vector<8x420xbf16>
    %c1_172 = arith.constant 1 : index
    %c0_173 = arith.constant 0 : index
    %c0_174 = arith.constant 0 : index
    %240 = vector.load %arg5[%c1_172, %c0_173, %c0_174] : memref<2x8x420xbf16, #tpu.memory_space<vmem>>, vector<1x8x420xbf16>
    %241 = vector.shape_cast %240 : vector<1x8x420xbf16> to vector<8x420xbf16>
    %242 = vector.shape_cast %239 : vector<8x420xbf16> to vector<1x8x420xbf16>
    tpu.vector_store %arg5[%c1_172, %c0_173, %c0_174], %242 {strides = array<i32>} : memref<2x8x420xbf16, #tpu.memory_space<vmem>>, vector<1x8x420xbf16>,
    %c1_175 = arith.constant 1 : index
    %c0_176 = arith.constant 0 : index
    %c0_177 = arith.constant 0 : index
    %243 = vector.load %arg1[%c1_175, %c0_176, %c0_177] : memref<2x4x256xf32, #tpu.memory_space<vmem>>, vector<1x4x16xf32>
    %244 = vector.shape_cast %243 : vector<1x4x16xf32> to vector<4x16xf32>
    %245 = arith.truncf %244 : vector<4x16xf32> to vector<4x16xbf16>
    %246 = tpu.concatenate %245, %1 in 0 : vector<4x16xbf16>, vector<4x16xbf16> -> vector<8x16xbf16>
    %c1_178 = arith.constant 1 : index
    %c0_179 = arith.constant 0 : index
    %c42_180 = arith.constant 42 : index
    %247 = vector.load %arg5[%c1_178, %c0_179, %c42_180] : memref<2x8x420xbf16, #tpu.memory_space<vmem>>, vector<1x8x16xbf16>
    %248 = vector.shape_cast %247 : vector<1x8x16xbf16> to vector<8x16xbf16>
    %249 = vector.shape_cast %246 : vector<8x16xbf16> to vector<1x8x16xbf16>
    tpu.vector_store %arg5[%c1_178, %c0_179, %c42_180], %249 {strides = array<i32>} : memref<2x8x420xbf16, #tpu.memory_space<vmem>>, vector<1x8x16xbf16>,
    %c1_181 = arith.constant 1 : index
    %c0_182 = arith.constant 0 : index
    %c16_183 = arith.constant 16 : index
    %250 = vector.load %arg1[%c1_181, %c0_182, %c16_183] : memref<2x4x256xf32, #tpu.memory_space<vmem>>, vector<1x4x16xf32>
    %251 = vector.shape_cast %250 : vector<1x4x16xf32> to vector<4x16xf32>
    %252 = arith.truncf %251 : vector<4x16xf32> to vector<4x16xbf16>
    %253 = tpu.concatenate %252, %1 in 0 : vector<4x16xbf16>, vector<4x16xbf16> -> vector<8x16xbf16>
    %c1_184 = arith.constant 1 : index
    %c0_185 = arith.constant 0 : index
    %c62_186 = arith.constant 62 : index
    %254 = vector.load %arg5[%c1_184, %c0_185, %c62_186] : memref<2x8x420xbf16, #tpu.memory_space<vmem>>, vector<1x8x16xbf16>
    %255 = vector.shape_cast %254 : vector<1x8x16xbf16> to vector<8x16xbf16>
    %256 = vector.shape_cast %253 : vector<8x16xbf16> to vector<1x8x16xbf16>
    tpu.vector_store %arg5[%c1_184, %c0_185, %c62_186], %256 {strides = array<i32>} : memref<2x8x420xbf16, #tpu.memory_space<vmem>>, vector<1x8x16xbf16>,
    %c1_187 = arith.constant 1 : index
    %c0_188 = arith.constant 0 : index
    %c32_189 = arith.constant 32 : index
    %257 = vector.load %arg1[%c1_187, %c0_188, %c32_189] : memref<2x4x256xf32, #tpu.memory_space<vmem>>, vector<1x4x16xf32>
    %258 = vector.shape_cast %257 : vector<1x4x16xf32> to vector<4x16xf32>
    %259 = arith.truncf %258 : vector<4x16xf32> to vector<4x16xbf16>
    %260 = tpu.concatenate %259, %1 in 0 : vector<4x16xbf16>, vector<4x16xbf16> -> vector<8x16xbf16>
    %c1_190 = arith.constant 1 : index
    %c0_191 = arith.constant 0 : index
    %c82_192 = arith.constant 82 : index
    %261 = vector.load %arg5[%c1_190, %c0_191, %c82_192] : memref<2x8x420xbf16, #tpu.memory_space<vmem>>, vector<1x8x16xbf16>
    %262 = vector.shape_cast %261 : vector<1x8x16xbf16> to vector<8x16xbf16>
    %263 = vector.shape_cast %260 : vector<8x16xbf16> to vector<1x8x16xbf16>
    tpu.vector_store %arg5[%c1_190, %c0_191, %c82_192], %263 {strides = array<i32>} : memref<2x8x420xbf16, #tpu.memory_space<vmem>>, vector<1x8x16xbf16>,
    %c1_193 = arith.constant 1 : index
    %c0_194 = arith.constant 0 : index
    %c48_195 = arith.constant 48 : index
    %264 = vector.load %arg1[%c1_193, %c0_194, %c48_195] : memref<2x4x256xf32, #tpu.memory_space<vmem>>, vector<1x4x16xf32>
    %265 = vector.shape_cast %264 : vector<1x4x16xf32> to vector<4x16xf32>
    %266 = arith.truncf %265 : vector<4x16xf32> to vector<4x16xbf16>
    %267 = tpu.concatenate %266, %1 in 0 : vector<4x16xbf16>, vector<4x16xbf16> -> vector<8x16xbf16>
    %c1_196 = arith.constant 1 : index
    %c0_197 = arith.constant 0 : index
    %c102_198 = arith.constant 102 : index
    %268 = vector.load %arg5[%c1_196, %c0_197, %c102_198] : memref<2x8x420xbf16, #tpu.memory_space<vmem>>, vector<1x8x16xbf16>
    %269 = vector.shape_cast %268 : vector<1x8x16xbf16> to vector<8x16xbf16>
    %270 = vector.shape_cast %267 : vector<8x16xbf16> to vector<1x8x16xbf16>
    tpu.vector_store %arg5[%c1_196, %c0_197, %c102_198], %270 {strides = array<i32>} : memref<2x8x420xbf16, #tpu.memory_space<vmem>>, vector<1x8x16xbf16>,
    %c1_199 = arith.constant 1 : index
    %c0_200 = arith.constant 0 : index
    %c64_201 = arith.constant 64 : index
    %271 = vector.load %arg1[%c1_199, %c0_200, %c64_201] : memref<2x4x256xf32, #tpu.memory_space<vmem>>, vector<1x4x16xf32>
    %272 = vector.shape_cast %271 : vector<1x4x16xf32> to vector<4x16xf32>
    %273 = arith.truncf %272 : vector<4x16xf32> to vector<4x16xbf16>
    %274 = tpu.concatenate %273, %1 in 0 : vector<4x16xbf16>, vector<4x16xbf16> -> vector<8x16xbf16>
    %c1_202 = arith.constant 1 : index
    %c0_203 = arith.constant 0 : index
    %c122_204 = arith.constant 122 : index
    %275 = vector.load %arg5[%c1_202, %c0_203, %c122_204] : memref<2x8x420xbf16, #tpu.memory_space<vmem>>, vector<1x8x16xbf16>
    %276 = vector.shape_cast %275 : vector<1x8x16xbf16> to vector<8x16xbf16>
    %277 = vector.shape_cast %274 : vector<8x16xbf16> to vector<1x8x16xbf16>
    tpu.vector_store %arg5[%c1_202, %c0_203, %c122_204], %277 {strides = array<i32>} : memref<2x8x420xbf16, #tpu.memory_space<vmem>>, vector<1x8x16xbf16>,
    %c1_205 = arith.constant 1 : index
    %c0_206 = arith.constant 0 : index
    %c80_207 = arith.constant 80 : index
    %278 = vector.load %arg1[%c1_205, %c0_206, %c80_207] : memref<2x4x256xf32, #tpu.memory_space<vmem>>, vector<1x4x16xf32>
    %279 = vector.shape_cast %278 : vector<1x4x16xf32> to vector<4x16xf32>
    %280 = arith.truncf %279 : vector<4x16xf32> to vector<4x16xbf16>
    %281 = tpu.concatenate %280, %1 in 0 : vector<4x16xbf16>, vector<4x16xbf16> -> vector<8x16xbf16>
    %c1_208 = arith.constant 1 : index
    %c0_209 = arith.constant 0 : index
    %c142_210 = arith.constant 142 : index
    %282 = vector.load %arg5[%c1_208, %c0_209, %c142_210] : memref<2x8x420xbf16, #tpu.memory_space<vmem>>, vector<1x8x16xbf16>
    %283 = vector.shape_cast %282 : vector<1x8x16xbf16> to vector<8x16xbf16>
    %284 = vector.shape_cast %281 : vector<8x16xbf16> to vector<1x8x16xbf16>
    tpu.vector_store %arg5[%c1_208, %c0_209, %c142_210], %284 {strides = array<i32>} : memref<2x8x420xbf16, #tpu.memory_space<vmem>>, vector<1x8x16xbf16>,
    %c1_211 = arith.constant 1 : index
    %c0_212 = arith.constant 0 : index
    %c96_213 = arith.constant 96 : index
    %285 = vector.load %arg1[%c1_211, %c0_212, %c96_213] : memref<2x4x256xf32, #tpu.memory_space<vmem>>, vector<1x4x16xf32>
    %286 = vector.shape_cast %285 : vector<1x4x16xf32> to vector<4x16xf32>
    %287 = arith.truncf %286 : vector<4x16xf32> to vector<4x16xbf16>
    %288 = tpu.concatenate %287, %1 in 0 : vector<4x16xbf16>, vector<4x16xbf16> -> vector<8x16xbf16>
    %c1_214 = arith.constant 1 : index
    %c0_215 = arith.constant 0 : index
    %c162_216 = arith.constant 162 : index
    %289 = vector.load %arg5[%c1_214, %c0_215, %c162_216] : memref<2x8x420xbf16, #tpu.memory_space<vmem>>, vector<1x8x16xbf16>
    %290 = vector.shape_cast %289 : vector<1x8x16xbf16> to vector<8x16xbf16>
    %291 = vector.shape_cast %288 : vector<8x16xbf16> to vector<1x8x16xbf16>
    tpu.vector_store %arg5[%c1_214, %c0_215, %c162_216], %291 {strides = array<i32>} : memref<2x8x420xbf16, #tpu.memory_space<vmem>>, vector<1x8x16xbf16>,
    %c1_217 = arith.constant 1 : index
    %c0_218 = arith.constant 0 : index
    %c112_219 = arith.constant 112 : index
    %292 = vector.load %arg1[%c1_217, %c0_218, %c112_219] : memref<2x4x256xf32, #tpu.memory_space<vmem>>, vector<1x4x16xf32>
    %293 = vector.shape_cast %292 : vector<1x4x16xf32> to vector<4x16xf32>
    %294 = arith.truncf %293 : vector<4x16xf32> to vector<4x16xbf16>
    %295 = tpu.concatenate %294, %1 in 0 : vector<4x16xbf16>, vector<4x16xbf16> -> vector<8x16xbf16>
    %c1_220 = arith.constant 1 : index
    %c0_221 = arith.constant 0 : index
    %c182_222 = arith.constant 182 : index
    %296 = vector.load %arg5[%c1_220, %c0_221, %c182_222] : memref<2x8x420xbf16, #tpu.memory_space<vmem>>, vector<1x8x16xbf16>
    %297 = vector.shape_cast %296 : vector<1x8x16xbf16> to vector<8x16xbf16>
    %298 = vector.shape_cast %295 : vector<8x16xbf16> to vector<1x8x16xbf16>
    tpu.vector_store %arg5[%c1_220, %c0_221, %c182_222], %298 {strides = array<i32>} : memref<2x8x420xbf16, #tpu.memory_space<vmem>>, vector<1x8x16xbf16>,
    %c1_223 = arith.constant 1 : index
    %c0_224 = arith.constant 0 : index
    %c128_225 = arith.constant 128 : index
    %299 = vector.load %arg1[%c1_223, %c0_224, %c128_225] : memref<2x4x256xf32, #tpu.memory_space<vmem>>, vector<1x4x16xf32>
    %300 = vector.shape_cast %299 : vector<1x4x16xf32> to vector<4x16xf32>
    %301 = arith.truncf %300 : vector<4x16xf32> to vector<4x16xbf16>
    %302 = tpu.concatenate %301, %1 in 0 : vector<4x16xbf16>, vector<4x16xbf16> -> vector<8x16xbf16>
    %c1_226 = arith.constant 1 : index
    %c0_227 = arith.constant 0 : index
    %c202_228 = arith.constant 202 : index
    %303 = vector.load %arg5[%c1_226, %c0_227, %c202_228] : memref<2x8x420xbf16, #tpu.memory_space<vmem>>, vector<1x8x16xbf16>
    %304 = vector.shape_cast %303 : vector<1x8x16xbf16> to vector<8x16xbf16>
    %305 = vector.shape_cast %302 : vector<8x16xbf16> to vector<1x8x16xbf16>
    tpu.vector_store %arg5[%c1_226, %c0_227, %c202_228], %305 {strides = array<i32>} : memref<2x8x420xbf16, #tpu.memory_space<vmem>>, vector<1x8x16xbf16>,
    %c1_229 = arith.constant 1 : index
    %c0_230 = arith.constant 0 : index
    %c144_231 = arith.constant 144 : index
    %306 = vector.load %arg1[%c1_229, %c0_230, %c144_231] : memref<2x4x256xf32, #tpu.memory_space<vmem>>, vector<1x4x16xf32>
    %307 = vector.shape_cast %306 : vector<1x4x16xf32> to vector<4x16xf32>
    %308 = arith.truncf %307 : vector<4x16xf32> to vector<4x16xbf16>
    %309 = tpu.concatenate %308, %1 in 0 : vector<4x16xbf16>, vector<4x16xbf16> -> vector<8x16xbf16>
    %c1_232 = arith.constant 1 : index
    %c0_233 = arith.constant 0 : index
    %c222_234 = arith.constant 222 : index
    %310 = vector.load %arg5[%c1_232, %c0_233, %c222_234] : memref<2x8x420xbf16, #tpu.memory_space<vmem>>, vector<1x8x16xbf16>
    %311 = vector.shape_cast %310 : vector<1x8x16xbf16> to vector<8x16xbf16>
    %312 = vector.shape_cast %309 : vector<8x16xbf16> to vector<1x8x16xbf16>
    tpu.vector_store %arg5[%c1_232, %c0_233, %c222_234], %312 {strides = array<i32>} : memref<2x8x420xbf16, #tpu.memory_space<vmem>>, vector<1x8x16xbf16>,
    %c1_235 = arith.constant 1 : index
    %c0_236 = arith.constant 0 : index
    %c160_237 = arith.constant 160 : index
    %313 = vector.load %arg1[%c1_235, %c0_236, %c160_237] : memref<2x4x256xf32, #tpu.memory_space<vmem>>, vector<1x4x16xf32>
    %314 = vector.shape_cast %313 : vector<1x4x16xf32> to vector<4x16xf32>
    %315 = arith.truncf %314 : vector<4x16xf32> to vector<4x16xbf16>
    %316 = tpu.concatenate %315, %1 in 0 : vector<4x16xbf16>, vector<4x16xbf16> -> vector<8x16xbf16>
    %c1_238 = arith.constant 1 : index
    %c0_239 = arith.constant 0 : index
    %c242_240 = arith.constant 242 : index
    %317 = vector.load %arg5[%c1_238, %c0_239, %c242_240] : memref<2x8x420xbf16, #tpu.memory_space<vmem>>, vector<1x8x16xbf16>
    %318 = vector.shape_cast %317 : vector<1x8x16xbf16> to vector<8x16xbf16>
    %319 = vector.shape_cast %316 : vector<8x16xbf16> to vector<1x8x16xbf16>
    tpu.vector_store %arg5[%c1_238, %c0_239, %c242_240], %319 {strides = array<i32>} : memref<2x8x420xbf16, #tpu.memory_space<vmem>>, vector<1x8x16xbf16>,
    %c1_241 = arith.constant 1 : index
    %c0_242 = arith.constant 0 : index
    %c176_243 = arith.constant 176 : index
    %320 = vector.load %arg1[%c1_241, %c0_242, %c176_243] : memref<2x4x256xf32, #tpu.memory_space<vmem>>, vector<1x4x16xf32>
    %321 = vector.shape_cast %320 : vector<1x4x16xf32> to vector<4x16xf32>
    %322 = arith.truncf %321 : vector<4x16xf32> to vector<4x16xbf16>
    %323 = tpu.concatenate %322, %1 in 0 : vector<4x16xbf16>, vector<4x16xbf16> -> vector<8x16xbf16>
    %c1_244 = arith.constant 1 : index
    %c0_245 = arith.constant 0 : index
    %c262_246 = arith.constant 262 : index
    %324 = vector.load %arg5[%c1_244, %c0_245, %c262_246] : memref<2x8x420xbf16, #tpu.memory_space<vmem>>, vector<1x8x16xbf16>
    %325 = vector.shape_cast %324 : vector<1x8x16xbf16> to vector<8x16xbf16>
    %326 = vector.shape_cast %323 : vector<8x16xbf16> to vector<1x8x16xbf16>
    tpu.vector_store %arg5[%c1_244, %c0_245, %c262_246], %326 {strides = array<i32>} : memref<2x8x420xbf16, #tpu.memory_space<vmem>>, vector<1x8x16xbf16>,
    %c1_247 = arith.constant 1 : index
    %c0_248 = arith.constant 0 : index
    %c192_249 = arith.constant 192 : index
    %327 = vector.load %arg1[%c1_247, %c0_248, %c192_249] : memref<2x4x256xf32, #tpu.memory_space<vmem>>, vector<1x4x16xf32>
    %328 = vector.shape_cast %327 : vector<1x4x16xf32> to vector<4x16xf32>
    %329 = arith.truncf %328 : vector<4x16xf32> to vector<4x16xbf16>
    %330 = tpu.concatenate %329, %1 in 0 : vector<4x16xbf16>, vector<4x16xbf16> -> vector<8x16xbf16>
    %c1_250 = arith.constant 1 : index
    %c0_251 = arith.constant 0 : index
    %c282_252 = arith.constant 282 : index
    %331 = vector.load %arg5[%c1_250, %c0_251, %c282_252] : memref<2x8x420xbf16, #tpu.memory_space<vmem>>, vector<1x8x16xbf16>
    %332 = vector.shape_cast %331 : vector<1x8x16xbf16> to vector<8x16xbf16>
    %333 = vector.shape_cast %330 : vector<8x16xbf16> to vector<1x8x16xbf16>
    tpu.vector_store %arg5[%c1_250, %c0_251, %c282_252], %333 {strides = array<i32>} : memref<2x8x420xbf16, #tpu.memory_space<vmem>>, vector<1x8x16xbf16>,
    %c1_253 = arith.constant 1 : index
    %c0_254 = arith.constant 0 : index
    %c208_255 = arith.constant 208 : index
    %334 = vector.load %arg1[%c1_253, %c0_254, %c208_255] : memref<2x4x256xf32, #tpu.memory_space<vmem>>, vector<1x4x16xf32>
    %335 = vector.shape_cast %334 : vector<1x4x16xf32> to vector<4x16xf32>
    %336 = arith.truncf %335 : vector<4x16xf32> to vector<4x16xbf16>
    %337 = tpu.concatenate %336, %1 in 0 : vector<4x16xbf16>, vector<4x16xbf16> -> vector<8x16xbf16>
    %c1_256 = arith.constant 1 : index
    %c0_257 = arith.constant 0 : index
    %c302_258 = arith.constant 302 : index
    %338 = vector.load %arg5[%c1_256, %c0_257, %c302_258] : memref<2x8x420xbf16, #tpu.memory_space<vmem>>, vector<1x8x16xbf16>
    %339 = vector.shape_cast %338 : vector<1x8x16xbf16> to vector<8x16xbf16>
    %340 = vector.shape_cast %337 : vector<8x16xbf16> to vector<1x8x16xbf16>
    tpu.vector_store %arg5[%c1_256, %c0_257, %c302_258], %340 {strides = array<i32>} : memref<2x8x420xbf16, #tpu.memory_space<vmem>>, vector<1x8x16xbf16>,
    %c1_259 = arith.constant 1 : index
    %c0_260 = arith.constant 0 : index
    %c224_261 = arith.constant 224 : index
    %341 = vector.load %arg1[%c1_259, %c0_260, %c224_261] : memref<2x4x256xf32, #tpu.memory_space<vmem>>, vector<1x4x16xf32>
    %342 = vector.shape_cast %341 : vector<1x4x16xf32> to vector<4x16xf32>
    %343 = arith.truncf %342 : vector<4x16xf32> to vector<4x16xbf16>
    %344 = tpu.concatenate %343, %1 in 0 : vector<4x16xbf16>, vector<4x16xbf16> -> vector<8x16xbf16>
    %c1_262 = arith.constant 1 : index
    %c0_263 = arith.constant 0 : index
    %c322_264 = arith.constant 322 : index
    %345 = vector.load %arg5[%c1_262, %c0_263, %c322_264] : memref<2x8x420xbf16, #tpu.memory_space<vmem>>, vector<1x8x16xbf16>
    %346 = vector.shape_cast %345 : vector<1x8x16xbf16> to vector<8x16xbf16>
    %347 = vector.shape_cast %344 : vector<8x16xbf16> to vector<1x8x16xbf16>
    tpu.vector_store %arg5[%c1_262, %c0_263, %c322_264], %347 {strides = array<i32>} : memref<2x8x420xbf16, #tpu.memory_space<vmem>>, vector<1x8x16xbf16>,
    %c1_265 = arith.constant 1 : index
    %c0_266 = arith.constant 0 : index
    %c240_267 = arith.constant 240 : index
    %348 = vector.load %arg1[%c1_265, %c0_266, %c240_267] : memref<2x4x256xf32, #tpu.memory_space<vmem>>, vector<1x4x16xf32>
    %349 = vector.shape_cast %348 : vector<1x4x16xf32> to vector<4x16xf32>
    %350 = arith.truncf %349 : vector<4x16xf32> to vector<4x16xbf16>
    %351 = tpu.concatenate %350, %1 in 0 : vector<4x16xbf16>, vector<4x16xbf16> -> vector<8x16xbf16>
    %c1_268 = arith.constant 1 : index
    %c0_269 = arith.constant 0 : index
    %c342_270 = arith.constant 342 : index
    %352 = vector.load %arg5[%c1_268, %c0_269, %c342_270] : memref<2x8x420xbf16, #tpu.memory_space<vmem>>, vector<1x8x16xbf16>
    %353 = vector.shape_cast %352 : vector<1x8x16xbf16> to vector<8x16xbf16>
    %354 = vector.shape_cast %351 : vector<8x16xbf16> to vector<1x8x16xbf16>
    tpu.vector_store %arg5[%c1_268, %c0_269, %c342_270], %354 {strides = array<i32>} : memref<2x8x420xbf16, #tpu.memory_space<vmem>>, vector<1x8x16xbf16>,
    %c0_271 = arith.constant 0 : index
    %c0_272 = arith.constant 0 : index
    %c0_273 = arith.constant 0 : index
    %355 = vector.load %arg2[%c0_271, %c0_272, %c0_273] : memref<9x8x8xbf16, #tpu.memory_space<vmem>>, vector<1x8x8xbf16>
    %356 = vector.shape_cast %355 : vector<1x8x8xbf16> to vector<8x8xbf16>
    %c1_274 = arith.constant 1 : index
    %c0_275 = arith.constant 0 : index
    %c0_276 = arith.constant 0 : index
    %357 = vector.load %arg5[%c1_274, %c0_275, %c0_276] : memref<2x8x420xbf16, #tpu.memory_space<vmem>>, vector<1x8x320xbf16>
    %358 = vector.shape_cast %357 : vector<1x8x320xbf16> to vector<8x320xbf16>
    %cst_277 = arith.constant dense<0.000000e+00> : vector<8x320xf32>
    %359 = tpu.matmul %356, %358, %cst_277 {dimension_numbers = #tpu.dot_dimension_numbers<[1], [0], [0], [1], [0, 0, 1, 1], [], []>} : vector<8x8xbf16>, vector<8x320xbf16>, vector<8x320xf32> -> vector<8x320xf32>
    %c1_278 = arith.constant 1 : index
    %c0_279 = arith.constant 0 : index
    %c0_280 = arith.constant 0 : index
    %360 = vector.load %arg2[%c1_278, %c0_279, %c0_280] : memref<9x8x8xbf16, #tpu.memory_space<vmem>>, vector<1x8x8xbf16>
    %361 = vector.shape_cast %360 : vector<1x8x8xbf16> to vector<8x8xbf16>
    %c1_281 = arith.constant 1 : index
    %c0_282 = arith.constant 0 : index
    %c2_283 = arith.constant 2 : index
    %362 = vector.load %arg5[%c1_281, %c0_282, %c2_283] : memref<2x8x420xbf16, #tpu.memory_space<vmem>>, vector<1x8x320xbf16>
    %363 = vector.shape_cast %362 : vector<1x8x320xbf16> to vector<8x320xbf16>
    %cst_284 = arith.constant dense<0.000000e+00> : vector<8x320xf32>
    %364 = tpu.matmul %361, %363, %cst_284 {dimension_numbers = #tpu.dot_dimension_numbers<[1], [0], [0], [1], [0, 0, 1, 1], [], []>} : vector<8x8xbf16>, vector<8x320xbf16>, vector<8x320xf32> -> vector<8x320xf32>
    %365 = arith.addf %359, %364 : vector<8x320xf32>
    %c2_285 = arith.constant 2 : index
    %c0_286 = arith.constant 0 : index
    %c0_287 = arith.constant 0 : index
    %366 = vector.load %arg2[%c2_285, %c0_286, %c0_287] : memref<9x8x8xbf16, #tpu.memory_space<vmem>>, vector<1x8x8xbf16>
    %367 = vector.shape_cast %366 : vector<1x8x8xbf16> to vector<8x8xbf16>
    %c1_288 = arith.constant 1 : index
    %c0_289 = arith.constant 0 : index
    %c4_290 = arith.constant 4 : index
    %368 = vector.load %arg5[%c1_288, %c0_289, %c4_290] : memref<2x8x420xbf16, #tpu.memory_space<vmem>>, vector<1x8x320xbf16>
    %369 = vector.shape_cast %368 : vector<1x8x320xbf16> to vector<8x320xbf16>
    %cst_291 = arith.constant dense<0.000000e+00> : vector<8x320xf32>
    %370 = tpu.matmul %367, %369, %cst_291 {dimension_numbers = #tpu.dot_dimension_numbers<[1], [0], [0], [1], [0, 0, 1, 1], [], []>} : vector<8x8xbf16>, vector<8x320xbf16>, vector<8x320xf32> -> vector<8x320xf32>
    %371 = arith.addf %365, %370 : vector<8x320xf32>
    %c3_292 = arith.constant 3 : index
    %c0_293 = arith.constant 0 : index
    %c0_294 = arith.constant 0 : index
    %372 = vector.load %arg2[%c3_292, %c0_293, %c0_294] : memref<9x8x8xbf16, #tpu.memory_space<vmem>>, vector<1x8x8xbf16>
    %373 = vector.shape_cast %372 : vector<1x8x8xbf16> to vector<8x8xbf16>
    %c1_295 = arith.constant 1 : index
    %c0_296 = arith.constant 0 : index
    %c40_297 = arith.constant 40 : index
    %374 = vector.load %arg5[%c1_295, %c0_296, %c40_297] : memref<2x8x420xbf16, #tpu.memory_space<vmem>>, vector<1x8x320xbf16>
    %375 = vector.shape_cast %374 : vector<1x8x320xbf16> to vector<8x320xbf16>
    %cst_298 = arith.constant dense<0.000000e+00> : vector<8x320xf32>
    %376 = tpu.matmul %373, %375, %cst_298 {dimension_numbers = #tpu.dot_dimension_numbers<[1], [0], [0], [1], [0, 0, 1, 1], [], []>} : vector<8x8xbf16>, vector<8x320xbf16>, vector<8x320xf32> -> vector<8x320xf32>
    %377 = arith.addf %371, %376 : vector<8x320xf32>
    %c4_299 = arith.constant 4 : index
    %c0_300 = arith.constant 0 : index
    %c0_301 = arith.constant 0 : index
    %378 = vector.load %arg2[%c4_299, %c0_300, %c0_301] : memref<9x8x8xbf16, #tpu.memory_space<vmem>>, vector<1x8x8xbf16>
    %379 = vector.shape_cast %378 : vector<1x8x8xbf16> to vector<8x8xbf16>
    %c1_302 = arith.constant 1 : index
    %c0_303 = arith.constant 0 : index
    %c42_304 = arith.constant 42 : index
    %380 = vector.load %arg5[%c1_302, %c0_303, %c42_304] : memref<2x8x420xbf16, #tpu.memory_space<vmem>>, vector<1x8x320xbf16>
    %381 = vector.shape_cast %380 : vector<1x8x320xbf16> to vector<8x320xbf16>
    %cst_305 = arith.constant dense<0.000000e+00> : vector<8x320xf32>
    %382 = tpu.matmul %379, %381, %cst_305 {dimension_numbers = #tpu.dot_dimension_numbers<[1], [0], [0], [1], [0, 0, 1, 1], [], []>} : vector<8x8xbf16>, vector<8x320xbf16>, vector<8x320xf32> -> vector<8x320xf32>
    %383 = arith.addf %377, %382 : vector<8x320xf32>
    %c5_306 = arith.constant 5 : index
    %c0_307 = arith.constant 0 : index
    %c0_308 = arith.constant 0 : index
    %384 = vector.load %arg2[%c5_306, %c0_307, %c0_308] : memref<9x8x8xbf16, #tpu.memory_space<vmem>>, vector<1x8x8xbf16>
    %385 = vector.shape_cast %384 : vector<1x8x8xbf16> to vector<8x8xbf16>
    %c1_309 = arith.constant 1 : index
    %c0_310 = arith.constant 0 : index
    %c44_311 = arith.constant 44 : index
    %386 = vector.load %arg5[%c1_309, %c0_310, %c44_311] : memref<2x8x420xbf16, #tpu.memory_space<vmem>>, vector<1x8x320xbf16>
    %387 = vector.shape_cast %386 : vector<1x8x320xbf16> to vector<8x320xbf16>
    %cst_312 = arith.constant dense<0.000000e+00> : vector<8x320xf32>
    %388 = tpu.matmul %385, %387, %cst_312 {dimension_numbers = #tpu.dot_dimension_numbers<[1], [0], [0], [1], [0, 0, 1, 1], [], []>} : vector<8x8xbf16>, vector<8x320xbf16>, vector<8x320xf32> -> vector<8x320xf32>
    %389 = arith.addf %383, %388 : vector<8x320xf32>
    %c6_313 = arith.constant 6 : index
    %c0_314 = arith.constant 0 : index
    %c0_315 = arith.constant 0 : index
    %390 = vector.load %arg2[%c6_313, %c0_314, %c0_315] : memref<9x8x8xbf16, #tpu.memory_space<vmem>>, vector<1x8x8xbf16>
    %391 = vector.shape_cast %390 : vector<1x8x8xbf16> to vector<8x8xbf16>
    %c1_316 = arith.constant 1 : index
    %c0_317 = arith.constant 0 : index
    %c80_318 = arith.constant 80 : index
    %392 = vector.load %arg5[%c1_316, %c0_317, %c80_318] : memref<2x8x420xbf16, #tpu.memory_space<vmem>>, vector<1x8x320xbf16>
    %393 = vector.shape_cast %392 : vector<1x8x320xbf16> to vector<8x320xbf16>
    %cst_319 = arith.constant dense<0.000000e+00> : vector<8x320xf32>
    %394 = tpu.matmul %391, %393, %cst_319 {dimension_numbers = #tpu.dot_dimension_numbers<[1], [0], [0], [1], [0, 0, 1, 1], [], []>} : vector<8x8xbf16>, vector<8x320xbf16>, vector<8x320xf32> -> vector<8x320xf32>
    %395 = arith.addf %389, %394 : vector<8x320xf32>
    %c7_320 = arith.constant 7 : index
    %c0_321 = arith.constant 0 : index
    %c0_322 = arith.constant 0 : index
    %396 = vector.load %arg2[%c7_320, %c0_321, %c0_322] : memref<9x8x8xbf16, #tpu.memory_space<vmem>>, vector<1x8x8xbf16>
    %397 = vector.shape_cast %396 : vector<1x8x8xbf16> to vector<8x8xbf16>
    %c1_323 = arith.constant 1 : index
    %c0_324 = arith.constant 0 : index
    %c82_325 = arith.constant 82 : index
    %398 = vector.load %arg5[%c1_323, %c0_324, %c82_325] : memref<2x8x420xbf16, #tpu.memory_space<vmem>>, vector<1x8x320xbf16>
    %399 = vector.shape_cast %398 : vector<1x8x320xbf16> to vector<8x320xbf16>
    %cst_326 = arith.constant dense<0.000000e+00> : vector<8x320xf32>
    %400 = tpu.matmul %397, %399, %cst_326 {dimension_numbers = #tpu.dot_dimension_numbers<[1], [0], [0], [1], [0, 0, 1, 1], [], []>} : vector<8x8xbf16>, vector<8x320xbf16>, vector<8x320xf32> -> vector<8x320xf32>
    %401 = arith.addf %395, %400 : vector<8x320xf32>
    %c8_327 = arith.constant 8 : index
    %c0_328 = arith.constant 0 : index
    %c0_329 = arith.constant 0 : index
    %402 = vector.load %arg2[%c8_327, %c0_328, %c0_329] : memref<9x8x8xbf16, #tpu.memory_space<vmem>>, vector<1x8x8xbf16>
    %403 = vector.shape_cast %402 : vector<1x8x8xbf16> to vector<8x8xbf16>
    %c1_330 = arith.constant 1 : index
    %c0_331 = arith.constant 0 : index
    %c84_332 = arith.constant 84 : index
    %404 = vector.load %arg5[%c1_330, %c0_331, %c84_332] : memref<2x8x420xbf16, #tpu.memory_space<vmem>>, vector<1x8x320xbf16>
    %405 = vector.shape_cast %404 : vector<1x8x320xbf16> to vector<8x320xbf16>
    %cst_333 = arith.constant dense<0.000000e+00> : vector<8x320xf32>
    %406 = tpu.matmul %403, %405, %cst_333 {dimension_numbers = #tpu.dot_dimension_numbers<[1], [0], [0], [1], [0, 0, 1, 1], [], []>} : vector<8x8xbf16>, vector<8x320xbf16>, vector<8x320xf32> -> vector<8x320xf32>
    %407 = arith.addf %401, %406 : vector<8x320xf32>
    %408 = vector.broadcast %0 : vector<8x1xf32> to vector<8x320xf32>
    %409 = arith.addf %407, %408 : vector<8x320xf32>
    %cst_334 = arith.constant 0.000000e+00 : f32
    %410 = vector.broadcast %cst_334 : f32 to vector<8x320xf32>
    %411 = arith.maximumf %409, %410 : vector<8x320xf32>
    %412 = vector.extract_strided_slice %411 {offsets = [0, 0], sizes = [8, 16], strides = [1, 1]} : vector<8x320xf32> to vector<8x16xf32>
    %c1_335 = arith.constant 1 : index
    %c0_336 = arith.constant 0 : index
    %c0_337 = arith.constant 0 : index
    %413 = vector.load %arg4[%c1_335, %c0_336, %c0_337] : memref<2x8x256xf32, #tpu.memory_space<vmem>>, vector<1x8x16xf32>
    %414 = vector.shape_cast %413 : vector<1x8x16xf32> to vector<8x16xf32>
    %415 = vector.shape_cast %412 : vector<8x16xf32> to vector<1x8x16xf32>
    tpu.vector_store %arg4[%c1_335, %c0_336, %c0_337], %415 {strides = array<i32>} : memref<2x8x256xf32, #tpu.memory_space<vmem>>, vector<1x8x16xf32>,
    %416 = vector.extract_strided_slice %411 {offsets = [0, 20], sizes = [8, 16], strides = [1, 1]} : vector<8x320xf32> to vector<8x16xf32>
    %c1_338 = arith.constant 1 : index
    %c0_339 = arith.constant 0 : index
    %c16_340 = arith.constant 16 : index
    %417 = vector.load %arg4[%c1_338, %c0_339, %c16_340] : memref<2x8x256xf32, #tpu.memory_space<vmem>>, vector<1x8x16xf32>
    %418 = vector.shape_cast %417 : vector<1x8x16xf32> to vector<8x16xf32>
    %419 = vector.shape_cast %416 : vector<8x16xf32> to vector<1x8x16xf32>
    tpu.vector_store %arg4[%c1_338, %c0_339, %c16_340], %419 {strides = array<i32>} : memref<2x8x256xf32, #tpu.memory_space<vmem>>, vector<1x8x16xf32>,
    %420 = vector.extract_strided_slice %411 {offsets = [0, 40], sizes = [8, 16], strides = [1, 1]} : vector<8x320xf32> to vector<8x16xf32>
    %c1_341 = arith.constant 1 : index
    %c0_342 = arith.constant 0 : index
    %c32_343 = arith.constant 32 : index
    %421 = vector.load %arg4[%c1_341, %c0_342, %c32_343] : memref<2x8x256xf32, #tpu.memory_space<vmem>>, vector<1x8x16xf32>
    %422 = vector.shape_cast %421 : vector<1x8x16xf32> to vector<8x16xf32>
    %423 = vector.shape_cast %420 : vector<8x16xf32> to vector<1x8x16xf32>
    tpu.vector_store %arg4[%c1_341, %c0_342, %c32_343], %423 {strides = array<i32>} : memref<2x8x256xf32, #tpu.memory_space<vmem>>, vector<1x8x16xf32>,
    %424 = vector.extract_strided_slice %411 {offsets = [0, 60], sizes = [8, 16], strides = [1, 1]} : vector<8x320xf32> to vector<8x16xf32>
    %c1_344 = arith.constant 1 : index
    %c0_345 = arith.constant 0 : index
    %c48_346 = arith.constant 48 : index
    %425 = vector.load %arg4[%c1_344, %c0_345, %c48_346] : memref<2x8x256xf32, #tpu.memory_space<vmem>>, vector<1x8x16xf32>
    %426 = vector.shape_cast %425 : vector<1x8x16xf32> to vector<8x16xf32>
    %427 = vector.shape_cast %424 : vector<8x16xf32> to vector<1x8x16xf32>
    tpu.vector_store %arg4[%c1_344, %c0_345, %c48_346], %427 {strides = array<i32>} : memref<2x8x256xf32, #tpu.memory_space<vmem>>, vector<1x8x16xf32>,
    %428 = vector.extract_strided_slice %411 {offsets = [0, 80], sizes = [8, 16], strides = [1, 1]} : vector<8x320xf32> to vector<8x16xf32>
    %c1_347 = arith.constant 1 : index
    %c0_348 = arith.constant 0 : index
    %c64_349 = arith.constant 64 : index
    %429 = vector.load %arg4[%c1_347, %c0_348, %c64_349] : memref<2x8x256xf32, #tpu.memory_space<vmem>>, vector<1x8x16xf32>
    %430 = vector.shape_cast %429 : vector<1x8x16xf32> to vector<8x16xf32>
    %431 = vector.shape_cast %428 : vector<8x16xf32> to vector<1x8x16xf32>
    tpu.vector_store %arg4[%c1_347, %c0_348, %c64_349], %431 {strides = array<i32>} : memref<2x8x256xf32, #tpu.memory_space<vmem>>, vector<1x8x16xf32>,
    %432 = vector.extract_strided_slice %411 {offsets = [0, 100], sizes = [8, 16], strides = [1, 1]} : vector<8x320xf32> to vector<8x16xf32>
    %c1_350 = arith.constant 1 : index
    %c0_351 = arith.constant 0 : index
    %c80_352 = arith.constant 80 : index
    %433 = vector.load %arg4[%c1_350, %c0_351, %c80_352] : memref<2x8x256xf32, #tpu.memory_space<vmem>>, vector<1x8x16xf32>
    %434 = vector.shape_cast %433 : vector<1x8x16xf32> to vector<8x16xf32>
    %435 = vector.shape_cast %432 : vector<8x16xf32> to vector<1x8x16xf32>
    tpu.vector_store %arg4[%c1_350, %c0_351, %c80_352], %435 {strides = array<i32>} : memref<2x8x256xf32, #tpu.memory_space<vmem>>, vector<1x8x16xf32>,
    %436 = vector.extract_strided_slice %411 {offsets = [0, 120], sizes = [8, 16], strides = [1, 1]} : vector<8x320xf32> to vector<8x16xf32>
    %c1_353 = arith.constant 1 : index
    %c0_354 = arith.constant 0 : index
    %c96_355 = arith.constant 96 : index
    %437 = vector.load %arg4[%c1_353, %c0_354, %c96_355] : memref<2x8x256xf32, #tpu.memory_space<vmem>>, vector<1x8x16xf32>
    %438 = vector.shape_cast %437 : vector<1x8x16xf32> to vector<8x16xf32>
    %439 = vector.shape_cast %436 : vector<8x16xf32> to vector<1x8x16xf32>
    tpu.vector_store %arg4[%c1_353, %c0_354, %c96_355], %439 {strides = array<i32>} : memref<2x8x256xf32, #tpu.memory_space<vmem>>, vector<1x8x16xf32>,
    %440 = vector.extract_strided_slice %411 {offsets = [0, 140], sizes = [8, 16], strides = [1, 1]} : vector<8x320xf32> to vector<8x16xf32>
    %c1_356 = arith.constant 1 : index
    %c0_357 = arith.constant 0 : index
    %c112_358 = arith.constant 112 : index
    %441 = vector.load %arg4[%c1_356, %c0_357, %c112_358] : memref<2x8x256xf32, #tpu.memory_space<vmem>>, vector<1x8x16xf32>
    %442 = vector.shape_cast %441 : vector<1x8x16xf32> to vector<8x16xf32>
    %443 = vector.shape_cast %440 : vector<8x16xf32> to vector<1x8x16xf32>
    tpu.vector_store %arg4[%c1_356, %c0_357, %c112_358], %443 {strides = array<i32>} : memref<2x8x256xf32, #tpu.memory_space<vmem>>, vector<1x8x16xf32>,
    %444 = vector.extract_strided_slice %411 {offsets = [0, 160], sizes = [8, 16], strides = [1, 1]} : vector<8x320xf32> to vector<8x16xf32>
    %c1_359 = arith.constant 1 : index
    %c0_360 = arith.constant 0 : index
    %c128_361 = arith.constant 128 : index
    %445 = vector.load %arg4[%c1_359, %c0_360, %c128_361] : memref<2x8x256xf32, #tpu.memory_space<vmem>>, vector<1x8x16xf32>
    %446 = vector.shape_cast %445 : vector<1x8x16xf32> to vector<8x16xf32>
    %447 = vector.shape_cast %444 : vector<8x16xf32> to vector<1x8x16xf32>
    tpu.vector_store %arg4[%c1_359, %c0_360, %c128_361], %447 {strides = array<i32>} : memref<2x8x256xf32, #tpu.memory_space<vmem>>, vector<1x8x16xf32>,
    %448 = vector.extract_strided_slice %411 {offsets = [0, 180], sizes = [8, 16], strides = [1, 1]} : vector<8x320xf32> to vector<8x16xf32>
    %c1_362 = arith.constant 1 : index
    %c0_363 = arith.constant 0 : index
    %c144_364 = arith.constant 144 : index
    %449 = vector.load %arg4[%c1_362, %c0_363, %c144_364] : memref<2x8x256xf32, #tpu.memory_space<vmem>>, vector<1x8x16xf32>
    %450 = vector.shape_cast %449 : vector<1x8x16xf32> to vector<8x16xf32>
    %451 = vector.shape_cast %448 : vector<8x16xf32> to vector<1x8x16xf32>
    tpu.vector_store %arg4[%c1_362, %c0_363, %c144_364], %451 {strides = array<i32>} : memref<2x8x256xf32, #tpu.memory_space<vmem>>, vector<1x8x16xf32>,
    %452 = vector.extract_strided_slice %411 {offsets = [0, 200], sizes = [8, 16], strides = [1, 1]} : vector<8x320xf32> to vector<8x16xf32>
    %c1_365 = arith.constant 1 : index
    %c0_366 = arith.constant 0 : index
    %c160_367 = arith.constant 160 : index
    %453 = vector.load %arg4[%c1_365, %c0_366, %c160_367] : memref<2x8x256xf32, #tpu.memory_space<vmem>>, vector<1x8x16xf32>
    %454 = vector.shape_cast %453 : vector<1x8x16xf32> to vector<8x16xf32>
    %455 = vector.shape_cast %452 : vector<8x16xf32> to vector<1x8x16xf32>
    tpu.vector_store %arg4[%c1_365, %c0_366, %c160_367], %455 {strides = array<i32>} : memref<2x8x256xf32, #tpu.memory_space<vmem>>, vector<1x8x16xf32>,
    %456 = vector.extract_strided_slice %411 {offsets = [0, 220], sizes = [8, 16], strides = [1, 1]} : vector<8x320xf32> to vector<8x16xf32>
    %c1_368 = arith.constant 1 : index
    %c0_369 = arith.constant 0 : index
    %c176_370 = arith.constant 176 : index
    %457 = vector.load %arg4[%c1_368, %c0_369, %c176_370] : memref<2x8x256xf32, #tpu.memory_space<vmem>>, vector<1x8x16xf32>
    %458 = vector.shape_cast %457 : vector<1x8x16xf32> to vector<8x16xf32>
    %459 = vector.shape_cast %456 : vector<8x16xf32> to vector<1x8x16xf32>
    tpu.vector_store %arg4[%c1_368, %c0_369, %c176_370], %459 {strides = array<i32>} : memref<2x8x256xf32, #tpu.memory_space<vmem>>, vector<1x8x16xf32>,
    %460 = vector.extract_strided_slice %411 {offsets = [0, 240], sizes = [8, 16], strides = [1, 1]} : vector<8x320xf32> to vector<8x16xf32>
    %c1_371 = arith.constant 1 : index
    %c0_372 = arith.constant 0 : index
    %c192_373 = arith.constant 192 : index
    %461 = vector.load %arg4[%c1_371, %c0_372, %c192_373] : memref<2x8x256xf32, #tpu.memory_space<vmem>>, vector<1x8x16xf32>
    %462 = vector.shape_cast %461 : vector<1x8x16xf32> to vector<8x16xf32>
    %463 = vector.shape_cast %460 : vector<8x16xf32> to vector<1x8x16xf32>
    tpu.vector_store %arg4[%c1_371, %c0_372, %c192_373], %463 {strides = array<i32>} : memref<2x8x256xf32, #tpu.memory_space<vmem>>, vector<1x8x16xf32>,
    %464 = vector.extract_strided_slice %411 {offsets = [0, 260], sizes = [8, 16], strides = [1, 1]} : vector<8x320xf32> to vector<8x16xf32>
    %c1_374 = arith.constant 1 : index
    %c0_375 = arith.constant 0 : index
    %c208_376 = arith.constant 208 : index
    %465 = vector.load %arg4[%c1_374, %c0_375, %c208_376] : memref<2x8x256xf32, #tpu.memory_space<vmem>>, vector<1x8x16xf32>
    %466 = vector.shape_cast %465 : vector<1x8x16xf32> to vector<8x16xf32>
    %467 = vector.shape_cast %464 : vector<8x16xf32> to vector<1x8x16xf32>
    tpu.vector_store %arg4[%c1_374, %c0_375, %c208_376], %467 {strides = array<i32>} : memref<2x8x256xf32, #tpu.memory_space<vmem>>, vector<1x8x16xf32>,
    %468 = vector.extract_strided_slice %411 {offsets = [0, 280], sizes = [8, 16], strides = [1, 1]} : vector<8x320xf32> to vector<8x16xf32>
    %c1_377 = arith.constant 1 : index
    %c0_378 = arith.constant 0 : index
    %c224_379 = arith.constant 224 : index
    %469 = vector.load %arg4[%c1_377, %c0_378, %c224_379] : memref<2x8x256xf32, #tpu.memory_space<vmem>>, vector<1x8x16xf32>
    %470 = vector.shape_cast %469 : vector<1x8x16xf32> to vector<8x16xf32>
    %471 = vector.shape_cast %468 : vector<8x16xf32> to vector<1x8x16xf32>
    tpu.vector_store %arg4[%c1_377, %c0_378, %c224_379], %471 {strides = array<i32>} : memref<2x8x256xf32, #tpu.memory_space<vmem>>, vector<1x8x16xf32>,
    %472 = vector.extract_strided_slice %411 {offsets = [0, 300], sizes = [8, 16], strides = [1, 1]} : vector<8x320xf32> to vector<8x16xf32>
    %c1_380 = arith.constant 1 : index
    %c0_381 = arith.constant 0 : index
    %c240_382 = arith.constant 240 : index
    %473 = vector.load %arg4[%c1_380, %c0_381, %c240_382] : memref<2x8x256xf32, #tpu.memory_space<vmem>>, vector<1x8x16xf32>
    %474 = vector.shape_cast %473 : vector<1x8x16xf32> to vector<8x16xf32>
    %475 = vector.shape_cast %472 : vector<8x16xf32> to vector<1x8x16xf32>
    tpu.vector_store %arg4[%c1_380, %c0_381, %c240_382], %475 {strides = array<i32>} : memref<2x8x256xf32, #tpu.memory_space<vmem>>, vector<1x8x16xf32>,
    return
  }
  func.func @transform_0(%arg0: i32) -> (i32, i32, i32) {
    %c0_i32 = arith.constant 0 : i32
    %c0_i32_0 = arith.constant 0 : i32
    %c0_i32_1 = arith.constant 0 : i32
    return %arg0, %c0_i32, %c0_i32_0 : i32, i32, i32
  }
  func.func @transform_1(%arg0: i32) -> (i32, i32, i32) {
    %c0_i32 = arith.constant 0 : i32
    %c0_i32_0 = arith.constant 0 : i32
    %c0_i32_1 = arith.constant 0 : i32
    %c0_i32_2 = arith.constant 0 : i32
    return %c0_i32, %c0_i32_0, %c0_i32_1 : i32, i32, i32
  }
  func.func @transform_2(%arg0: i32) -> (i32, i32) {
    %c0_i32 = arith.constant 0 : i32
    %c0_i32_0 = arith.constant 0 : i32
    %c0_i32_1 = arith.constant 0 : i32
    return %c0_i32, %c0_i32_0 : i32, i32
  }
  func.func @transform_3(%arg0: i32) -> (i32, i32, i32) {
    %c0_i32 = arith.constant 0 : i32
    %c0_i32_0 = arith.constant 0 : i32
    %c0_i32_1 = arith.constant 0 : i32
    return %arg0, %c0_i32, %c0_i32_0 : i32, i32, i32
  }
}

</mosaic_0001>

<llo_original>
// kernel: conv_relu.1
$region0: #{conv_relu.1}
  #allocation0 [shape = 'u32[]', space=smem, size = 0x4, offset = 0x4, fixed_abs, tag = 'smem constant byte address 0x4 - core index']
  #allocation1 [shape = 'u32[144,128]{1,0:T(1,128)}', space=vmem, size = 0x12000, scoped, tag = 'internal scratch']
  #allocation2 [shape = 'bf16[2,8,420]{2,1,0:T(8,128)(2,1)}', space=vmem, size = 0x4000, scoped, tag = 'scratch operand']
  %s0 = inlined_call_operand.vmem [shape: f32[2,4,256], index: 0, kind: input, shape index: {}]
  %s1 = inlined_call_operand.vmem [shape: bf16[9,8,8], index: 1, kind: input, shape index: {}]
  %s2 = inlined_call_operand.vmem [shape: f32[8,1], index: 2, kind: input, shape index: {}]
  %s3 = inlined_call_operand.vmem [shape: f32[2,8,256], index: 3, kind: output, shape index: {}]
  %s4 = sld [smem:[#allocation0]]
  $region22: #{conv_relu.1} parent=0
    _
  %s6 = ssub.s32 1, %s4
  %s7 = scalar_select 0, %s6, %s4
  // Predicated region
  $region2: #{conv_relu.1} parent=0 // pred_check
    _
  $region3: #{conv_relu.1} parent=0 // pred_check_branch
    %9 = sbr.rel (0) target = $region5
  $region4: #{conv_relu.1} parent=0 // pred_region
    _
  $region5: #{conv_relu.1} parent=0 // pred_fallthru
    _
  // Predicated region
  $region6: #{conv_relu.1} parent=0 // pred_check
    _
  $region7: #{conv_relu.1} parent=0 // pred_check_branch
    %11 = sbr.rel (0) target = $region9
  $region8: #{conv_relu.1} parent=0 // pred_region
    _
  $region9: #{conv_relu.1} parent=0 // pred_fallthru
    _
  // Predicated region
  $region10: #{conv_relu.1} parent=0 // pred_check
    _
  $region11: #{conv_relu.1} parent=0 // pred_check_branch
    %13 = sbr.rel (0) target = $region13
  $region12: #{conv_relu.1} parent=0 // pred_region
    _
  $region13: #{conv_relu.1} parent=0 // pred_fallthru
    _
  %v15 = vld [vmem:[%s2] sm:$0xff]
  %16 = vst [vmem:[#allocation2] sm:$0xff] 0
  %vm17 = vcmask 1043456
  %vm18 = vcmask 293892
  %vm19 = vmor %vm18, %vm17
  %20 = vst.msk [vmem:[#allocation2 + $0x8] sm:$0xff] %vm19, 0
  %v21 = vld [vmem:[%s0] sm:$0xf]
  %v22 = vpack.c.bf16 %v21, %v21
  %vm23 = vcmask 1041408
  %v26 = vsel %vm23, %v22, 0
  %v28 = vunpack.c.l.b16 %v26
  %v29 = vpack.c.b16 %v28, %v28
  %30 = vrot.lane.b32.xlu0 %v29, 42
  %v31 = vpop.permute.xlu0 %30
  %vm33 = vcmask 470352
  %34 = vst.msk [vmem:[#allocation2] sm:$0xf] %vm33, %v31
  %v35 = vld [vmem:[%s0] sm:$0xf]
  %v36 = vpack.c.bf16 %v35, %v35
  %v38 = vsel %vm23, %v36, 0
  %v40 = vunpack.c.l.b16 %v38
  %v41 = vpack.c.b16 %v40, %v40
  %42 = vrot.lane.b32.xlu0 %v41, 46
  %v43 = vpop.permute.xlu0 %42
  %vm45 = vcmask 634352
  %46 = vst.msk [vmem:[#allocation2] sm:$0xf] %vm45, %v43
  %v47 = vld [vmem:[%s0] sm:$0xf]
  %v48 = vpack.c.bf16 %v47, %v47
  %v50 = vsel %vm23, %v48, 0
  %v52 = vunpack.c.l.b16 %v50
  %v53 = vpack.c.b16 %v52, %v52
  %54 = vrot.lane.b32.xlu0 %v53, 50
  %v55 = vpop.permute.xlu0 %54
  %vm57 = vcmask 798352
  %58 = vst.msk [vmem:[#allocation2] sm:$0xf] %vm57, %v55
  %v59 = vld [vmem:[%s0] sm:$0xf]
  %v60 = vpack.c.bf16 %v59, %v59
  %v62 = vsel %vm23, %v60, 0
  %v64 = vunpack.c.l.b16 %v62
  %v65 = vpack.c.b16 %v64, %v64
  %66 = vrot.lane.b32.xlu0 %v65, 54
  %v67 = vpop.permute.xlu0 %66
  %vm69 = vcmask 962352
  %70 = vst.msk [vmem:[#allocation2] sm:$0xf] %vm69, %v67
  %v71 = vld [vmem:[%s0] sm:$0xf]
  %v72 = vpack.c.bf16 %v71, %v71
  %v74 = vsel %vm23, %v72, 0
  %v76 = vunpack.c.l.b16 %v74
  %v77 = vpack.c.b16 %v76, %v76
  %78 = vrot.lane.b32.xlu0 %v77, 58
  %v79 = vpop.permute.xlu0 %78
  %v80 = vrot.slane %v79, 4
  %vm81 = vcmask 474112
  %v82 = vsel %vm81, %v80, %v79
  %vm84 = vcmask 1044432
  %vm85 = vcmask 80900
  %vm86 = vmor %vm85, %vm84
  %87 = vst.msk [vmem:[#allocation2] sm:$0xff] %vm86, %v82
  %v88 = vld [vmem:[%s0] sm:$0xf]
  %v89 = vpack.c.bf16 %v88, %v88
  %v91 = vsel %vm23, %v89, 0
  %v93 = vunpack.c.l.b16 %v91
  %v94 = vpack.c.b16 %v93, %v93
  %95 = vrot.lane.b32.xlu0 %v94, 62
  %v96 = vpop.permute.xlu0 %95
  %vm98 = vcmask 240752
  %99 = vst.msk [vmem:[#allocation2 + $0x4] sm:$0xf] %vm98, %v96
  %v100 = vld [vmem:[%s0] sm:$0xf]
  %v101 = vpack.c.bf16 %v100, %v100
  %v103 = vsel %vm23, %v101, 0
  %v105 = vunpack.c.l.b16 %v103
  %v106 = vpack.c.b16 %v105, %v105
  %107 = vrot.lane.b32.xlu0 %v106, 66
  %v108 = vpop.permute.xlu0 %107
  %vm110 = vcmask 404752
  %111 = vst.msk [vmem:[#allocation2 + $0x4] sm:$0xf] %vm110, %v108
  %v112 = vld [vmem:[%s0] sm:$0xf]
  %v113 = vpack.c.bf16 %v112, %v112
  %v115 = vsel %vm23, %v113, 0
  %v117 = vunpack.c.l.b16 %v115
  %v118 = vpack.c.b16 %v117, %v117
  %119 = vrot.lane.b32.xlu0 %v118, 70
  %v120 = vpop.permute.xlu0 %119
  %vm122 = vcmask 568752
  %123 = vst.msk [vmem:[#allocation2 + $0x4] sm:$0xf] %vm122, %v120
  %v124 = vld [vmem:[%s0 + $0x4] sm:$0xf]
  %v125 = vpack.c.bf16 %v124, %v124
  %v127 = vsel %vm23, %v125, 0
  %v129 = vunpack.c.l.b16 %v127
  %v130 = vpack.c.b16 %v129, %v129
  %131 = vrot.lane.b32.xlu0 %v130, 74
  %v132 = vpop.permute.xlu0 %131
  %vm134 = vcmask 732752
  %135 = vst.msk [vmem:[#allocation2 + $0x4] sm:$0xf] %vm134, %v132
  %v136 = vld [vmem:[%s0 + $0x4] sm:$0xf]
  %v137 = vpack.c.bf16 %v136, %v136
  %v139 = vsel %vm23, %v137, 0
  %v141 = vunpack.c.l.b16 %v139
  %v142 = vpack.c.b16 %v141, %v141
  %143 = vrot.lane.b32.xlu0 %v142, 78
  %v144 = vpop.permute.xlu0 %143
  %vm146 = vcmask 896752
  %147 = vst.msk [vmem:[#allocation2 + $0x4] sm:$0xf] %vm146, %v144
  %v148 = vld [vmem:[%s0 + $0x4] sm:$0xf]
  %v149 = vpack.c.bf16 %v148, %v148
  %v151 = vsel %vm23, %v149, 0
  %v153 = vunpack.c.l.b16 %v151
  %v154 = vpack.c.b16 %v153, %v153
  %155 = vrot.lane.b32.xlu0 %v154, 82
  %v156 = vpop.permute.xlu0 %155
  %v157 = vrot.slane %v156, 4
  %vm158 = vcmask 670720
  %v159 = vsel %vm158, %v157, %v156
  %vm161 = vcmask 1044368
  %vm162 = vcmask 15364
  %vm163 = vmor %vm162, %vm161
  %164 = vst.msk [vmem:[#allocation2 + $0x4] sm:$0xff] %vm163, %v159
  %v165 = vld [vmem:[%s0 + $0x4] sm:$0xf]
  %v166 = vpack.c.bf16 %v165, %v165
  %v168 = vsel %vm23, %v166, 0
  %v170 = vunpack.c.l.b16 %v168
  %v171 = vpack.c.b16 %v170, %v170
  %172 = vrot.lane.b32.xlu0 %v171, 86
  %v173 = vpop.permute.xlu0 %172
  %vm175 = vcmask 175152
  %176 = vst.msk [vmem:[#allocation2 + $0x8] sm:$0xf] %vm175, %v173
  %v177 = vld [vmem:[%s0 + $0x4] sm:$0xf]
  %v178 = vpack.c.bf16 %v177, %v177
  %v180 = vsel %vm23, %v178, 0
  %v182 = vunpack.c.l.b16 %v180
  %v183 = vpack.c.b16 %v182, %v182
  %184 = vrot.lane.b32.xlu0 %v183, 90
  %v185 = vpop.permute.xlu0 %184
  %vm187 = vcmask 339152
  %188 = vst.msk [vmem:[#allocation2 + $0x8] sm:$0xf] %vm187, %v185
  %v189 = vld [vmem:[%s0 + $0x4] sm:$0xf]
  %v190 = vpack.c.bf16 %v189, %v189
  %v192 = vsel %vm23, %v190, 0
  %v194 = vunpack.c.l.b16 %v192
  %v195 = vpack.c.b16 %v194, %v194
  %196 = vrot.lane.b32.xlu0 %v195, 94
  %v197 = vpop.permute.xlu0 %196
  %vm199 = vcmask 503152
  %200 = vst.msk [vmem:[#allocation2 + $0x8] sm:$0xf] %vm199, %v197
  %v201 = vld [vmem:[%s0 + $0x4] sm:$0xf]
  %v202 = vpack.c.bf16 %v201, %v201
  %v204 = vsel %vm23, %v202, 0
  %v206 = vunpack.c.l.b16 %v204
  %v207 = vpack.c.b16 %v206, %v206
  %208 = vrot.lane.b32.xlu0 %v207, 98
  %v209 = vpop.permute.xlu0 %208
  %vm211 = vcmask 667152
  %212 = vst.msk [vmem:[#allocation2 + $0x8] sm:$0xf] %vm211, %v209
  %v213 = vld [vmem:[%s0 + $0x4] sm:$0xf]
  %v214 = vpack.c.bf16 %v213, %v213
  %v216 = vsel %vm23, %v214, 0
  %v218 = vunpack.c.l.b16 %v216
  %v219 = vpack.c.b16 %v218, %v218
  %220 = vrot.lane.b32.xlu0 %v219, 102
  %v221 = vpop.permute.xlu0 %220
  %vm223 = vcmask 831152
  %224 = vst.msk [vmem:[#allocation2 + $0x8] sm:$0xf] %vm223, %v221
  %v225 = vld [vmem:[%s1] sm:$0xf]
  %v226 = vld [vmem:[#allocation2] sm:$0xff]
  %v227 = vld [vmem:[#allocation2 + $0x8] sm:$0xf]
  %s228 = scalar_lea.vmem %s1, 4
  %v229 = vld [vmem:[%s228] sm:$0xf]
  %v232 = vunpack.c.l.b16 %v226
  %v233 = vunpack.c.h.b16 %v226
  %v234 = vunpack.c.l.b16 %v227
  %v235 = vpack.c.b16 %v232, %v232
  %v236 = vpack.c.b16 %v233, %v233
  %v237 = vpack.c.b16 %v234, %v234
  %238 = vrot.lane.b32.xlu0 %v235, 126
  %v239 = vpop.permute.xlu0 %238
  %240 = vrot.lane.b32.xlu0 %v236, 126
  %v241 = vpop.permute.xlu0 %240
  %242 = vrot.lane.b32.xlu0 %v237, 126
  %v243 = vpop.permute.xlu0 %242
  %vm244 = vcmask 1031168
  %v245 = vsel %vm244, %v239, %v241
  %v246 = vsel %vm244, %v241, %v243
  %vm247 = vcmask 64512
  %v249 = vsel %vm247, %v229, 0
  %v252 = vsel %vm17, %v245, 0
  %v255 = vsel %vm17, %v246, 0
  %v258 = vsel %vm17, %v243, 0
  %260 = vmatprep.subr.bf16.mxu0 %v255
  %261 = vmatpush1.bf16.msra.mxu0 %v252
  %262 = vmatprep.subr.bf16.mxu0 0
  %263 = vmatpush1.bf16.msra.mxu0 0
  %264 = vmatprep.subr.bf16.mxu0 0
  %265 = vmatpush1.bf16.msra.mxu0 0
  %266 = vmatprep.subr.bf16.mxu0 0
  %267 = vmatpush1.bf16.msra.mxu0 0
  %268 = vmatprep.subr.bf16.mxu0 0
  %269 = vmatpush1.bf16.msra.mxu0 0
  %270 = vmatprep.subr.bf16.mxu0 0
  %271 = vmatpush1.bf16.msra.mxu0 0
  %272 = vmatprep.subr.bf16.mxu0 0
  %273 = vmatpush1.bf16.msra.mxu0 0
  %274 = vmatprep.subr.bf16.mxu0 0
  %275 = vmatpush1.bf16.msra.mxu0 0
  %276 = vmatprep.subr.bf16.mxu0 0
  %277 = vmatpush1.bf16.msra.mxu0 0
  %278 = vmatprep.subr.bf16.mxu0 0
  %279 = vmatpush1.bf16.msra.mxu0 0
  %280 = vmatprep.subr.bf16.mxu0 0
  %281 = vmatpush1.bf16.msra.mxu0 0
  %282 = vmatprep.subr.bf16.mxu0 0
  %283 = vmatpush1.bf16.msra.mxu0 0
  %284 = vmatprep.subr.bf16.mxu0 0
  %285 = vmatpush1.bf16.msra.mxu0 0
  %286 = vmatprep.subr.bf16.mxu0 0
  %287 = vmatpush1.bf16.msra.mxu0 0
  %288 = vmatprep.subr.bf16.mxu0 0
  %289 = vmatpush1.bf16.msra.mxu0 0
  %290 = vmatprep.subr.bf16.mxu0 0
  %291 = vmatpush1.bf16.msra.mxu0 0
  %292 = vmatprep.mubr.bf16.mxu0 0
  %293 = vmatmul.mubr.bf16.gmra.mrb[0].mxu0 %v249
  %v294 = vpop.f32.mrb[0].mxu0
  %v295 = vadd.f32 0.0, %v294
  %v296 = vpop.f32.mrb[0].mxu0
  %v297 = vadd.f32 0.0, %v296
  %v298 = vpop.f32.mrb[0].mxu0
  %v299 = vpop.f32.mrb[0].mxu0
  %300 = vdwg.mxu0
  %301 = vmatprep.subr.bf16.mxu0 0
  %302 = vmatpush1.bf16.msra.mxu0 %v258
  %303 = vmatprep.subr.bf16.mxu0 0
  %304 = vmatpush1.bf16.msra.mxu0 0
  %305 = vmatprep.subr.bf16.mxu0 0
  %306 = vmatpush1.bf16.msra.mxu0 0
  %307 = vmatprep.subr.bf16.mxu0 0
  %308 = vmatpush1.bf16.msra.mxu0 0
  %309 = vmatprep.subr.bf16.mxu0 0
  %310 = vmatpush1.bf16.msra.mxu0 0
  %311 = vmatprep.subr.bf16.mxu0 0
  %312 = vmatpush1.bf16.msra.mxu0 0
  %313 = vmatprep.subr.bf16.mxu0 0
  %314 = vmatpush1.bf16.msra.mxu0 0
  %315 = vmatprep.subr.bf16.mxu0 0
  %316 = vmatpush1.bf16.msra.mxu0 0
  %317 = vmatprep.subr.bf16.mxu0 0
  %318 = vmatpush1.bf16.msra.mxu0 0
  %319 = vmatprep.subr.bf16.mxu0 0
  %320 = vmatpush1.bf16.msra.mxu0 0
  %321 = vmatprep.subr.bf16.mxu0 0
  %322 = vmatpush1.bf16.msra.mxu0 0
  %323 = vmatprep.subr.bf16.mxu0 0
  %324 = vmatpush1.bf16.msra.mxu0 0
  %325 = vmatprep.subr.bf16.mxu0 0
  %326 = vmatpush1.bf16.msra.mxu0 0
  %327 = vmatprep.subr.bf16.mxu0 0
  %328 = vmatpush1.bf16.msra.mxu0 0
  %329 = vmatprep.subr.bf16.mxu0 0
  %330 = vmatpush1.bf16.msra.mxu0 0
  %331 = vmatprep.subr.bf16.mxu0 0
  %332 = vmatpush1.bf16.msra.mxu0 0
  %333 = vmatprep.mubr.bf16.mxu0 0
  %334 = vmatmul.mubr.bf16.gmra.mrb[0].mxu0 %v249
  %v335 = vpop.f32.mrb[0].mxu0
  %v336 = vadd.f32 0.0, %v335
  %v337 = vpop.f32.mrb[0].mxu0
  %v338 = vpop.f32.mrb[0].mxu0
  %v339 = vpop.f32.mrb[0].mxu0
  %340 = vdwg.mxu0
  %v342 = vsel %vm247, %v225, 0
  %v345 = vsel %vm17, %v235, 0
  %v348 = vsel %vm17, %v236, 0
  %v351 = vsel %vm17, %v237, 0
  %353 = vmatprep.subr.bf16.mxu0 %v348
  %354 = vmatpush1.bf16.msra.mxu0 %v345
  %355 = vmatprep.subr.bf16.mxu0 0
  %356 = vmatpush1.bf16.msra.mxu0 0
  %357 = vmatprep.subr.bf16.mxu0 0
  %358 = vmatpush1.bf16.msra.mxu0 0
  %359 = vmatprep.subr.bf16.mxu0 0
  %360 = vmatpush1.bf16.msra.mxu0 0
  %361 = vmatprep.subr.bf16.mxu0 0
  %362 = vmatpush1.bf16.msra.mxu0 0
  %363 = vmatprep.subr.bf16.mxu0 0
  %364 = vmatpush1.bf16.msra.mxu0 0
  %365 = vmatprep.subr.bf16.mxu0 0
  %366 = vmatpush1.bf16.msra.mxu0 0
  %367 = vmatprep.subr.bf16.mxu0 0
  %368 = vmatpush1.bf16.msra.mxu0 0
  %369 = vmatprep.subr.bf16.mxu0 0
  %370 = vmatpush1.bf16.msra.mxu0 0
  %371 = vmatprep.subr.bf16.mxu0 0
  %372 = vmatpush1.bf16.msra.mxu0 0
  %373 = vmatprep.subr.bf16.mxu0 0
  %374 = vmatpush1.bf16.msra.mxu0 0
  %375 = vmatprep.subr.bf16.mxu0 0
  %376 = vmatpush1.bf16.msra.mxu0 0
  %377 = vmatprep.subr.bf16.mxu0 0
  %378 = vmatpush1.bf16.msra.mxu0 0
  %379 = vmatprep.subr.bf16.mxu0 0
  %380 = vmatpush1.bf16.msra.mxu0 0
  %381 = vmatprep.subr.bf16.mxu0 0
  %382 = vmatpush1.bf16.msra.mxu0 0
  %383 = vmatprep.subr.bf16.mxu0 0
  %384 = vmatpush1.bf16.msra.mxu0 0
  %385 = vmatprep.mubr.bf16.mxu0 0
  %386 = vmatmul.mubr.bf16.gmra.mrb[0].mxu0 %v342
  %v387 = vpop.f32.mrb[0].mxu0
  %v388 = vadd.f32 %v295, %v387
  %v389 = vpop.f32.mrb[0].mxu0
  %v390 = vadd.f32 %v297, %v389
  %v391 = vpop.f32.mrb[0].mxu0
  %v392 = vpop.f32.mrb[0].mxu0
  %393 = vdwg.mxu0
  %394 = vmatprep.subr.bf16.mxu0 0
  %395 = vmatpush1.bf16.msra.mxu0 %v351
  %396 = vmatprep.subr.bf16.mxu0 0
  %397 = vmatpush1.bf16.msra.mxu0 0
  %398 = vmatprep.subr.bf16.mxu0 0
  %399 = vmatpush1.bf16.msra.mxu0 0
  %400 = vmatprep.subr.bf16.mxu0 0
  %401 = vmatpush1.bf16.msra.mxu0 0
  %402 = vmatprep.subr.bf16.mxu0 0
  %403 = vmatpush1.bf16.msra.mxu0 0
  %404 = vmatprep.subr.bf16.mxu0 0
  %405 = vmatpush1.bf16.msra.mxu0 0
  %406 = vmatprep.subr.bf16.mxu0 0
  %407 = vmatpush1.bf16.msra.mxu0 0
  %408 = vmatprep.subr.bf16.mxu0 0
  %409 = vmatpush1.bf16.msra.mxu0 0
  %410 = vmatprep.subr.bf16.mxu0 0
  %411 = vmatpush1.bf16.msra.mxu0 0
  %412 = vmatprep.subr.bf16.mxu0 0
  %413 = vmatpush1.bf16.msra.mxu0 0
  %414 = vmatprep.subr.bf16.mxu0 0
  %415 = vmatpush1.bf16.msra.mxu0 0
  %416 = vmatprep.subr.bf16.mxu0 0
  %417 = vmatpush1.bf16.msra.mxu0 0
  %418 = vmatprep.subr.bf16.mxu0 0
  %419 = vmatpush1.bf16.msra.mxu0 0
  %420 = vmatprep.subr.bf16.mxu0 0
  %421 = vmatpush1.bf16.msra.mxu0 0
  %422 = vmatprep.subr.bf16.mxu0 0
  %423 = vmatpush1.bf16.msra.mxu0 0
  %424 = vmatprep.subr.bf16.mxu0 0
  %425 = vmatpush1.bf16.msra.mxu0 0
  %426 = vmatprep.mubr.bf16.mxu0 0
  %427 = vmatmul.mubr.bf16.gmra.mrb[0].mxu0 %v342
  %v428 = vpop.f32.mrb[0].mxu0
  %v429 = vadd.f32 %v336, %v428
  %v430 = vpop.f32.mrb[0].mxu0
  %v431 = vpop.f32.mrb[0].mxu0
  %v432 = vpop.f32.mrb[0].mxu0
  %433 = vdwg.mxu0
  %s434 = scalar_lea.vmem %s1, 8
  %v435 = vld [vmem:[%s434] sm:$0xf]
  %436 = vrot.lane.b32.xlu0 %v235, 124
  %v437 = vpop.permute.xlu0 %436
  %438 = vrot.lane.b32.xlu0 %v236, 124
  %v439 = vpop.permute.xlu0 %438
  %440 = vrot.lane.b32.xlu0 %v237, 124
  %v441 = vpop.permute.xlu0 %440
  %vm442 = vcmask 1014784
  %v443 = vsel %vm442, %v437, %v439
  %v444 = vsel %vm442, %v439, %v441
  %v446 = vsel %vm247, %v435, 0
  %v449 = vsel %vm17, %v443, 0
  %v452 = vsel %vm17, %v444, 0
  %v455 = vsel %vm17, %v441, 0
  %457 = vmatprep.subr.bf16.mxu0 %v452
  %458 = vmatpush1.bf16.msra.mxu0 %v449
  %459 = vmatprep.subr.bf16.mxu0 0
  %460 = vmatpush1.bf16.msra.mxu0 0
  %461 = vmatprep.subr.bf16.mxu0 0
  %462 = vmatpush1.bf16.msra.mxu0 0
  %463 = vmatprep.subr.bf16.mxu0 0
  %464 = vmatpush1.bf16.msra.mxu0 0
  %465 = vmatprep.subr.bf16.mxu0 0
  %466 = vmatpush1.bf16.msra.mxu0 0
  %467 = vmatprep.subr.bf16.mxu0 0
  %468 = vmatpush1.bf16.msra.mxu0 0
  %469 = vmatprep.subr.bf16.mxu0 0
  %470 = vmatpush1.bf16.msra.mxu0 0
  %471 = vmatprep.subr.bf16.mxu0 0
  %472 = vmatpush1.bf16.msra.mxu0 0
  %473 = vmatprep.subr.bf16.mxu0 0
  %474 = vmatpush1.bf16.msra.mxu0 0
  %475 = vmatprep.subr.bf16.mxu0 0
  %476 = vmatpush1.bf16.msra.mxu0 0
  %477 = vmatprep.subr.bf16.mxu0 0
  %478 = vmatpush1.bf16.msra.mxu0 0
  %479 = vmatprep.subr.bf16.mxu0 0
  %480 = vmatpush1.bf16.msra.mxu0 0
  %481 = vmatprep.subr.bf16.mxu0 0
  %482 = vmatpush1.bf16.msra.mxu0 0
  %483 = vmatprep.subr.bf16.mxu0 0
  %484 = vmatpush1.bf16.msra.mxu0 0
  %485 = vmatprep.subr.bf16.mxu0 0
  %486 = vmatpush1.bf16.msra.mxu0 0
  %487 = vmatprep.subr.bf16.mxu0 0
  %488 = vmatpush1.bf16.msra.mxu0 0
  %489 = vmatprep.mubr.bf16.mxu0 0
  %490 = vmatmul.mubr.bf16.gmra.mrb[0].mxu0 %v446
  %v491 = vpop.f32.mrb[0].mxu0
  %v492 = vadd.f32 0.0, %v491
  %v493 = vpop.f32.mrb[0].mxu0
  %v494 = vadd.f32 0.0, %v493
  %v495 = vpop.f32.mrb[0].mxu0
  %v496 = vpop.f32.mrb[0].mxu0
  %497 = vdwg.mxu0
  %498 = vmatprep.subr.bf16.mxu0 0
  %499 = vmatpush1.bf16.msra.mxu0 %v455
  %500 = vmatprep.subr.bf16.mxu0 0
  %501 = vmatpush1.bf16.msra.mxu0 0
  %502 = vmatprep.subr.bf16.mxu0 0
  %503 = vmatpush1.bf16.msra.mxu0 0
  %504 = vmatprep.subr.bf16.mxu0 0
  %505 = vmatpush1.bf16.msra.mxu0 0
  %506 = vmatprep.subr.bf16.mxu0 0
  %507 = vmatpush1.bf16.msra.mxu0 0
  %508 = vmatprep.subr.bf16.mxu0 0
  %509 = vmatpush1.bf16.msra.mxu0 0
  %510 = vmatprep.subr.bf16.mxu0 0
  %511 = vmatpush1.bf16.msra.mxu0 0
  %512 = vmatprep.subr.bf16.mxu0 0
  %513 = vmatpush1.bf16.msra.mxu0 0
  %514 = vmatprep.subr.bf16.mxu0 0
  %515 = vmatpush1.bf16.msra.mxu0 0
  %516 = vmatprep.subr.bf16.mxu0 0
  %517 = vmatpush1.bf16.msra.mxu0 0
  %518 = vmatprep.subr.bf16.mxu0 0
  %519 = vmatpush1.bf16.msra.mxu0 0
  %520 = vmatprep.subr.bf16.mxu0 0
  %521 = vmatpush1.bf16.msra.mxu0 0
  %522 = vmatprep.subr.bf16.mxu0 0
  %523 = vmatpush1.bf16.msra.mxu0 0
  %524 = vmatprep.subr.bf16.mxu0 0
  %525 = vmatpush1.bf16.msra.mxu0 0
  %526 = vmatprep.subr.bf16.mxu0 0
  %527 = vmatpush1.bf16.msra.mxu0 0
  %528 = vmatprep.subr.bf16.mxu0 0
  %529 = vmatpush1.bf16.msra.mxu0 0
  %530 = vmatprep.mubr.bf16.mxu0 0
  %531 = vmatmul.mubr.bf16.gmra.mrb[0].mxu0 %v446
  %v532 = vpop.f32.mrb[0].mxu0
  %v533 = vadd.f32 0.0, %v532
  %v534 = vpop.f32.mrb[0].mxu0
  %v535 = vpop.f32.mrb[0].mxu0
  %v536 = vpop.f32.mrb[0].mxu0
  %537 = vdwg.mxu0
  %v538 = vadd.f32 %v388, %v492
  %v539 = vadd.f32 %v390, %v494
  %v540 = vadd.f32 %v429, %v533
  %s541 = scalar_lea.vmem %s1, 12
  %v542 = vld [vmem:[%s541] sm:$0xf]
  %543 = vrot.lane.b32.xlu0 %v235, 88
  %v544 = vpop.permute.xlu0 %543
  %545 = vrot.lane.b32.xlu0 %v236, 88
  %v546 = vpop.permute.xlu0 %545
  %547 = vrot.lane.b32.xlu0 %v237, 88
  %v548 = vpop.permute.xlu0 %547
  %vm549 = vcmask 719872
  %v550 = vsel %vm549, %v544, %v546
  %v551 = vsel %vm549, %v546, %v548
  %v553 = vsel %vm247, %v542, 0
  %v556 = vsel %vm17, %v550, 0
  %v559 = vsel %vm17, %v551, 0
  %v562 = vsel %vm17, %v548, 0
  %564 = vmatprep.subr.bf16.mxu0 %v559
  %565 = vmatpush1.bf16.msra.mxu0 %v556
  %566 = vmatprep.subr.bf16.mxu0 0
  %567 = vmatpush1.bf16.msra.mxu0 0
  %568 = vmatprep.subr.bf16.mxu0 0
  %569 = vmatpush1.bf16.msra.mxu0 0
  %570 = vmatprep.subr.bf16.mxu0 0
  %571 = vmatpush1.bf16.msra.mxu0 0
  %572 = vmatprep.subr.bf16.mxu0 0
  %573 = vmatpush1.bf16.msra.mxu0 0
  %574 = vmatprep.subr.bf16.mxu0 0
  %575 = vmatpush1.bf16.msra.mxu0 0
  %576 = vmatprep.subr.bf16.mxu0 0
  %577 = vmatpush1.bf16.msra.mxu0 0
  %578 = vmatprep.subr.bf16.mxu0 0
  %579 = vmatpush1.bf16.msra.mxu0 0
  %580 = vmatprep.subr.bf16.mxu0 0
  %581 = vmatpush1.bf16.msra.mxu0 0
  %582 = vmatprep.subr.bf16.mxu0 0
  %583 = vmatpush1.bf16.msra.mxu0 0
  %584 = vmatprep.subr.bf16.mxu0 0
  %585 = vmatpush1.bf16.msra.mxu0 0
  %586 = vmatprep.subr.bf16.mxu0 0
  %587 = vmatpush1.bf16.msra.mxu0 0
  %588 = vmatprep.subr.bf16.mxu0 0
  %589 = vmatpush1.bf16.msra.mxu0 0
  %590 = vmatprep.subr.bf16.mxu0 0
  %591 = vmatpush1.bf16.msra.mxu0 0
  %592 = vmatprep.subr.bf16.mxu0 0
  %593 = vmatpush1.bf16.msra.mxu0 0
  %594 = vmatprep.subr.bf16.mxu0 0
  %595 = vmatpush1.bf16.msra.mxu0 0
  %596 = vmatprep.mubr.bf16.mxu0 0
  %597 = vmatmul.mubr.bf16.gmra.mrb[0].mxu0 %v553
  %v598 = vpop.f32.mrb[0].mxu0
  %v599 = vadd.f32 0.0, %v598
  %v600 = vpop.f32.mrb[0].mxu0
  %v601 = vadd.f32 0.0, %v600
  %v602 = vpop.f32.mrb[0].mxu0
  %v603 = vpop.f32.mrb[0].mxu0
  %604 = vdwg.mxu0
  %605 = vmatprep.subr.bf16.mxu0 0
  %606 = vmatpush1.bf16.msra.mxu0 %v562
  %607 = vmatprep.subr.bf16.mxu0 0
  %608 = vmatpush1.bf16.msra.mxu0 0
  %609 = vmatprep.subr.bf16.mxu0 0
  %610 = vmatpush1.bf16.msra.mxu0 0
  %611 = vmatprep.subr.bf16.mxu0 0
  %612 = vmatpush1.bf16.msra.mxu0 0
  %613 = vmatprep.subr.bf16.mxu0 0
  %614 = vmatpush1.bf16.msra.mxu0 0
  %615 = vmatprep.subr.bf16.mxu0 0
  %616 = vmatpush1.bf16.msra.mxu0 0
  %617 = vmatprep.subr.bf16.mxu0 0
  %618 = vmatpush1.bf16.msra.mxu0 0
  %619 = vmatprep.subr.bf16.mxu0 0
  %620 = vmatpush1.bf16.msra.mxu0 0
  %621 = vmatprep.subr.bf16.mxu0 0
  %622 = vmatpush1.bf16.msra.mxu0 0
  %623 = vmatprep.subr.bf16.mxu0 0
  %624 = vmatpush1.bf16.msra.mxu0 0
  %625 = vmatprep.subr.bf16.mxu0 0
  %626 = vmatpush1.bf16.msra.mxu0 0
  %627 = vmatprep.subr.bf16.mxu0 0
  %628 = vmatpush1.bf16.msra.mxu0 0
  %629 = vmatprep.subr.bf16.mxu0 0
  %630 = vmatpush1.bf16.msra.mxu0 0
  %631 = vmatprep.subr.bf16.mxu0 0
  %632 = vmatpush1.bf16.msra.mxu0 0
  %633 = vmatprep.subr.bf16.mxu0 0
  %634 = vmatpush1.bf16.msra.mxu0 0
  %635 = vmatprep.subr.bf16.mxu0 0
  %636 = vmatpush1.bf16.msra.mxu0 0
  %637 = vmatprep.mubr.bf16.mxu0 0
  %638 = vmatmul.mubr.bf16.gmra.mrb[0].mxu0 %v553
  %v639 = vpop.f32.mrb[0].mxu0
  %v640 = vadd.f32 0.0, %v639
  %v641 = vpop.f32.mrb[0].mxu0
  %v642 = vpop.f32.mrb[0].mxu0
  %v643 = vpop.f32.mrb[0].mxu0
  %644 = vdwg.mxu0
  %v645 = vadd.f32 %v538, %v599
  %v646 = vadd.f32 %v539, %v601
  %v647 = vadd.f32 %v540, %v640
  %s648 = scalar_lea.vmem %s1, 16
  %v649 = vld [vmem:[%s648] sm:$0xf]
  %650 = vrot.lane.b32.xlu0 %v235, 86
  %v651 = vpop.permute.xlu0 %650
  %652 = vrot.lane.b32.xlu0 %v236, 86
  %v653 = vpop.permute.xlu0 %652
  %654 = vrot.lane.b32.xlu0 %v237, 86
  %v655 = vpop.permute.xlu0 %654
  %vm656 = vcmask 703488
  %v657 = vsel %vm656, %v651, %v653
  %v658 = vsel %vm656, %v653, %v655
  %v660 = vsel %vm247, %v649, 0
  %v663 = vsel %vm17, %v657, 0
  %v666 = vsel %vm17, %v658, 0
  %v669 = vsel %vm17, %v655, 0
  %671 = vmatprep.subr.bf16.mxu0 %v666
  %672 = vmatpush1.bf16.msra.mxu0 %v663
  %673 = vmatprep.subr.bf16.mxu0 0
  %674 = vmatpush1.bf16.msra.mxu0 0
  %675 = vmatprep.subr.bf16.mxu0 0
  %676 = vmatpush1.bf16.msra.mxu0 0
  %677 = vmatprep.subr.bf16.mxu0 0
  %678 = vmatpush1.bf16.msra.mxu0 0
  %679 = vmatprep.subr.bf16.mxu0 0
  %680 = vmatpush1.bf16.msra.mxu0 0
  %681 = vmatprep.subr.bf16.mxu0 0
  %682 = vmatpush1.bf16.msra.mxu0 0
  %683 = vmatprep.subr.bf16.mxu0 0
  %684 = vmatpush1.bf16.msra.mxu0 0
  %685 = vmatprep.subr.bf16.mxu0 0
  %686 = vmatpush1.bf16.msra.mxu0 0
  %687 = vmatprep.subr.bf16.mxu0 0
  %688 = vmatpush1.bf16.msra.mxu0 0
  %689 = vmatprep.subr.bf16.mxu0 0
  %690 = vmatpush1.bf16.msra.mxu0 0
  %691 = vmatprep.subr.bf16.mxu0 0
  %692 = vmatpush1.bf16.msra.mxu0 0
  %693 = vmatprep.subr.bf16.mxu0 0
  %694 = vmatpush1.bf16.msra.mxu0 0
  %695 = vmatprep.subr.bf16.mxu0 0
  %696 = vmatpush1.bf16.msra.mxu0 0
  %697 = vmatprep.subr.bf16.mxu0 0
  %698 = vmatpush1.bf16.msra.mxu0 0
  %699 = vmatprep.subr.bf16.mxu0 0
  %700 = vmatpush1.bf16.msra.mxu0 0
  %701 = vmatprep.subr.bf16.mxu0 0
  %702 = vmatpush1.bf16.msra.mxu0 0
  %703 = vmatprep.mubr.bf16.mxu0 0
  %704 = vmatmul.mubr.bf16.gmra.mrb[0].mxu0 %v660
  %v705 = vpop.f32.mrb[0].mxu0
  %v706 = vadd.f32 0.0, %v705
  %v707 = vpop.f32.mrb[0].mxu0
  %v708 = vadd.f32 0.0, %v707
  %v709 = vpop.f32.mrb[0].mxu0
  %v710 = vpop.f32.mrb[0].mxu0
  %711 = vdwg.mxu0
  %712 = vmatprep.subr.bf16.mxu0 0
  %713 = vmatpush1.bf16.msra.mxu0 %v669
  %714 = vmatprep.subr.bf16.mxu0 0
  %715 = vmatpush1.bf16.msra.mxu0 0
  %716 = vmatprep.subr.bf16.mxu0 0
  %717 = vmatpush1.bf16.msra.mxu0 0
  %718 = vmatprep.subr.bf16.mxu0 0
  %719 = vmatpush1.bf16.msra.mxu0 0
  %720 = vmatprep.subr.bf16.mxu0 0
  %721 = vmatpush1.bf16.msra.mxu0 0
  %722 = vmatprep.subr.bf16.mxu0 0
  %723 = vmatpush1.bf16.msra.mxu0 0
  %724 = vmatprep.subr.bf16.mxu0 0
  %725 = vmatpush1.bf16.msra.mxu0 0
  %726 = vmatprep.subr.bf16.mxu0 0
  %727 = vmatpush1.bf16.msra.mxu0 0
  %728 = vmatprep.subr.bf16.mxu0 0
  %729 = vmatpush1.bf16.msra.mxu0 0
  %730 = vmatprep.subr.bf16.mxu0 0
  %731 = vmatpush1.bf16.msra.mxu0 0
  %732 = vmatprep.subr.bf16.mxu0 0
  %733 = vmatpush1.bf16.msra.mxu0 0
  %734 = vmatprep.subr.bf16.mxu0 0
  %735 = vmatpush1.bf16.msra.mxu0 0
  %736 = vmatprep.subr.bf16.mxu0 0
  %737 = vmatpush1.bf16.msra.mxu0 0
  %738 = vmatprep.subr.bf16.mxu0 0
  %739 = vmatpush1.bf16.msra.mxu0 0
  %740 = vmatprep.subr.bf16.mxu0 0
  %741 = vmatpush1.bf16.msra.mxu0 0
  %742 = vmatprep.subr.bf16.mxu0 0
  %743 = vmatpush1.bf16.msra.mxu0 0
  %744 = vmatprep.mubr.bf16.mxu0 0
  %745 = vmatmul.mubr.bf16.gmra.mrb[0].mxu0 %v660
  %v746 = vpop.f32.mrb[0].mxu0
  %v747 = vadd.f32 0.0, %v746
  %v748 = vpop.f32.mrb[0].mxu0
  %v749 = vpop.f32.mrb[0].mxu0
  %v750 = vpop.f32.mrb[0].mxu0
  %751 = vdwg.mxu0
  %v752 = vadd.f32 %v645, %v706
  %v753 = vadd.f32 %v646, %v708
  %v754 = vadd.f32 %v647, %v747
  %s755 = scalar_lea.vmem %s1, 20
  %v756 = vld [vmem:[%s755] sm:$0xf]
  %757 = vrot.lane.b32.xlu0 %v235, 84
  %v758 = vpop.permute.xlu0 %757
  %759 = vrot.lane.b32.xlu0 %v236, 84
  %v760 = vpop.permute.xlu0 %759
  %761 = vrot.lane.b32.xlu0 %v237, 84
  %v762 = vpop.permute.xlu0 %761
  %vm763 = vcmask 687104
  %v764 = vsel %vm763, %v758, %v760
  %v765 = vsel %vm763, %v760, %v762
  %v767 = vsel %vm247, %v756, 0
  %v770 = vsel %vm17, %v764, 0
  %v773 = vsel %vm17, %v765, 0
  %v776 = vsel %vm17, %v762, 0
  %778 = vmatprep.subr.bf16.mxu0 %v773
  %779 = vmatpush1.bf16.msra.mxu0 %v770
  %780 = vmatprep.subr.bf16.mxu0 0
  %781 = vmatpush1.bf16.msra.mxu0 0
  %782 = vmatprep.subr.bf16.mxu0 0
  %783 = vmatpush1.bf16.msra.mxu0 0
  %784 = vmatprep.subr.bf16.mxu0 0
  %785 = vmatpush1.bf16.msra.mxu0 0
  %786 = vmatprep.subr.bf16.mxu0 0
  %787 = vmatpush1.bf16.msra.mxu0 0
  %788 = vmatprep.subr.bf16.mxu0 0
  %789 = vmatpush1.bf16.msra.mxu0 0
  %790 = vmatprep.subr.bf16.mxu0 0
  %791 = vmatpush1.bf16.msra.mxu0 0
  %792 = vmatprep.subr.bf16.mxu0 0
  %793 = vmatpush1.bf16.msra.mxu0 0
  %794 = vmatprep.subr.bf16.mxu0 0
  %795 = vmatpush1.bf16.msra.mxu0 0
  %796 = vmatprep.subr.bf16.mxu0 0
  %797 = vmatpush1.bf16.msra.mxu0 0
  %798 = vmatprep.subr.bf16.mxu0 0
  %799 = vmatpush1.bf16.msra.mxu0 0
  %800 = vmatprep.subr.bf16.mxu0 0
  %801 = vmatpush1.bf16.msra.mxu0 0
  %802 = vmatprep.subr.bf16.mxu0 0
  %803 = vmatpush1.bf16.msra.mxu0 0
  %804 = vmatprep.subr.bf16.mxu0 0
  %805 = vmatpush1.bf16.msra.mxu0 0
  %806 = vmatprep.subr.bf16.mxu0 0
  %807 = vmatpush1.bf16.msra.mxu0 0
  %808 = vmatprep.subr.bf16.mxu0 0
  %809 = vmatpush1.bf16.msra.mxu0 0
  %810 = vmatprep.mubr.bf16.mxu0 0
  %811 = vmatmul.mubr.bf16.gmra.mrb[0].mxu0 %v767
  %v812 = vpop.f32.mrb[0].mxu0
  %v813 = vadd.f32 0.0, %v812
  %v814 = vpop.f32.mrb[0].mxu0
  %v815 = vadd.f32 0.0, %v814
  %v816 = vpop.f32.mrb[0].mxu0
  %v817 = vpop.f32.mrb[0].mxu0
  %818 = vdwg.mxu0
  %819 = vmatprep.subr.bf16.mxu0 0
  %820 = vmatpush1.bf16.msra.mxu0 %v776
  %821 = vmatprep.subr.bf16.mxu0 0
  %822 = vmatpush1.bf16.msra.mxu0 0
  %823 = vmatprep.subr.bf16.mxu0 0
  %824 = vmatpush1.bf16.msra.mxu0 0
  %825 = vmatprep.subr.bf16.mxu0 0
  %826 = vmatpush1.bf16.msra.mxu0 0
  %827 = vmatprep.subr.bf16.mxu0 0
  %828 = vmatpush1.bf16.msra.mxu0 0
  %829 = vmatprep.subr.bf16.mxu0 0
  %830 = vmatpush1.bf16.msra.mxu0 0
  %831 = vmatprep.subr.bf16.mxu0 0
  %832 = vmatpush1.bf16.msra.mxu0 0
  %833 = vmatprep.subr.bf16.mxu0 0
  %834 = vmatpush1.bf16.msra.mxu0 0
  %835 = vmatprep.subr.bf16.mxu0 0
  %836 = vmatpush1.bf16.msra.mxu0 0
  %837 = vmatprep.subr.bf16.mxu0 0
  %838 = vmatpush1.bf16.msra.mxu0 0
  %839 = vmatprep.subr.bf16.mxu0 0
  %840 = vmatpush1.bf16.msra.mxu0 0
  %841 = vmatprep.subr.bf16.mxu0 0
  %842 = vmatpush1.bf16.msra.mxu0 0
  %843 = vmatprep.subr.bf16.mxu0 0
  %844 = vmatpush1.bf16.msra.mxu0 0
  %845 = vmatprep.subr.bf16.mxu0 0
  %846 = vmatpush1.bf16.msra.mxu0 0
  %847 = vmatprep.subr.bf16.mxu0 0
  %848 = vmatpush1.bf16.msra.mxu0 0
  %849 = vmatprep.subr.bf16.mxu0 0
  %850 = vmatpush1.bf16.msra.mxu0 0
  %851 = vmatprep.mubr.bf16.mxu0 0
  %852 = vmatmul.mubr.bf16.gmra.mrb[0].mxu0 %v767
  %v853 = vpop.f32.mrb[0].mxu0
  %v854 = vadd.f32 0.0, %v853
  %v855 = vpop.f32.mrb[0].mxu0
  %v856 = vpop.f32.mrb[0].mxu0
  %v857 = vpop.f32.mrb[0].mxu0
  %858 = vdwg.mxu0
  %v859 = vadd.f32 %v752, %v813
  %v860 = vadd.f32 %v753, %v815
  %v861 = vadd.f32 %v754, %v854
  %s862 = scalar_lea.vmem %s1, 24
  %v863 = vld [vmem:[%s862] sm:$0xf]
  %v864 = vld [vmem:[#allocation2] sm:$0xff]
  %v865 = vld [vmem:[#allocation2 + $0x8] sm:$0xff]
  %v868 = vunpack.c.l.b16 %v864
  %v869 = vunpack.c.h.b16 %v864
  %v870 = vunpack.c.l.b16 %v865
  %v871 = vunpack.c.h.b16 %v865
  %v872 = vpack.c.b16 %v868, %v868
  %v873 = vpack.c.b16 %v869, %v869
  %v874 = vpack.c.b16 %v870, %v870
  %v875 = vpack.c.b16 %v871, %v871
  %876 = vrot.lane.b32.xlu0 %v872, 48
  %v877 = vpop.permute.xlu0 %876
  %878 = vrot.lane.b32.xlu0 %v873, 48
  %v879 = vpop.permute.xlu0 %878
  %880 = vrot.lane.b32.xlu0 %v874, 48
  %v881 = vpop.permute.xlu0 %880
  %882 = vrot.lane.b32.xlu0 %v875, 48
  %v883 = vpop.permute.xlu0 %882
  %vm884 = vcmask 392192
  %v885 = vsel %vm884, %v877, %v879
  %v886 = vsel %vm884, %v879, %v881
  %v887 = vsel %vm884, %v881, %v883
  %v889 = vsel %vm247, %v863, 0
  %v892 = vsel %vm17, %v885, 0
  %v895 = vsel %vm17, %v886, 0
  %v898 = vsel %vm17, %v887, 0
  %900 = vmatprep.subr.bf16.mxu0 %v895
  %901 = vmatpush1.bf16.msra.mxu0 %v892
  %902 = vmatprep.subr.bf16.mxu0 0
  %903 = vmatpush1.bf16.msra.mxu0 0
  %904 = vmatprep.subr.bf16.mxu0 0
  %905 = vmatpush1.bf16.msra.mxu0 0
  %906 = vmatprep.subr.bf16.mxu0 0
  %907 = vmatpush1.bf16.msra.mxu0 0
  %908 = vmatprep.subr.bf16.mxu0 0
  %909 = vmatpush1.bf16.msra.mxu0 0
  %910 = vmatprep.subr.bf16.mxu0 0
  %911 = vmatpush1.bf16.msra.mxu0 0
  %912 = vmatprep.subr.bf16.mxu0 0
  %913 = vmatpush1.bf16.msra.mxu0 0
  %914 = vmatprep.subr.bf16.mxu0 0
  %915 = vmatpush1.bf16.msra.mxu0 0
  %916 = vmatprep.subr.bf16.mxu0 0
  %917 = vmatpush1.bf16.msra.mxu0 0
  %918 = vmatprep.subr.bf16.mxu0 0
  %919 = vmatpush1.bf16.msra.mxu0 0
  %920 = vmatprep.subr.bf16.mxu0 0
  %921 = vmatpush1.bf16.msra.mxu0 0
  %922 = vmatprep.subr.bf16.mxu0 0
  %923 = vmatpush1.bf16.msra.mxu0 0
  %924 = vmatprep.subr.bf16.mxu0 0
  %925 = vmatpush1.bf16.msra.mxu0 0
  %926 = vmatprep.subr.bf16.mxu0 0
  %927 = vmatpush1.bf16.msra.mxu0 0
  %928 = vmatprep.subr.bf16.mxu0 0
  %929 = vmatpush1.bf16.msra.mxu0 0
  %930 = vmatprep.subr.bf16.mxu0 0
  %931 = vmatpush1.bf16.msra.mxu0 0
  %932 = vmatprep.mubr.bf16.mxu0 0
  %933 = vmatmul.mubr.bf16.gmra.mrb[0].mxu0 %v889
  %v934 = vpop.f32.mrb[0].mxu0
  %v935 = vadd.f32 0.0, %v934
  %v936 = vpop.f32.mrb[0].mxu0
  %v937 = vadd.f32 0.0, %v936
  %v938 = vpop.f32.mrb[0].mxu0
  %v939 = vpop.f32.mrb[0].mxu0
  %940 = vdwg.mxu0
  %941 = vmatprep.subr.bf16.mxu0 0
  %942 = vmatpush1.bf16.msra.mxu0 %v898
  %943 = vmatprep.subr.bf16.mxu0 0
  %944 = vmatpush1.bf16.msra.mxu0 0
  %945 = vmatprep.subr.bf16.mxu0 0
  %946 = vmatpush1.bf16.msra.mxu0 0
  %947 = vmatprep.subr.bf16.mxu0 0
  %948 = vmatpush1.bf16.msra.mxu0 0
  %949 = vmatprep.subr.bf16.mxu0 0
  %950 = vmatpush1.bf16.msra.mxu0 0
  %951 = vmatprep.subr.bf16.mxu0 0
  %952 = vmatpush1.bf16.msra.mxu0 0
  %953 = vmatprep.subr.bf16.mxu0 0
  %954 = vmatpush1.bf16.msra.mxu0 0
  %955 = vmatprep.subr.bf16.mxu0 0
  %956 = vmatpush1.bf16.msra.mxu0 0
  %957 = vmatprep.subr.bf16.mxu0 0
  %958 = vmatpush1.bf16.msra.mxu0 0
  %959 = vmatprep.subr.bf16.mxu0 0
  %960 = vmatpush1.bf16.msra.mxu0 0
  %961 = vmatprep.subr.bf16.mxu0 0
  %962 = vmatpush1.bf16.msra.mxu0 0
  %963 = vmatprep.subr.bf16.mxu0 0
  %964 = vmatpush1.bf16.msra.mxu0 0
  %965 = vmatprep.subr.bf16.mxu0 0
  %966 = vmatpush1.bf16.msra.mxu0 0
  %967 = vmatprep.subr.bf16.mxu0 0
  %968 = vmatpush1.bf16.msra.mxu0 0
  %969 = vmatprep.subr.bf16.mxu0 0
  %970 = vmatpush1.bf16.msra.mxu0 0
  %971 = vmatprep.subr.bf16.mxu0 0
  %972 = vmatpush1.bf16.msra.mxu0 0
  %973 = vmatprep.mubr.bf16.mxu0 0
  %974 = vmatmul.mubr.bf16.gmra.mrb[0].mxu0 %v889
  %v975 = vpop.f32.mrb[0].mxu0
  %v976 = vadd.f32 0.0, %v975
  %v977 = vpop.f32.mrb[0].mxu0
  %v978 = vpop.f32.mrb[0].mxu0
  %v979 = vpop.f32.mrb[0].mxu0
  %980 = vdwg.mxu0
  %v981 = vadd.f32 %v859, %v935
  %v982 = vadd.f32 %v860, %v937
  %v983 = vadd.f32 %v861, %v976
  %s984 = scalar_lea.vmem %s1, 28
  %v985 = vld [vmem:[%s984] sm:$0xf]
  %986 = vrot.lane.b32.xlu0 %v872, 46
  %v987 = vpop.permute.xlu0 %986
  %988 = vrot.lane.b32.xlu0 %v873, 46
  %v989 = vpop.permute.xlu0 %988
  %990 = vrot.lane.b32.xlu0 %v874, 46
  %v991 = vpop.permute.xlu0 %990
  %992 = vrot.lane.b32.xlu0 %v875, 46
  %v993 = vpop.permute.xlu0 %992
  %vm994 = vcmask 375808
  %v995 = vsel %vm994, %v987, %v989
  %v996 = vsel %vm994, %v989, %v991
  %v997 = vsel %vm994, %v991, %v993
  %v999 = vsel %vm247, %v985, 0
  %v1002 = vsel %vm17, %v995, 0
  %v1005 = vsel %vm17, %v996, 0
  %v1008 = vsel %vm17, %v997, 0
  %1010 = vmatprep.subr.bf16.mxu0 %v1005
  %1011 = vmatpush1.bf16.msra.mxu0 %v1002
  %1012 = vmatprep.subr.bf16.mxu0 0
  %1013 = vmatpush1.bf16.msra.mxu0 0
  %1014 = vmatprep.subr.bf16.mxu0 0
  %1015 = vmatpush1.bf16.msra.mxu0 0
  %1016 = vmatprep.subr.bf16.mxu0 0
  %1017 = vmatpush1.bf16.msra.mxu0 0
  %1018 = vmatprep.subr.bf16.mxu0 0
  %1019 = vmatpush1.bf16.msra.mxu0 0
  %1020 = vmatprep.subr.bf16.mxu0 0
  %1021 = vmatpush1.bf16.msra.mxu0 0
  %1022 = vmatprep.subr.bf16.mxu0 0
  %1023 = vmatpush1.bf16.msra.mxu0 0
  %1024 = vmatprep.subr.bf16.mxu0 0
  %1025 = vmatpush1.bf16.msra.mxu0 0
  %1026 = vmatprep.subr.bf16.mxu0 0
  %1027 = vmatpush1.bf16.msra.mxu0 0
  %1028 = vmatprep.subr.bf16.mxu0 0
  %1029 = vmatpush1.bf16.msra.mxu0 0
  %1030 = vmatprep.subr.bf16.mxu0 0
  %1031 = vmatpush1.bf16.msra.mxu0 0
  %1032 = vmatprep.subr.bf16.mxu0 0
  %1033 = vmatpush1.bf16.msra.mxu0 0
  %1034 = vmatprep.subr.bf16.mxu0 0
  %1035 = vmatpush1.bf16.msra.mxu0 0
  %1036 = vmatprep.subr.bf16.mxu0 0
  %1037 = vmatpush1.bf16.msra.mxu0 0
  %1038 = vmatprep.subr.bf16.mxu0 0
  %1039 = vmatpush1.bf16.msra.mxu0 0
  %1040 = vmatprep.subr.bf16.mxu0 0
  %1041 = vmatpush1.bf16.msra.mxu0 0
  %1042 = vmatprep.mubr.bf16.mxu0 0
  %1043 = vmatmul.mubr.bf16.gmra.mrb[0].mxu0 %v999
  %v1044 = vpop.f32.mrb[0].mxu0
  %v1045 = vadd.f32 0.0, %v1044
  %v1046 = vpop.f32.mrb[0].mxu0
  %v1047 = vadd.f32 0.0, %v1046
  %v1048 = vpop.f32.mrb[0].mxu0
  %v1049 = vpop.f32.mrb[0].mxu0
  %1050 = vdwg.mxu0
  %1051 = vmatprep.subr.bf16.mxu0 0
  %1052 = vmatpush1.bf16.msra.mxu0 %v1008
  %1053 = vmatprep.subr.bf16.mxu0 0
  %1054 = vmatpush1.bf16.msra.mxu0 0
  %1055 = vmatprep.subr.bf16.mxu0 0
  %1056 = vmatpush1.bf16.msra.mxu0 0
  %1057 = vmatprep.subr.bf16.mxu0 0
  %1058 = vmatpush1.bf16.msra.mxu0 0
  %1059 = vmatprep.subr.bf16.mxu0 0
  %1060 = vmatpush1.bf16.msra.mxu0 0
  %1061 = vmatprep.subr.bf16.mxu0 0
  %1062 = vmatpush1.bf16.msra.mxu0 0
  %1063 = vmatprep.subr.bf16.mxu0 0
  %1064 = vmatpush1.bf16.msra.mxu0 0
  %1065 = vmatprep.subr.bf16.mxu0 0
  %1066 = vmatpush1.bf16.msra.mxu0 0
  %1067 = vmatprep.subr.bf16.mxu0 0
  %1068 = vmatpush1.bf16.msra.mxu0 0
  %1069 = vmatprep.subr.bf16.mxu0 0
  %1070 = vmatpush1.bf16.msra.mxu0 0
  %1071 = vmatprep.subr.bf16.mxu0 0
  %1072 = vmatpush1.bf16.msra.mxu0 0
  %1073 = vmatprep.subr.bf16.mxu0 0
  %1074 = vmatpush1.bf16.msra.mxu0 0
  %1075 = vmatprep.subr.bf16.mxu0 0
  %1076 = vmatpush1.bf16.msra.mxu0 0
  %1077 = vmatprep.subr.bf16.mxu0 0
  %1078 = vmatpush1.bf16.msra.mxu0 0
  %1079 = vmatprep.subr.bf16.mxu0 0
  %1080 = vmatpush1.bf16.msra.mxu0 0
  %1081 = vmatprep.subr.bf16.mxu0 0
  %1082 = vmatpush1.bf16.msra.mxu0 0
  %1083 = vmatprep.mubr.bf16.mxu0 0
  %1084 = vmatmul.mubr.bf16.gmra.mrb[0].mxu0 %v999
  %v1085 = vpop.f32.mrb[0].mxu0
  %v1086 = vadd.f32 0.0, %v1085
  %v1087 = vpop.f32.mrb[0].mxu0
  %v1088 = vpop.f32.mrb[0].mxu0
  %v1089 = vpop.f32.mrb[0].mxu0
  %1090 = vdwg.mxu0
  %v1091 = vadd.f32 %v981, %v1045
  %v1092 = vadd.f32 %v982, %v1047
  %v1093 = vadd.f32 %v983, %v1086
  %s1094 = scalar_lea.vmem %s1, 32
  %v1095 = vld [vmem:[%s1094] sm:$0xf]
  %1096 = vrot.lane.b32.xlu0 %v872, 44
  %v1097 = vpop.permute.xlu0 %1096
  %1098 = vrot.lane.b32.xlu0 %v873, 44
  %v1099 = vpop.permute.xlu0 %1098
  %1100 = vrot.lane.b32.xlu0 %v874, 44
  %v1101 = vpop.permute.xlu0 %1100
  %1102 = vrot.lane.b32.xlu0 %v875, 44
  %v1103 = vpop.permute.xlu0 %1102
  %vm1104 = vcmask 359424
  %v1105 = vsel %vm1104, %v1097, %v1099
  %v1106 = vsel %vm1104, %v1099, %v1101
  %v1107 = vsel %vm1104, %v1101, %v1103
  %v1109 = vsel %vm247, %v1095, 0
  %v1112 = vsel %vm17, %v1105, 0
  %v1115 = vsel %vm17, %v1106, 0
  %v1118 = vsel %vm17, %v1107, 0
  %1120 = vmatprep.subr.bf16.mxu0 %v1115
  %1121 = vmatpush1.bf16.msra.mxu0 %v1112
  %1122 = vmatprep.subr.bf16.mxu0 0
  %1123 = vmatpush1.bf16.msra.mxu0 0
  %1124 = vmatprep.subr.bf16.mxu0 0
  %1125 = vmatpush1.bf16.msra.mxu0 0
  %1126 = vmatprep.subr.bf16.mxu0 0
  %1127 = vmatpush1.bf16.msra.mxu0 0
  %1128 = vmatprep.subr.bf16.mxu0 0
  %1129 = vmatpush1.bf16.msra.mxu0 0
  %1130 = vmatprep.subr.bf16.mxu0 0
  %1131 = vmatpush1.bf16.msra.mxu0 0
  %1132 = vmatprep.subr.bf16.mxu0 0
  %1133 = vmatpush1.bf16.msra.mxu0 0
  %1134 = vmatprep.subr.bf16.mxu0 0
  %1135 = vmatpush1.bf16.msra.mxu0 0
  %1136 = vmatprep.subr.bf16.mxu0 0
  %1137 = vmatpush1.bf16.msra.mxu0 0
  %1138 = vmatprep.subr.bf16.mxu0 0
  %1139 = vmatpush1.bf16.msra.mxu0 0
  %1140 = vmatprep.subr.bf16.mxu0 0
  %1141 = vmatpush1.bf16.msra.mxu0 0
  %1142 = vmatprep.subr.bf16.mxu0 0
  %1143 = vmatpush1.bf16.msra.mxu0 0
  %1144 = vmatprep.subr.bf16.mxu0 0
  %1145 = vmatpush1.bf16.msra.mxu0 0
  %1146 = vmatprep.subr.bf16.mxu0 0
  %1147 = vmatpush1.bf16.msra.mxu0 0
  %1148 = vmatprep.subr.bf16.mxu0 0
  %1149 = vmatpush1.bf16.msra.mxu0 0
  %1150 = vmatprep.subr.bf16.mxu0 0
  %1151 = vmatpush1.bf16.msra.mxu0 0
  %1152 = vmatprep.mubr.bf16.mxu0 0
  %1153 = vmatmul.mubr.bf16.gmra.mrb[0].mxu0 %v1109
  %v1154 = vpop.f32.mrb[0].mxu0
  %v1155 = vadd.f32 0.0, %v1154
  %v1156 = vpop.f32.mrb[0].mxu0
  %v1157 = vadd.f32 0.0, %v1156
  %v1158 = vpop.f32.mrb[0].mxu0
  %v1159 = vpop.f32.mrb[0].mxu0
  %1160 = vdwg.mxu0
  %1161 = vmatprep.subr.bf16.mxu0 0
  %1162 = vmatpush1.bf16.msra.mxu0 %v1118
  %1163 = vmatprep.subr.bf16.mxu0 0
  %1164 = vmatpush1.bf16.msra.mxu0 0
  %1165 = vmatprep.subr.bf16.mxu0 0
  %1166 = vmatpush1.bf16.msra.mxu0 0
  %1167 = vmatprep.subr.bf16.mxu0 0
  %1168 = vmatpush1.bf16.msra.mxu0 0
  %1169 = vmatprep.subr.bf16.mxu0 0
  %1170 = vmatpush1.bf16.msra.mxu0 0
  %1171 = vmatprep.subr.bf16.mxu0 0
  %1172 = vmatpush1.bf16.msra.mxu0 0
  %1173 = vmatprep.subr.bf16.mxu0 0
  %1174 = vmatpush1.bf16.msra.mxu0 0
  %1175 = vmatprep.subr.bf16.mxu0 0
  %1176 = vmatpush1.bf16.msra.mxu0 0
  %1177 = vmatprep.subr.bf16.mxu0 0
  %1178 = vmatpush1.bf16.msra.mxu0 0
  %1179 = vmatprep.subr.bf16.mxu0 0
  %1180 = vmatpush1.bf16.msra.mxu0 0
  %1181 = vmatprep.subr.bf16.mxu0 0
  %1182 = vmatpush1.bf16.msra.mxu0 0
  %1183 = vmatprep.subr.bf16.mxu0 0
  %1184 = vmatpush1.bf16.msra.mxu0 0
  %1185 = vmatprep.subr.bf16.mxu0 0
  %1186 = vmatpush1.bf16.msra.mxu0 0
  %1187 = vmatprep.subr.bf16.mxu0 0
  %1188 = vmatpush1.bf16.msra.mxu0 0
  %1189 = vmatprep.subr.bf16.mxu0 0
  %1190 = vmatpush1.bf16.msra.mxu0 0
  %1191 = vmatprep.subr.bf16.mxu0 0
  %1192 = vmatpush1.bf16.msra.mxu0 0
  %1193 = vmatprep.mubr.bf16.mxu0 0
  %1194 = vmatmul.mubr.bf16.gmra.mrb[0].mxu0 %v1109
  %v1195 = vpop.f32.mrb[0].mxu0
  %v1196 = vadd.f32 0.0, %v1195
  %v1197 = vpop.f32.mrb[0].mxu0
  %v1198 = vpop.f32.mrb[0].mxu0
  %v1199 = vpop.f32.mrb[0].mxu0
  %1200 = vdwg.mxu0
  %v1201 = vadd.f32 %v1091, %v1155
  %v1202 = vadd.f32 %v1092, %v1157
  %v1203 = vadd.f32 %v1093, %v1196
  %1205 = vset.pattern.permute.xlu0 0
  %1206 = vperm.xlu0 %1205, %v15
  %v1207 = vpop.permute.xlu0 %1206
  %v1209 = vadd.f32 %v1201, %v1207
  %v1210 = vadd.f32 %v1202, %v1207
  %v1211 = vadd.f32 %v1203, %v1207
  %v1212 = vmax.f32 %v1209, 0.0
  %v1213 = vmax.f32 %v1210, 0.0
  %v1214 = vmax.f32 %v1211, 0.0
  %vm1215 = vcmask 130048
  %1216 = vst.msk [vmem:[%s3] sm:$0xff] %vm1215, %v1212
  %1218 = vrot.lane.b32.xlu0 %v1212, 124
  %v1219 = vpop.permute.xlu0 %1218
  %vm1221 = vcmask 261248
  %1222 = vst.msk [vmem:[%s3] sm:$0xff] %vm1221, %v1219
  %1223 = vrot.lane.b32.xlu0 %v1212, 120
  %v1224 = vpop.permute.xlu0 %1223
  %vm1226 = vcmask 392448
  %1227 = vst.msk [vmem:[%s3] sm:$0xff] %vm1226, %v1224
  %1228 = vrot.lane.b32.xlu0 %v1212, 116
  %v1229 = vpop.permute.xlu0 %1228
  %vm1231 = vcmask 523648
  %1232 = vst.msk [vmem:[%s3] sm:$0xff] %vm1231, %v1229
  %1233 = vrot.lane.b32.xlu0 %v1212, 112
  %v1234 = vpop.permute.xlu0 %1233
  %vm1236 = vcmask 654848
  %1237 = vst.msk [vmem:[%s3] sm:$0xff] %vm1236, %v1234
  %1238 = vrot.lane.b32.xlu0 %v1212, 108
  %v1239 = vpop.permute.xlu0 %1238
  %vm1241 = vcmask 786048
  %1242 = vst.msk [vmem:[%s3] sm:$0xff] %vm1241, %v1239
  %1244 = vrot.lane.b32.xlu0 %v1212, 104
  %v1245 = vpop.permute.xlu0 %1244
  %1246 = vrot.lane.b32.xlu0 %v1213, 104
  %v1247 = vpop.permute.xlu0 %1246
  %vm1248 = vcmask 850944
  %v1249 = vsel %vm1248, %v1245, %v1247
  %vm1251 = vcmask 917248
  %1252 = vst.msk [vmem:[%s3] sm:$0xff] %vm1251, %v1249
  %1253 = vrot.lane.b32.xlu0 %v1213, 100
  %v1254 = vpop.permute.xlu0 %1253
  %vm1256 = vcmask 1048448
  %1257 = vst.msk [vmem:[%s3] sm:$0xff] %vm1256, %v1254
  %1258 = vrot.lane.b32.xlu0 %v1213, 96
  %v1259 = vpop.permute.xlu0 %1258
  %1261 = vst.msk [vmem:[%s3 + $0x8] sm:$0xff] %vm1215, %v1259
  %1262 = vrot.lane.b32.xlu0 %v1213, 92
  %v1263 = vpop.permute.xlu0 %1262
  %1265 = vst.msk [vmem:[%s3 + $0x8] sm:$0xff] %vm1221, %v1263
  %1266 = vrot.lane.b32.xlu0 %v1213, 88
  %v1267 = vpop.permute.xlu0 %1266
  %1269 = vst.msk [vmem:[%s3 + $0x8] sm:$0xff] %vm1226, %v1267
  %1270 = vrot.lane.b32.xlu0 %v1213, 84
  %v1271 = vpop.permute.xlu0 %1270
  %1273 = vst.msk [vmem:[%s3 + $0x8] sm:$0xff] %vm1231, %v1271
  %1274 = vrot.lane.b32.xlu0 %v1213, 80
  %v1275 = vpop.permute.xlu0 %1274
  %1277 = vst.msk [vmem:[%s3 + $0x8] sm:$0xff] %vm1236, %v1275
  %1279 = vrot.lane.b32.xlu0 %v1214, 76
  %v1280 = vpop.permute.xlu0 %1279
  %1282 = vst.msk [vmem:[%s3 + $0x8] sm:$0xff] %vm1241, %v1280
  %1283 = vrot.lane.b32.xlu0 %v1214, 72
  %v1284 = vpop.permute.xlu0 %1283
  %1286 = vst.msk [vmem:[%s3 + $0x8] sm:$0xff] %vm1251, %v1284
  %1287 = vrot.lane.b32.xlu0 %v1214, 68
  %v1288 = vpop.permute.xlu0 %1287
  %1290 = vst.msk [vmem:[%s3 + $0x8] sm:$0xff] %vm1256, %v1288
  %s1291 = scalar_lea.vmem [#allocation2], 16
  %1292 = vst [vmem:[%s1291] sm:$0xff] 0
  %1293 = vst.msk [vmem:[%s1291 + $0x8] sm:$0xff] %vm19, 0
  %s1294 = scalar_lea.vmem %s0, 8
  %v1295 = vld [vmem:[%s1294] sm:$0xf]
  %v1296 = vpack.c.bf16 %v1295, %v1295
  %v1298 = vsel %vm23, %v1296, 0
  %v1300 = vunpack.c.l.b16 %v1298
  %v1301 = vpack.c.b16 %v1300, %v1300
  %1302 = vrot.lane.b32.xlu0 %v1301, 42
  %v1303 = vpop.permute.xlu0 %1302
  %1305 = vst.msk [vmem:[%s1291] sm:$0xf] %vm33, %v1303
  %v1306 = vld [vmem:[%s1294] sm:$0xf]
  %v1307 = vpack.c.bf16 %v1306, %v1306
  %v1309 = vsel %vm23, %v1307, 0
  %v1311 = vunpack.c.l.b16 %v1309
  %v1312 = vpack.c.b16 %v1311, %v1311
  %1313 = vrot.lane.b32.xlu0 %v1312, 46
  %v1314 = vpop.permute.xlu0 %1313
  %1316 = vst.msk [vmem:[%s1291] sm:$0xf] %vm45, %v1314
  %v1317 = vld [vmem:[%s1294] sm:$0xf]
  %v1318 = vpack.c.bf16 %v1317, %v1317
  %v1320 = vsel %vm23, %v1318, 0
  %v1322 = vunpack.c.l.b16 %v1320
  %v1323 = vpack.c.b16 %v1322, %v1322
  %1324 = vrot.lane.b32.xlu0 %v1323, 50
  %v1325 = vpop.permute.xlu0 %1324
  %1327 = vst.msk [vmem:[%s1291] sm:$0xf] %vm57, %v1325
  %v1328 = vld [vmem:[%s1294] sm:$0xf]
  %v1329 = vpack.c.bf16 %v1328, %v1328
  %v1331 = vsel %vm23, %v1329, 0
  %v1333 = vunpack.c.l.b16 %v1331
  %v1334 = vpack.c.b16 %v1333, %v1333
  %1335 = vrot.lane.b32.xlu0 %v1334, 54
  %v1336 = vpop.permute.xlu0 %1335
  %1338 = vst.msk [vmem:[%s1291] sm:$0xf] %vm69, %v1336
  %v1339 = vld [vmem:[%s1294] sm:$0xf]
  %v1340 = vpack.c.bf16 %v1339, %v1339
  %v1342 = vsel %vm23, %v1340, 0
  %v1344 = vunpack.c.l.b16 %v1342
  %v1345 = vpack.c.b16 %v1344, %v1344
  %1346 = vrot.lane.b32.xlu0 %v1345, 58
  %v1347 = vpop.permute.xlu0 %1346
  %v1348 = vrot.slane %v1347, 4
  %v1349 = vsel %vm81, %v1348, %v1347
  %1351 = vst.msk [vmem:[%s1291] sm:$0xff] %vm86, %v1349
  %v1352 = vld [vmem:[%s1294] sm:$0xf]
  %v1353 = vpack.c.bf16 %v1352, %v1352
  %v1355 = vsel %vm23, %v1353, 0
  %v1357 = vunpack.c.l.b16 %v1355
  %v1358 = vpack.c.b16 %v1357, %v1357
  %1359 = vrot.lane.b32.xlu0 %v1358, 62
  %v1360 = vpop.permute.xlu0 %1359
  %1362 = vst.msk [vmem:[%s1291 + $0x4] sm:$0xf] %vm98, %v1360
  %v1363 = vld [vmem:[%s1294] sm:$0xf]
  %v1364 = vpack.c.bf16 %v1363, %v1363
  %v1366 = vsel %vm23, %v1364, 0
  %v1368 = vunpack.c.l.b16 %v1366
  %v1369 = vpack.c.b16 %v1368, %v1368
  %1370 = vrot.lane.b32.xlu0 %v1369, 66
  %v1371 = vpop.permute.xlu0 %1370
  %1373 = vst.msk [vmem:[%s1291 + $0x4] sm:$0xf] %vm110, %v1371
  %v1374 = vld [vmem:[%s1294] sm:$0xf]
  %v1375 = vpack.c.bf16 %v1374, %v1374
  %v1377 = vsel %vm23, %v1375, 0
  %v1379 = vunpack.c.l.b16 %v1377
  %v1380 = vpack.c.b16 %v1379, %v1379
  %1381 = vrot.lane.b32.xlu0 %v1380, 70
  %v1382 = vpop.permute.xlu0 %1381
  %1384 = vst.msk [vmem:[%s1291 + $0x4] sm:$0xf] %vm122, %v1382
  %v1385 = vld [vmem:[%s1294 + $0x4] sm:$0xf]
  %v1386 = vpack.c.bf16 %v1385, %v1385
  %v1388 = vsel %vm23, %v1386, 0
  %v1390 = vunpack.c.l.b16 %v1388
  %v1391 = vpack.c.b16 %v1390, %v1390
  %1392 = vrot.lane.b32.xlu0 %v1391, 74
  %v1393 = vpop.permute.xlu0 %1392
  %1395 = vst.msk [vmem:[%s1291 + $0x4] sm:$0xf] %vm134, %v1393
  %v1396 = vld [vmem:[%s1294 + $0x4] sm:$0xf]
  %v1397 = vpack.c.bf16 %v1396, %v1396
  %v1399 = vsel %vm23, %v1397, 0
  %v1401 = vunpack.c.l.b16 %v1399
  %v1402 = vpack.c.b16 %v1401, %v1401
  %1403 = vrot.lane.b32.xlu0 %v1402, 78
  %v1404 = vpop.permute.xlu0 %1403
  %1406 = vst.msk [vmem:[%s1291 + $0x4] sm:$0xf] %vm146, %v1404
  %v1407 = vld [vmem:[%s1294 + $0x4] sm:$0xf]
  %v1408 = vpack.c.bf16 %v1407, %v1407
  %v1410 = vsel %vm23, %v1408, 0
  %v1412 = vunpack.c.l.b16 %v1410
  %v1413 = vpack.c.b16 %v1412, %v1412
  %1414 = vrot.lane.b32.xlu0 %v1413, 82
  %v1415 = vpop.permute.xlu0 %1414
  %v1416 = vrot.slane %v1415, 4
  %v1417 = vsel %vm158, %v1416, %v1415
  %1419 = vst.msk [vmem:[%s1291 + $0x4] sm:$0xff] %vm163, %v1417
  %v1420 = vld [vmem:[%s1294 + $0x4] sm:$0xf]
  %v1421 = vpack.c.bf16 %v1420, %v1420
  %v1423 = vsel %vm23, %v1421, 0
  %v1425 = vunpack.c.l.b16 %v1423
  %v1426 = vpack.c.b16 %v1425, %v1425
  %1427 = vrot.lane.b32.xlu0 %v1426, 86
  %v1428 = vpop.permute.xlu0 %1427
  %1430 = vst.msk [vmem:[%s1291 + $0x8] sm:$0xf] %vm175, %v1428
  %v1431 = vld [vmem:[%s1294 + $0x4] sm:$0xf]
  %v1432 = vpack.c.bf16 %v1431, %v1431
  %v1434 = vsel %vm23, %v1432, 0
  %v1436 = vunpack.c.l.b16 %v1434
  %v1437 = vpack.c.b16 %v1436, %v1436
  %1438 = vrot.lane.b32.xlu0 %v1437, 90
  %v1439 = vpop.permute.xlu0 %1438
  %1441 = vst.msk [vmem:[%s1291 + $0x8] sm:$0xf] %vm187, %v1439
  %v1442 = vld [vmem:[%s1294 + $0x4] sm:$0xf]
  %v1443 = vpack.c.bf16 %v1442, %v1442
  %v1445 = vsel %vm23, %v1443, 0
  %v1447 = vunpack.c.l.b16 %v1445
  %v1448 = vpack.c.b16 %v1447, %v1447
  %1449 = vrot.lane.b32.xlu0 %v1448, 94
  %v1450 = vpop.permute.xlu0 %1449
  %1452 = vst.msk [vmem:[%s1291 + $0x8] sm:$0xf] %vm199, %v1450
  %v1453 = vld [vmem:[%s1294 + $0x4] sm:$0xf]
  %v1454 = vpack.c.bf16 %v1453, %v1453
  %v1456 = vsel %vm23, %v1454, 0
  %v1458 = vunpack.c.l.b16 %v1456
  %v1459 = vpack.c.b16 %v1458, %v1458
  %1460 = vrot.lane.b32.xlu0 %v1459, 98
  %v1461 = vpop.permute.xlu0 %1460
  %1463 = vst.msk [vmem:[%s1291 + $0x8] sm:$0xf] %vm211, %v1461
  %v1464 = vld [vmem:[%s1294 + $0x4] sm:$0xf]
  %v1465 = vpack.c.bf16 %v1464, %v1464
  %v1467 = vsel %vm23, %v1465, 0
  %v1469 = vunpack.c.l.b16 %v1467
  %v1470 = vpack.c.b16 %v1469, %v1469
  %1471 = vrot.lane.b32.xlu0 %v1470, 102
  %v1472 = vpop.permute.xlu0 %1471
  %1474 = vst.msk [vmem:[%s1291 + $0x8] sm:$0xf] %vm223, %v1472
  %v1475 = vld [vmem:[%s1] sm:$0xf]
  %v1476 = vld [vmem:[%s1291] sm:$0xff]
  %v1477 = vld [vmem:[%s1291 + $0x8] sm:$0xf]
  %v1478 = vld [vmem:[%s228] sm:$0xf]
  %v1481 = vunpack.c.l.b16 %v1476
  %v1482 = vunpack.c.h.b16 %v1476
  %v1483 = vunpack.c.l.b16 %v1477
  %v1484 = vpack.c.b16 %v1481, %v1481
  %v1485 = vpack.c.b16 %v1482, %v1482
  %v1486 = vpack.c.b16 %v1483, %v1483
  %1487 = vrot.lane.b32.xlu0 %v1484, 126
  %v1488 = vpop.permute.xlu0 %1487
  %1489 = vrot.lane.b32.xlu0 %v1485, 126
  %v1490 = vpop.permute.xlu0 %1489
  %1491 = vrot.lane.b32.xlu0 %v1486, 126
  %v1492 = vpop.permute.xlu0 %1491
  %v1493 = vsel %vm244, %v1488, %v1490
  %v1494 = vsel %vm244, %v1490, %v1492
  %v1496 = vsel %vm247, %v1478, 0
  %v1499 = vsel %vm17, %v1493, 0
  %v1502 = vsel %vm17, %v1494, 0
  %v1505 = vsel %vm17, %v1492, 0
  %1507 = vmatprep.subr.bf16.mxu0 %v1502
  %1508 = vmatpush1.bf16.msra.mxu0 %v1499
  %1509 = vmatprep.subr.bf16.mxu0 0
  %1510 = vmatpush1.bf16.msra.mxu0 0
  %1511 = vmatprep.subr.bf16.mxu0 0
  %1512 = vmatpush1.bf16.msra.mxu0 0
  %1513 = vmatprep.subr.bf16.mxu0 0
  %1514 = vmatpush1.bf16.msra.mxu0 0
  %1515 = vmatprep.subr.bf16.mxu0 0
  %1516 = vmatpush1.bf16.msra.mxu0 0
  %1517 = vmatprep.subr.bf16.mxu0 0
  %1518 = vmatpush1.bf16.msra.mxu0 0
  %1519 = vmatprep.subr.bf16.mxu0 0
  %1520 = vmatpush1.bf16.msra.mxu0 0
  %1521 = vmatprep.subr.bf16.mxu0 0
  %1522 = vmatpush1.bf16.msra.mxu0 0
  %1523 = vmatprep.subr.bf16.mxu0 0
  %1524 = vmatpush1.bf16.msra.mxu0 0
  %1525 = vmatprep.subr.bf16.mxu0 0
  %1526 = vmatpush1.bf16.msra.mxu0 0
  %1527 = vmatprep.subr.bf16.mxu0 0
  %1528 = vmatpush1.bf16.msra.mxu0 0
  %1529 = vmatprep.subr.bf16.mxu0 0
  %1530 = vmatpush1.bf16.msra.mxu0 0
  %1531 = vmatprep.subr.bf16.mxu0 0
  %1532 = vmatpush1.bf16.msra.mxu0 0
  %1533 = vmatprep.subr.bf16.mxu0 0
  %1534 = vmatpush1.bf16.msra.mxu0 0
  %1535 = vmatprep.subr.bf16.mxu0 0
  %1536 = vmatpush1.bf16.msra.mxu0 0
  %1537 = vmatprep.subr.bf16.mxu0 0
  %1538 = vmatpush1.bf16.msra.mxu0 0
  %1539 = vmatprep.mubr.bf16.mxu0 0
  %1540 = vmatmul.mubr.bf16.gmra.mrb[0].mxu0 %v1496
  %v1541 = vpop.f32.mrb[0].mxu0
  %v1542 = vadd.f32 0.0, %v1541
  %v1543 = vpop.f32.mrb[0].mxu0
  %v1544 = vadd.f32 0.0, %v1543
  %v1545 = vpop.f32.mrb[0].mxu0
  %v1546 = vpop.f32.mrb[0].mxu0
  %1547 = vdwg.mxu0
  %1548 = vmatprep.subr.bf16.mxu0 0
  %1549 = vmatpush1.bf16.msra.mxu0 %v1505
  %1550 = vmatprep.subr.bf16.mxu0 0
  %1551 = vmatpush1.bf16.msra.mxu0 0
  %1552 = vmatprep.subr.bf16.mxu0 0
  %1553 = vmatpush1.bf16.msra.mxu0 0
  %1554 = vmatprep.subr.bf16.mxu0 0
  %1555 = vmatpush1.bf16.msra.mxu0 0
  %1556 = vmatprep.subr.bf16.mxu0 0
  %1557 = vmatpush1.bf16.msra.mxu0 0
  %1558 = vmatprep.subr.bf16.mxu0 0
  %1559 = vmatpush1.bf16.msra.mxu0 0
  %1560 = vmatprep.subr.bf16.mxu0 0
  %1561 = vmatpush1.bf16.msra.mxu0 0
  %1562 = vmatprep.subr.bf16.mxu0 0
  %1563 = vmatpush1.bf16.msra.mxu0 0
  %1564 = vmatprep.subr.bf16.mxu0 0
  %1565 = vmatpush1.bf16.msra.mxu0 0
  %1566 = vmatprep.subr.bf16.mxu0 0
  %1567 = vmatpush1.bf16.msra.mxu0 0
  %1568 = vmatprep.subr.bf16.mxu0 0
  %1569 = vmatpush1.bf16.msra.mxu0 0
  %1570 = vmatprep.subr.bf16.mxu0 0
  %1571 = vmatpush1.bf16.msra.mxu0 0
  %1572 = vmatprep.subr.bf16.mxu0 0
  %1573 = vmatpush1.bf16.msra.mxu0 0
  %1574 = vmatprep.subr.bf16.mxu0 0
  %1575 = vmatpush1.bf16.msra.mxu0 0
  %1576 = vmatprep.subr.bf16.mxu0 0
  %1577 = vmatpush1.bf16.msra.mxu0 0
  %1578 = vmatprep.subr.bf16.mxu0 0
  %1579 = vmatpush1.bf16.msra.mxu0 0
  %1580 = vmatprep.mubr.bf16.mxu0 0
  %1581 = vmatmul.mubr.bf16.gmra.mrb[0].mxu0 %v1496
  %v1582 = vpop.f32.mrb[0].mxu0
  %v1583 = vadd.f32 0.0, %v1582
  %v1584 = vpop.f32.mrb[0].mxu0
  %v1585 = vpop.f32.mrb[0].mxu0
  %v1586 = vpop.f32.mrb[0].mxu0
  %1587 = vdwg.mxu0
  %v1589 = vsel %vm247, %v1475, 0
  %v1592 = vsel %vm17, %v1484, 0
  %v1595 = vsel %vm17, %v1485, 0
  %v1598 = vsel %vm17, %v1486, 0
  %1600 = vmatprep.subr.bf16.mxu0 %v1595
  %1601 = vmatpush1.bf16.msra.mxu0 %v1592
  %1602 = vmatprep.subr.bf16.mxu0 0
  %1603 = vmatpush1.bf16.msra.mxu0 0
  %1604 = vmatprep.subr.bf16.mxu0 0
  %1605 = vmatpush1.bf16.msra.mxu0 0
  %1606 = vmatprep.subr.bf16.mxu0 0
  %1607 = vmatpush1.bf16.msra.mxu0 0
  %1608 = vmatprep.subr.bf16.mxu0 0
  %1609 = vmatpush1.bf16.msra.mxu0 0
  %1610 = vmatprep.subr.bf16.mxu0 0
  %1611 = vmatpush1.bf16.msra.mxu0 0
  %1612 = vmatprep.subr.bf16.mxu0 0
  %1613 = vmatpush1.bf16.msra.mxu0 0
  %1614 = vmatprep.subr.bf16.mxu0 0
  %1615 = vmatpush1.bf16.msra.mxu0 0
  %1616 = vmatprep.subr.bf16.mxu0 0
  %1617 = vmatpush1.bf16.msra.mxu0 0
  %1618 = vmatprep.subr.bf16.mxu0 0
  %1619 = vmatpush1.bf16.msra.mxu0 0
  %1620 = vmatprep.subr.bf16.mxu0 0
  %1621 = vmatpush1.bf16.msra.mxu0 0
  %1622 = vmatprep.subr.bf16.mxu0 0
  %1623 = vmatpush1.bf16.msra.mxu0 0
  %1624 = vmatprep.subr.bf16.mxu0 0
  %1625 = vmatpush1.bf16.msra.mxu0 0
  %1626 = vmatprep.subr.bf16.mxu0 0
  %1627 = vmatpush1.bf16.msra.mxu0 0
  %1628 = vmatprep.subr.bf16.mxu0 0
  %1629 = vmatpush1.bf16.msra.mxu0 0
  %1630 = vmatprep.subr.bf16.mxu0 0
  %1631 = vmatpush1.bf16.msra.mxu0 0
  %1632 = vmatprep.mubr.bf16.mxu0 0
  %1633 = vmatmul.mubr.bf16.gmra.mrb[0].mxu0 %v1589
  %v1634 = vpop.f32.mrb[0].mxu0
  %v1635 = vadd.f32 %v1542, %v1634
  %v1636 = vpop.f32.mrb[0].mxu0
  %v1637 = vadd.f32 %v1544, %v1636
  %v1638 = vpop.f32.mrb[0].mxu0
  %v1639 = vpop.f32.mrb[0].mxu0
  %1640 = vdwg.mxu0
  %1641 = vmatprep.subr.bf16.mxu0 0
  %1642 = vmatpush1.bf16.msra.mxu0 %v1598
  %1643 = vmatprep.subr.bf16.mxu0 0
  %1644 = vmatpush1.bf16.msra.mxu0 0
  %1645 = vmatprep.subr.bf16.mxu0 0
  %1646 = vmatpush1.bf16.msra.mxu0 0
  %1647 = vmatprep.subr.bf16.mxu0 0
  %1648 = vmatpush1.bf16.msra.mxu0 0
  %1649 = vmatprep.subr.bf16.mxu0 0
  %1650 = vmatpush1.bf16.msra.mxu0 0
  %1651 = vmatprep.subr.bf16.mxu0 0
  %1652 = vmatpush1.bf16.msra.mxu0 0
  %1653 = vmatprep.subr.bf16.mxu0 0
  %1654 = vmatpush1.bf16.msra.mxu0 0
  %1655 = vmatprep.subr.bf16.mxu0 0
  %1656 = vmatpush1.bf16.msra.mxu0 0
  %1657 = vmatprep.subr.bf16.mxu0 0
  %1658 = vmatpush1.bf16.msra.mxu0 0
  %1659 = vmatprep.subr.bf16.mxu0 0
  %1660 = vmatpush1.bf16.msra.mxu0 0
  %1661 = vmatprep.subr.bf16.mxu0 0
  %1662 = vmatpush1.bf16.msra.mxu0 0
  %1663 = vmatprep.subr.bf16.mxu0 0
  %1664 = vmatpush1.bf16.msra.mxu0 0
  %1665 = vmatprep.subr.bf16.mxu0 0
  %1666 = vmatpush1.bf16.msra.mxu0 0
  %1667 = vmatprep.subr.bf16.mxu0 0
  %1668 = vmatpush1.bf16.msra.mxu0 0
  %1669 = vmatprep.subr.bf16.mxu0 0
  %1670 = vmatpush1.bf16.msra.mxu0 0
  %1671 = vmatprep.subr.bf16.mxu0 0
  %1672 = vmatpush1.bf16.msra.mxu0 0
  %1673 = vmatprep.mubr.bf16.mxu0 0
  %1674 = vmatmul.mubr.bf16.gmra.mrb[0].mxu0 %v1589
  %v1675 = vpop.f32.mrb[0].mxu0
  %v1676 = vadd.f32 %v1583, %v1675
  %v1677 = vpop.f32.mrb[0].mxu0
  %v1678 = vpop.f32.mrb[0].mxu0
  %v1679 = vpop.f32.mrb[0].mxu0
  %1680 = vdwg.mxu0
  %v1681 = vld [vmem:[%s434] sm:$0xf]
  %1682 = vrot.lane.b32.xlu0 %v1484, 124
  %v1683 = vpop.permute.xlu0 %1682
  %1684 = vrot.lane.b32.xlu0 %v1485, 124
  %v1685 = vpop.permute.xlu0 %1684
  %1686 = vrot.lane.b32.xlu0 %v1486, 124
  %v1687 = vpop.permute.xlu0 %1686
  %v1688 = vsel %vm442, %v1683, %v1685
  %v1689 = vsel %vm442, %v1685, %v1687
  %v1691 = vsel %vm247, %v1681, 0
  %v1694 = vsel %vm17, %v1688, 0
  %v1697 = vsel %vm17, %v1689, 0
  %v1700 = vsel %vm17, %v1687, 0
  %1702 = vmatprep.subr.bf16.mxu0 %v1697
  %1703 = vmatpush1.bf16.msra.mxu0 %v1694
  %1704 = vmatprep.subr.bf16.mxu0 0
  %1705 = vmatpush1.bf16.msra.mxu0 0
  %1706 = vmatprep.subr.bf16.mxu0 0
  %1707 = vmatpush1.bf16.msra.mxu0 0
  %1708 = vmatprep.subr.bf16.mxu0 0
  %1709 = vmatpush1.bf16.msra.mxu0 0
  %1710 = vmatprep.subr.bf16.mxu0 0
  %1711 = vmatpush1.bf16.msra.mxu0 0
  %1712 = vmatprep.subr.bf16.mxu0 0
  %1713 = vmatpush1.bf16.msra.mxu0 0
  %1714 = vmatprep.subr.bf16.mxu0 0
  %1715 = vmatpush1.bf16.msra.mxu0 0
  %1716 = vmatprep.subr.bf16.mxu0 0
  %1717 = vmatpush1.bf16.msra.mxu0 0
  %1718 = vmatprep.subr.bf16.mxu0 0
  %1719 = vmatpush1.bf16.msra.mxu0 0
  %1720 = vmatprep.subr.bf16.mxu0 0
  %1721 = vmatpush1.bf16.msra.mxu0 0
  %1722 = vmatprep.subr.bf16.mxu0 0
  %1723 = vmatpush1.bf16.msra.mxu0 0
  %1724 = vmatprep.subr.bf16.mxu0 0
  %1725 = vmatpush1.bf16.msra.mxu0 0
  %1726 = vmatprep.subr.bf16.mxu0 0
  %1727 = vmatpush1.bf16.msra.mxu0 0
  %1728 = vmatprep.subr.bf16.mxu0 0
  %1729 = vmatpush1.bf16.msra.mxu0 0
  %1730 = vmatprep.subr.bf16.mxu0 0
  %1731 = vmatpush1.bf16.msra.mxu0 0
  %1732 = vmatprep.subr.bf16.mxu0 0
  %1733 = vmatpush1.bf16.msra.mxu0 0
  %1734 = vmatprep.mubr.bf16.mxu0 0
  %1735 = vmatmul.mubr.bf16.gmra.mrb[0].mxu0 %v1691
  %v1736 = vpop.f32.mrb[0].mxu0
  %v1737 = vadd.f32 0.0, %v1736
  %v1738 = vpop.f32.mrb[0].mxu0
  %v1739 = vadd.f32 0.0, %v1738
  %v1740 = vpop.f32.mrb[0].mxu0
  %v1741 = vpop.f32.mrb[0].mxu0
  %1742 = vdwg.mxu0
  %1743 = vmatprep.subr.bf16.mxu0 0
  %1744 = vmatpush1.bf16.msra.mxu0 %v1700
  %1745 = vmatprep.subr.bf16.mxu0 0
  %1746 = vmatpush1.bf16.msra.mxu0 0
  %1747 = vmatprep.subr.bf16.mxu0 0
  %1748 = vmatpush1.bf16.msra.mxu0 0
  %1749 = vmatprep.subr.bf16.mxu0 0
  %1750 = vmatpush1.bf16.msra.mxu0 0
  %1751 = vmatprep.subr.bf16.mxu0 0
  %1752 = vmatpush1.bf16.msra.mxu0 0
  %1753 = vmatprep.subr.bf16.mxu0 0
  %1754 = vmatpush1.bf16.msra.mxu0 0
  %1755 = vmatprep.subr.bf16.mxu0 0
  %1756 = vmatpush1.bf16.msra.mxu0 0
  %1757 = vmatprep.subr.bf16.mxu0 0
  %1758 = vmatpush1.bf16.msra.mxu0 0
  %1759 = vmatprep.subr.bf16.mxu0 0
  %1760 = vmatpush1.bf16.msra.mxu0 0
  %1761 = vmatprep.subr.bf16.mxu0 0
  %1762 = vmatpush1.bf16.msra.mxu0 0
  %1763 = vmatprep.subr.bf16.mxu0 0
  %1764 = vmatpush1.bf16.msra.mxu0 0
  %1765 = vmatprep.subr.bf16.mxu0 0
  %1766 = vmatpush1.bf16.msra.mxu0 0
  %1767 = vmatprep.subr.bf16.mxu0 0
  %1768 = vmatpush1.bf16.msra.mxu0 0
  %1769 = vmatprep.subr.bf16.mxu0 0
  %1770 = vmatpush1.bf16.msra.mxu0 0
  %1771 = vmatprep.subr.bf16.mxu0 0
  %1772 = vmatpush1.bf16.msra.mxu0 0
  %1773 = vmatprep.subr.bf16.mxu0 0
  %1774 = vmatpush1.bf16.msra.mxu0 0
  %1775 = vmatprep.mubr.bf16.mxu0 0
  %1776 = vmatmul.mubr.bf16.gmra.mrb[0].mxu0 %v1691
  %v1777 = vpop.f32.mrb[0].mxu0
  %v1778 = vadd.f32 0.0, %v1777
  %v1779 = vpop.f32.mrb[0].mxu0
  %v1780 = vpop.f32.mrb[0].mxu0
  %v1781 = vpop.f32.mrb[0].mxu0
  %1782 = vdwg.mxu0
  %v1783 = vadd.f32 %v1635, %v1737
  %v1784 = vadd.f32 %v1637, %v1739
  %v1785 = vadd.f32 %v1676, %v1778
  %v1786 = vld [vmem:[%s541] sm:$0xf]
  %1787 = vrot.lane.b32.xlu0 %v1484, 88
  %v1788 = vpop.permute.xlu0 %1787
  %1789 = vrot.lane.b32.xlu0 %v1485, 88
  %v1790 = vpop.permute.xlu0 %1789
  %1791 = vrot.lane.b32.xlu0 %v1486, 88
  %v1792 = vpop.permute.xlu0 %1791
  %v1793 = vsel %vm549, %v1788, %v1790
  %v1794 = vsel %vm549, %v1790, %v1792
  %v1796 = vsel %vm247, %v1786, 0
  %v1799 = vsel %vm17, %v1793, 0
  %v1802 = vsel %vm17, %v1794, 0
  %v1805 = vsel %vm17, %v1792, 0
  %1807 = vmatprep.subr.bf16.mxu0 %v1802
  %1808 = vmatpush1.bf16.msra.mxu0 %v1799
  %1809 = vmatprep.subr.bf16.mxu0 0
  %1810 = vmatpush1.bf16.msra.mxu0 0
  %1811 = vmatprep.subr.bf16.mxu0 0
  %1812 = vmatpush1.bf16.msra.mxu0 0
  %1813 = vmatprep.subr.bf16.mxu0 0
  %1814 = vmatpush1.bf16.msra.mxu0 0
  %1815 = vmatprep.subr.bf16.mxu0 0
  %1816 = vmatpush1.bf16.msra.mxu0 0
  %1817 = vmatprep.subr.bf16.mxu0 0
  %1818 = vmatpush1.bf16.msra.mxu0 0
  %1819 = vmatprep.subr.bf16.mxu0 0
  %1820 = vmatpush1.bf16.msra.mxu0 0
  %1821 = vmatprep.subr.bf16.mxu0 0
  %1822 = vmatpush1.bf16.msra.mxu0 0
  %1823 = vmatprep.subr.bf16.mxu0 0
  %1824 = vmatpush1.bf16.msra.mxu0 0
  %1825 = vmatprep.subr.bf16.mxu0 0
  %1826 = vmatpush1.bf16.msra.mxu0 0
  %1827 = vmatprep.subr.bf16.mxu0 0
  %1828 = vmatpush1.bf16.msra.mxu0 0
  %1829 = vmatprep.subr.bf16.mxu0 0
  %1830 = vmatpush1.bf16.msra.mxu0 0
  %1831 = vmatprep.subr.bf16.mxu0 0
  %1832 = vmatpush1.bf16.msra.mxu0 0
  %1833 = vmatprep.subr.bf16.mxu0 0
  %1834 = vmatpush1.bf16.msra.mxu0 0
  %1835 = vmatprep.subr.bf16.mxu0 0
  %1836 = vmatpush1.bf16.msra.mxu0 0
  %1837 = vmatprep.subr.bf16.mxu0 0
  %1838 = vmatpush1.bf16.msra.mxu0 0
  %1839 = vmatprep.mubr.bf16.mxu0 0
  %1840 = vmatmul.mubr.bf16.gmra.mrb[0].mxu0 %v1796
  %v1841 = vpop.f32.mrb[0].mxu0
  %v1842 = vadd.f32 0.0, %v1841
  %v1843 = vpop.f32.mrb[0].mxu0
  %v1844 = vadd.f32 0.0, %v1843
  %v1845 = vpop.f32.mrb[0].mxu0
  %v1846 = vpop.f32.mrb[0].mxu0
  %1847 = vdwg.mxu0
  %1848 = vmatprep.subr.bf16.mxu0 0
  %1849 = vmatpush1.bf16.msra.mxu0 %v1805
  %1850 = vmatprep.subr.bf16.mxu0 0
  %1851 = vmatpush1.bf16.msra.mxu0 0
  %1852 = vmatprep.subr.bf16.mxu0 0
  %1853 = vmatpush1.bf16.msra.mxu0 0
  %1854 = vmatprep.subr.bf16.mxu0 0
  %1855 = vmatpush1.bf16.msra.mxu0 0
  %1856 = vmatprep.subr.bf16.mxu0 0
  %1857 = vmatpush1.bf16.msra.mxu0 0
  %1858 = vmatprep.subr.bf16.mxu0 0
  %1859 = vmatpush1.bf16.msra.mxu0 0
  %1860 = vmatprep.subr.bf16.mxu0 0
  %1861 = vmatpush1.bf16.msra.mxu0 0
  %1862 = vmatprep.subr.bf16.mxu0 0
  %1863 = vmatpush1.bf16.msra.mxu0 0
  %1864 = vmatprep.subr.bf16.mxu0 0
  %1865 = vmatpush1.bf16.msra.mxu0 0
  %1866 = vmatprep.subr.bf16.mxu0 0
  %1867 = vmatpush1.bf16.msra.mxu0 0
  %1868 = vmatprep.subr.bf16.mxu0 0
  %1869 = vmatpush1.bf16.msra.mxu0 0
  %1870 = vmatprep.subr.bf16.mxu0 0
  %1871 = vmatpush1.bf16.msra.mxu0 0
  %1872 = vmatprep.subr.bf16.mxu0 0
  %1873 = vmatpush1.bf16.msra.mxu0 0
  %1874 = vmatprep.subr.bf16.mxu0 0
  %1875 = vmatpush1.bf16.msra.mxu0 0
  %1876 = vmatprep.subr.bf16.mxu0 0
  %1877 = vmatpush1.bf16.msra.mxu0 0
  %1878 = vmatprep.subr.bf16.mxu0 0
  %1879 = vmatpush1.bf16.msra.mxu0 0
  %1880 = vmatprep.mubr.bf16.mxu0 0
  %1881 = vmatmul.mubr.bf16.gmra.mrb[0].mxu0 %v1796
  %v1882 = vpop.f32.mrb[0].mxu0
  %v1883 = vadd.f32 0.0, %v1882
  %v1884 = vpop.f32.mrb[0].mxu0
  %v1885 = vpop.f32.mrb[0].mxu0
  %v1886 = vpop.f32.mrb[0].mxu0
  %1887 = vdwg.mxu0
  %v1888 = vadd.f32 %v1783, %v1842
  %v1889 = vadd.f32 %v1784, %v1844
  %v1890 = vadd.f32 %v1785, %v1883
  %v1891 = vld [vmem:[%s648] sm:$0xf]
  %1892 = vrot.lane.b32.xlu0 %v1484, 86
  %v1893 = vpop.permute.xlu0 %1892
  %1894 = vrot.lane.b32.xlu0 %v1485, 86
  %v1895 = vpop.permute.xlu0 %1894
  %1896 = vrot.lane.b32.xlu0 %v1486, 86
  %v1897 = vpop.permute.xlu0 %1896
  %v1898 = vsel %vm656, %v1893, %v1895
  %v1899 = vsel %vm656, %v1895, %v1897
  %v1901 = vsel %vm247, %v1891, 0
  %v1904 = vsel %vm17, %v1898, 0
  %v1907 = vsel %vm17, %v1899, 0
  %v1910 = vsel %vm17, %v1897, 0
  %1912 = vmatprep.subr.bf16.mxu0 %v1907
  %1913 = vmatpush1.bf16.msra.mxu0 %v1904
  %1914 = vmatprep.subr.bf16.mxu0 0
  %1915 = vmatpush1.bf16.msra.mxu0 0
  %1916 = vmatprep.subr.bf16.mxu0 0
  %1917 = vmatpush1.bf16.msra.mxu0 0
  %1918 = vmatprep.subr.bf16.mxu0 0
  %1919 = vmatpush1.bf16.msra.mxu0 0
  %1920 = vmatprep.subr.bf16.mxu0 0
  %1921 = vmatpush1.bf16.msra.mxu0 0
  %1922 = vmatprep.subr.bf16.mxu0 0
  %1923 = vmatpush1.bf16.msra.mxu0 0
  %1924 = vmatprep.subr.bf16.mxu0 0
  %1925 = vmatpush1.bf16.msra.mxu0 0
  %1926 = vmatprep.subr.bf16.mxu0 0
  %1927 = vmatpush1.bf16.msra.mxu0 0
  %1928 = vmatprep.subr.bf16.mxu0 0
  %1929 = vmatpush1.bf16.msra.mxu0 0
  %1930 = vmatprep.subr.bf16.mxu0 0
  %1931 = vmatpush1.bf16.msra.mxu0 0
  %1932 = vmatprep.subr.bf16.mxu0 0
  %1933 = vmatpush1.bf16.msra.mxu0 0
  %1934 = vmatprep.subr.bf16.mxu0 0
  %1935 = vmatpush1.bf16.msra.mxu0 0
  %1936 = vmatprep.subr.bf16.mxu0 0
  %1937 = vmatpush1.bf16.msra.mxu0 0
  %1938 = vmatprep.subr.bf16.mxu0 0
  %1939 = vmatpush1.bf16.msra.mxu0 0
  %1940 = vmatprep.subr.bf16.mxu0 0
  %1941 = vmatpush1.bf16.msra.mxu0 0
  %1942 = vmatprep.subr.bf16.mxu0 0
  %1943 = vmatpush1.bf16.msra.mxu0 0
  %1944 = vmatprep.mubr.bf16.mxu0 0
  %1945 = vmatmul.mubr.bf16.gmra.mrb[0].mxu0 %v1901
  %v1946 = vpop.f32.mrb[0].mxu0
  %v1947 = vadd.f32 0.0, %v1946
  %v1948 = vpop.f32.mrb[0].mxu0
  %v1949 = vadd.f32 0.0, %v1948
  %v1950 = vpop.f32.mrb[0].mxu0
  %v1951 = vpop.f32.mrb[0].mxu0
  %1952 = vdwg.mxu0
  %1953 = vmatprep.subr.bf16.mxu0 0
  %1954 = vmatpush1.bf16.msra.mxu0 %v1910
  %1955 = vmatprep.subr.bf16.mxu0 0
  %1956 = vmatpush1.bf16.msra.mxu0 0
  %1957 = vmatprep.subr.bf16.mxu0 0
  %1958 = vmatpush1.bf16.msra.mxu0 0
  %1959 = vmatprep.subr.bf16.mxu0 0
  %1960 = vmatpush1.bf16.msra.mxu0 0
  %1961 = vmatprep.subr.bf16.mxu0 0
  %1962 = vmatpush1.bf16.msra.mxu0 0
  %1963 = vmatprep.subr.bf16.mxu0 0
  %1964 = vmatpush1.bf16.msra.mxu0 0
  %1965 = vmatprep.subr.bf16.mxu0 0
  %1966 = vmatpush1.bf16.msra.mxu0 0
  %1967 = vmatprep.subr.bf16.mxu0 0
  %1968 = vmatpush1.bf16.msra.mxu0 0
  %1969 = vmatprep.subr.bf16.mxu0 0
  %1970 = vmatpush1.bf16.msra.mxu0 0
  %1971 = vmatprep.subr.bf16.mxu0 0
  %1972 = vmatpush1.bf16.msra.mxu0 0
  %1973 = vmatprep.subr.bf16.mxu0 0
  %1974 = vmatpush1.bf16.msra.mxu0 0
  %1975 = vmatprep.subr.bf16.mxu0 0
  %1976 = vmatpush1.bf16.msra.mxu0 0
  %1977 = vmatprep.subr.bf16.mxu0 0
  %1978 = vmatpush1.bf16.msra.mxu0 0
  %1979 = vmatprep.subr.bf16.mxu0 0
  %1980 = vmatpush1.bf16.msra.mxu0 0
  %1981 = vmatprep.subr.bf16.mxu0 0
  %1982 = vmatpush1.bf16.msra.mxu0 0
  %1983 = vmatprep.subr.bf16.mxu0 0
  %1984 = vmatpush1.bf16.msra.mxu0 0
  %1985 = vmatprep.mubr.bf16.mxu0 0
  %1986 = vmatmul.mubr.bf16.gmra.mrb[0].mxu0 %v1901
  %v1987 = vpop.f32.mrb[0].mxu0
  %v1988 = vadd.f32 0.0, %v1987
  %v1989 = vpop.f32.mrb[0].mxu0
  %v1990 = vpop.f32.mrb[0].mxu0
  %v1991 = vpop.f32.mrb[0].mxu0
  %1992 = vdwg.mxu0
  %v1993 = vadd.f32 %v1888, %v1947
  %v1994 = vadd.f32 %v1889, %v1949
  %v1995 = vadd.f32 %v1890, %v1988
  %v1996 = vld [vmem:[%s755] sm:$0xf]
  %1997 = vrot.lane.b32.xlu0 %v1484, 84
  %v1998 = vpop.permute.xlu0 %1997
  %1999 = vrot.lane.b32.xlu0 %v1485, 84
  %v2000 = vpop.permute.xlu0 %1999
  %2001 = vrot.lane.b32.xlu0 %v1486, 84
  %v2002 = vpop.permute.xlu0 %2001
  %v2003 = vsel %vm763, %v1998, %v2000
  %v2004 = vsel %vm763, %v2000, %v2002
  %v2006 = vsel %vm247, %v1996, 0
  %v2009 = vsel %vm17, %v2003, 0
  %v2012 = vsel %vm17, %v2004, 0
  %v2015 = vsel %vm17, %v2002, 0
  %2017 = vmatprep.subr.bf16.mxu0 %v2012
  %2018 = vmatpush1.bf16.msra.mxu0 %v2009
  %2019 = vmatprep.subr.bf16.mxu0 0
  %2020 = vmatpush1.bf16.msra.mxu0 0
  %2021 = vmatprep.subr.bf16.mxu0 0
  %2022 = vmatpush1.bf16.msra.mxu0 0
  %2023 = vmatprep.subr.bf16.mxu0 0
  %2024 = vmatpush1.bf16.msra.mxu0 0
  %2025 = vmatprep.subr.bf16.mxu0 0
  %2026 = vmatpush1.bf16.msra.mxu0 0
  %2027 = vmatprep.subr.bf16.mxu0 0
  %2028 = vmatpush1.bf16.msra.mxu0 0
  %2029 = vmatprep.subr.bf16.mxu0 0
  %2030 = vmatpush1.bf16.msra.mxu0 0
  %2031 = vmatprep.subr.bf16.mxu0 0
  %2032 = vmatpush1.bf16.msra.mxu0 0
  %2033 = vmatprep.subr.bf16.mxu0 0
  %2034 = vmatpush1.bf16.msra.mxu0 0
  %2035 = vmatprep.subr.bf16.mxu0 0
  %2036 = vmatpush1.bf16.msra.mxu0 0
  %2037 = vmatprep.subr.bf16.mxu0 0
  %2038 = vmatpush1.bf16.msra.mxu0 0
  %2039 = vmatprep.subr.bf16.mxu0 0
  %2040 = vmatpush1.bf16.msra.mxu0 0
  %2041 = vmatprep.subr.bf16.mxu0 0
  %2042 = vmatpush1.bf16.msra.mxu0 0
  %2043 = vmatprep.subr.bf16.mxu0 0
  %2044 = vmatpush1.bf16.msra.mxu0 0
  %2045 = vmatprep.subr.bf16.mxu0 0
  %2046 = vmatpush1.bf16.msra.mxu0 0
  %2047 = vmatprep.subr.bf16.mxu0 0
  %2048 = vmatpush1.bf16.msra.mxu0 0
  %2049 = vmatprep.mubr.bf16.mxu0 0
  %2050 = vmatmul.mubr.bf16.gmra.mrb[0].mxu0 %v2006
  %v2051 = vpop.f32.mrb[0].mxu0
  %v2052 = vadd.f32 0.0, %v2051
  %v2053 = vpop.f32.mrb[0].mxu0
  %v2054 = vadd.f32 0.0, %v2053
  %v2055 = vpop.f32.mrb[0].mxu0
  %v2056 = vpop.f32.mrb[0].mxu0
  %2057 = vdwg.mxu0
  %2058 = vmatprep.subr.bf16.mxu0 0
  %2059 = vmatpush1.bf16.msra.mxu0 %v2015
  %2060 = vmatprep.subr.bf16.mxu0 0
  %2061 = vmatpush1.bf16.msra.mxu0 0
  %2062 = vmatprep.subr.bf16.mxu0 0
  %2063 = vmatpush1.bf16.msra.mxu0 0
  %2064 = vmatprep.subr.bf16.mxu0 0
  %2065 = vmatpush1.bf16.msra.mxu0 0
  %2066 = vmatprep.subr.bf16.mxu0 0
  %2067 = vmatpush1.bf16.msra.mxu0 0
  %2068 = vmatprep.subr.bf16.mxu0 0
  %2069 = vmatpush1.bf16.msra.mxu0 0
  %2070 = vmatprep.subr.bf16.mxu0 0
  %2071 = vmatpush1.bf16.msra.mxu0 0
  %2072 = vmatprep.subr.bf16.mxu0 0
  %2073 = vmatpush1.bf16.msra.mxu0 0
  %2074 = vmatprep.subr.bf16.mxu0 0
  %2075 = vmatpush1.bf16.msra.mxu0 0
  %2076 = vmatprep.subr.bf16.mxu0 0
  %2077 = vmatpush1.bf16.msra.mxu0 0
  %2078 = vmatprep.subr.bf16.mxu0 0
  %2079 = vmatpush1.bf16.msra.mxu0 0
  %2080 = vmatprep.subr.bf16.mxu0 0
  %2081 = vmatpush1.bf16.msra.mxu0 0
  %2082 = vmatprep.subr.bf16.mxu0 0
  %2083 = vmatpush1.bf16.msra.mxu0 0
  %2084 = vmatprep.subr.bf16.mxu0 0
  %2085 = vmatpush1.bf16.msra.mxu0 0
  %2086 = vmatprep.subr.bf16.mxu0 0
  %2087 = vmatpush1.bf16.msra.mxu0 0
  %2088 = vmatprep.subr.bf16.mxu0 0
  %2089 = vmatpush1.bf16.msra.mxu0 0
  %2090 = vmatprep.mubr.bf16.mxu0 0
  %2091 = vmatmul.mubr.bf16.gmra.mrb[0].mxu0 %v2006
  %v2092 = vpop.f32.mrb[0].mxu0
  %v2093 = vadd.f32 0.0, %v2092
  %v2094 = vpop.f32.mrb[0].mxu0
  %v2095 = vpop.f32.mrb[0].mxu0
  %v2096 = vpop.f32.mrb[0].mxu0
  %2097 = vdwg.mxu0
  %v2098 = vadd.f32 %v1993, %v2052
  %v2099 = vadd.f32 %v1994, %v2054
  %v2100 = vadd.f32 %v1995, %v2093
  %v2101 = vld [vmem:[%s862] sm:$0xf]
  %v2102 = vld [vmem:[%s1291] sm:$0xff]
  %v2103 = vld [vmem:[%s1291 + $0x8] sm:$0xff]
  %v2106 = vunpack.c.l.b16 %v2102
  %v2107 = vunpack.c.h.b16 %v2102
  %v2108 = vunpack.c.l.b16 %v2103
  %v2109 = vunpack.c.h.b16 %v2103
  %v2110 = vpack.c.b16 %v2106, %v2106
  %v2111 = vpack.c.b16 %v2107, %v2107
  %v2112 = vpack.c.b16 %v2108, %v2108
  %v2113 = vpack.c.b16 %v2109, %v2109
  %2114 = vrot.lane.b32.xlu0 %v2110, 48
  %v2115 = vpop.permute.xlu0 %2114
  %2116 = vrot.lane.b32.xlu0 %v2111, 48
  %v2117 = vpop.permute.xlu0 %2116
  %2118 = vrot.lane.b32.xlu0 %v2112, 48
  %v2119 = vpop.permute.xlu0 %2118
  %2120 = vrot.lane.b32.xlu0 %v2113, 48
  %v2121 = vpop.permute.xlu0 %2120
  %v2122 = vsel %vm884, %v2115, %v2117
  %v2123 = vsel %vm884, %v2117, %v2119
  %v2124 = vsel %vm884, %v2119, %v2121
  %v2126 = vsel %vm247, %v2101, 0
  %v2129 = vsel %vm17, %v2122, 0
  %v2132 = vsel %vm17, %v2123, 0
  %v2135 = vsel %vm17, %v2124, 0
  %2137 = vmatprep.subr.bf16.mxu0 %v2132
  %2138 = vmatpush1.bf16.msra.mxu0 %v2129
  %2139 = vmatprep.subr.bf16.mxu0 0
  %2140 = vmatpush1.bf16.msra.mxu0 0
  %2141 = vmatprep.subr.bf16.mxu0 0
  %2142 = vmatpush1.bf16.msra.mxu0 0
  %2143 = vmatprep.subr.bf16.mxu0 0
  %2144 = vmatpush1.bf16.msra.mxu0 0
  %2145 = vmatprep.subr.bf16.mxu0 0
  %2146 = vmatpush1.bf16.msra.mxu0 0
  %2147 = vmatprep.subr.bf16.mxu0 0
  %2148 = vmatpush1.bf16.msra.mxu0 0
  %2149 = vmatprep.subr.bf16.mxu0 0
  %2150 = vmatpush1.bf16.msra.mxu0 0
  %2151 = vmatprep.subr.bf16.mxu0 0
  %2152 = vmatpush1.bf16.msra.mxu0 0
  %2153 = vmatprep.subr.bf16.mxu0 0
  %2154 = vmatpush1.bf16.msra.mxu0 0
  %2155 = vmatprep.subr.bf16.mxu0 0
  %2156 = vmatpush1.bf16.msra.mxu0 0
  %2157 = vmatprep.subr.bf16.mxu0 0
  %2158 = vmatpush1.bf16.msra.mxu0 0
  %2159 = vmatprep.subr.bf16.mxu0 0
  %2160 = vmatpush1.bf16.msra.mxu0 0
  %2161 = vmatprep.subr.bf16.mxu0 0
  %2162 = vmatpush1.bf16.msra.mxu0 0
  %2163 = vmatprep.subr.bf16.mxu0 0
  %2164 = vmatpush1.bf16.msra.mxu0 0
  %2165 = vmatprep.subr.bf16.mxu0 0
  %2166 = vmatpush1.bf16.msra.mxu0 0
  %2167 = vmatprep.subr.bf16.mxu0 0
  %2168 = vmatpush1.bf16.msra.mxu0 0
  %2169 = vmatprep.mubr.bf16.mxu0 0
  %2170 = vmatmul.mubr.bf16.gmra.mrb[0].mxu0 %v2126
  %v2171 = vpop.f32.mrb[0].mxu0
  %v2172 = vadd.f32 0.0, %v2171
  %v2173 = vpop.f32.mrb[0].mxu0
  %v2174 = vadd.f32 0.0, %v2173
  %v2175 = vpop.f32.mrb[0].mxu0
  %v2176 = vpop.f32.mrb[0].mxu0
  %2177 = vdwg.mxu0
  %2178 = vmatprep.subr.bf16.mxu0 0
  %2179 = vmatpush1.bf16.msra.mxu0 %v2135
  %2180 = vmatprep.subr.bf16.mxu0 0
  %2181 = vmatpush1.bf16.msra.mxu0 0
  %2182 = vmatprep.subr.bf16.mxu0 0
  %2183 = vmatpush1.bf16.msra.mxu0 0
  %2184 = vmatprep.subr.bf16.mxu0 0
  %2185 = vmatpush1.bf16.msra.mxu0 0
  %2186 = vmatprep.subr.bf16.mxu0 0
  %2187 = vmatpush1.bf16.msra.mxu0 0
  %2188 = vmatprep.subr.bf16.mxu0 0
  %2189 = vmatpush1.bf16.msra.mxu0 0
  %2190 = vmatprep.subr.bf16.mxu0 0
  %2191 = vmatpush1.bf16.msra.mxu0 0
  %2192 = vmatprep.subr.bf16.mxu0 0
  %2193 = vmatpush1.bf16.msra.mxu0 0
  %2194 = vmatprep.subr.bf16.mxu0 0
  %2195 = vmatpush1.bf16.msra.mxu0 0
  %2196 = vmatprep.subr.bf16.mxu0 0
  %2197 = vmatpush1.bf16.msra.mxu0 0
  %2198 = vmatprep.subr.bf16.mxu0 0
  %2199 = vmatpush1.bf16.msra.mxu0 0
  %2200 = vmatprep.subr.bf16.mxu0 0
  %2201 = vmatpush1.bf16.msra.mxu0 0
  %2202 = vmatprep.subr.bf16.mxu0 0
  %2203 = vmatpush1.bf16.msra.mxu0 0
  %2204 = vmatprep.subr.bf16.mxu0 0
  %2205 = vmatpush1.bf16.msra.mxu0 0
  %2206 = vmatprep.subr.bf16.mxu0 0
  %2207 = vmatpush1.bf16.msra.mxu0 0
  %2208 = vmatprep.subr.bf16.mxu0 0
  %2209 = vmatpush1.bf16.msra.mxu0 0
  %2210 = vmatprep.mubr.bf16.mxu0 0
  %2211 = vmatmul.mubr.bf16.gmra.mrb[0].mxu0 %v2126
  %v2212 = vpop.f32.mrb[0].mxu0
  %v2213 = vadd.f32 0.0, %v2212
  %v2214 = vpop.f32.mrb[0].mxu0
  %v2215 = vpop.f32.mrb[0].mxu0
  %v2216 = vpop.f32.mrb[0].mxu0
  %2217 = vdwg.mxu0
  %v2218 = vadd.f32 %v2098, %v2172
  %v2219 = vadd.f32 %v2099, %v2174
  %v2220 = vadd.f32 %v2100, %v2213
  %v2221 = vld [vmem:[%s984] sm:$0xf]
  %2222 = vrot.lane.b32.xlu0 %v2110, 46
  %v2223 = vpop.permute.xlu0 %2222
  %2224 = vrot.lane.b32.xlu0 %v2111, 46
  %v2225 = vpop.permute.xlu0 %2224
  %2226 = vrot.lane.b32.xlu0 %v2112, 46
  %v2227 = vpop.permute.xlu0 %2226
  %2228 = vrot.lane.b32.xlu0 %v2113, 46
  %v2229 = vpop.permute.xlu0 %2228
  %v2230 = vsel %vm994, %v2223, %v2225
  %v2231 = vsel %vm994, %v2225, %v2227
  %v2232 = vsel %vm994, %v2227, %v2229
  %v2234 = vsel %vm247, %v2221, 0
  %v2237 = vsel %vm17, %v2230, 0
  %v2240 = vsel %vm17, %v2231, 0
  %v2243 = vsel %vm17, %v2232, 0
  %2245 = vmatprep.subr.bf16.mxu0 %v2240
  %2246 = vmatpush1.bf16.msra.mxu0 %v2237
  %2247 = vmatprep.subr.bf16.mxu0 0
  %2248 = vmatpush1.bf16.msra.mxu0 0
  %2249 = vmatprep.subr.bf16.mxu0 0
  %2250 = vmatpush1.bf16.msra.mxu0 0
  %2251 = vmatprep.subr.bf16.mxu0 0
  %2252 = vmatpush1.bf16.msra.mxu0 0
  %2253 = vmatprep.subr.bf16.mxu0 0
  %2254 = vmatpush1.bf16.msra.mxu0 0
  %2255 = vmatprep.subr.bf16.mxu0 0
  %2256 = vmatpush1.bf16.msra.mxu0 0
  %2257 = vmatprep.subr.bf16.mxu0 0
  %2258 = vmatpush1.bf16.msra.mxu0 0
  %2259 = vmatprep.subr.bf16.mxu0 0
  %2260 = vmatpush1.bf16.msra.mxu0 0
  %2261 = vmatprep.subr.bf16.mxu0 0
  %2262 = vmatpush1.bf16.msra.mxu0 0
  %2263 = vmatprep.subr.bf16.mxu0 0
  %2264 = vmatpush1.bf16.msra.mxu0 0
  %2265 = vmatprep.subr.bf16.mxu0 0
  %2266 = vmatpush1.bf16.msra.mxu0 0
  %2267 = vmatprep.subr.bf16.mxu0 0
  %2268 = vmatpush1.bf16.msra.mxu0 0
  %2269 = vmatprep.subr.bf16.mxu0 0
  %2270 = vmatpush1.bf16.msra.mxu0 0
  %2271 = vmatprep.subr.bf16.mxu0 0
  %2272 = vmatpush1.bf16.msra.mxu0 0
  %2273 = vmatprep.subr.bf16.mxu0 0
  %2274 = vmatpush1.bf16.msra.mxu0 0
  %2275 = vmatprep.subr.bf16.mxu0 0
  %2276 = vmatpush1.bf16.msra.mxu0 0
  %2277 = vmatprep.mubr.bf16.mxu0 0
  %2278 = vmatmul.mubr.bf16.gmra.mrb[0].mxu0 %v2234
  %v2279 = vpop.f32.mrb[0].mxu0
  %v2280 = vadd.f32 0.0, %v2279
  %v2281 = vpop.f32.mrb[0].mxu0
  %v2282 = vadd.f32 0.0, %v2281
  %v2283 = vpop.f32.mrb[0].mxu0
  %v2284 = vpop.f32.mrb[0].mxu0
  %2285 = vdwg.mxu0
  %2286 = vmatprep.subr.bf16.mxu0 0
  %2287 = vmatpush1.bf16.msra.mxu0 %v2243
  %2288 = vmatprep.subr.bf16.mxu0 0
  %2289 = vmatpush1.bf16.msra.mxu0 0
  %2290 = vmatprep.subr.bf16.mxu0 0
  %2291 = vmatpush1.bf16.msra.mxu0 0
  %2292 = vmatprep.subr.bf16.mxu0 0
  %2293 = vmatpush1.bf16.msra.mxu0 0
  %2294 = vmatprep.subr.bf16.mxu0 0
  %2295 = vmatpush1.bf16.msra.mxu0 0
  %2296 = vmatprep.subr.bf16.mxu0 0
  %2297 = vmatpush1.bf16.msra.mxu0 0
  %2298 = vmatprep.subr.bf16.mxu0 0
  %2299 = vmatpush1.bf16.msra.mxu0 0
  %2300 = vmatprep.subr.bf16.mxu0 0
  %2301 = vmatpush1.bf16.msra.mxu0 0
  %2302 = vmatprep.subr.bf16.mxu0 0
  %2303 = vmatpush1.bf16.msra.mxu0 0
  %2304 = vmatprep.subr.bf16.mxu0 0
  %2305 = vmatpush1.bf16.msra.mxu0 0
  %2306 = vmatprep.subr.bf16.mxu0 0
  %2307 = vmatpush1.bf16.msra.mxu0 0
  %2308 = vmatprep.subr.bf16.mxu0 0
  %2309 = vmatpush1.bf16.msra.mxu0 0
  %2310 = vmatprep.subr.bf16.mxu0 0
  %2311 = vmatpush1.bf16.msra.mxu0 0
  %2312 = vmatprep.subr.bf16.mxu0 0
  %2313 = vmatpush1.bf16.msra.mxu0 0
  %2314 = vmatprep.subr.bf16.mxu0 0
  %2315 = vmatpush1.bf16.msra.mxu0 0
  %2316 = vmatprep.subr.bf16.mxu0 0
  %2317 = vmatpush1.bf16.msra.mxu0 0
  %2318 = vmatprep.mubr.bf16.mxu0 0
  %2319 = vmatmul.mubr.bf16.gmra.mrb[0].mxu0 %v2234
  %v2320 = vpop.f32.mrb[0].mxu0
  %v2321 = vadd.f32 0.0, %v2320
  %v2322 = vpop.f32.mrb[0].mxu0
  %v2323 = vpop.f32.mrb[0].mxu0
  %v2324 = vpop.f32.mrb[0].mxu0
  %2325 = vdwg.mxu0
  %v2326 = vadd.f32 %v2218, %v2280
  %v2327 = vadd.f32 %v2219, %v2282
  %v2328 = vadd.f32 %v2220, %v2321
  %v2329 = vld [vmem:[%s1094] sm:$0xf]
  %2330 = vrot.lane.b32.xlu0 %v2110, 44
  %v2331 = vpop.permute.xlu0 %2330
  %2332 = vrot.lane.b32.xlu0 %v2111, 44
  %v2333 = vpop.permute.xlu0 %2332
  %2334 = vrot.lane.b32.xlu0 %v2112, 44
  %v2335 = vpop.permute.xlu0 %2334
  %2336 = vrot.lane.b32.xlu0 %v2113, 44
  %v2337 = vpop.permute.xlu0 %2336
  %v2338 = vsel %vm1104, %v2331, %v2333
  %v2339 = vsel %vm1104, %v2333, %v2335
  %v2340 = vsel %vm1104, %v2335, %v2337
  %v2342 = vsel %vm247, %v2329, 0
  %v2345 = vsel %vm17, %v2338, 0
  %v2348 = vsel %vm17, %v2339, 0
  %v2351 = vsel %vm17, %v2340, 0
  %2353 = vmatprep.subr.bf16.mxu0 %v2348
  %2354 = vmatpush1.bf16.msra.mxu0 %v2345
  %2355 = vmatprep.subr.bf16.mxu0 0
  %2356 = vmatpush1.bf16.msra.mxu0 0
  %2357 = vmatprep.subr.bf16.mxu0 0
  %2358 = vmatpush1.bf16.msra.mxu0 0
  %2359 = vmatprep.subr.bf16.mxu0 0
  %2360 = vmatpush1.bf16.msra.mxu0 0
  %2361 = vmatprep.subr.bf16.mxu0 0
  %2362 = vmatpush1.bf16.msra.mxu0 0
  %2363 = vmatprep.subr.bf16.mxu0 0
  %2364 = vmatpush1.bf16.msra.mxu0 0
  %2365 = vmatprep.subr.bf16.mxu0 0
  %2366 = vmatpush1.bf16.msra.mxu0 0
  %2367 = vmatprep.subr.bf16.mxu0 0
  %2368 = vmatpush1.bf16.msra.mxu0 0
  %2369 = vmatprep.subr.bf16.mxu0 0
  %2370 = vmatpush1.bf16.msra.mxu0 0
  %2371 = vmatprep.subr.bf16.mxu0 0
  %2372 = vmatpush1.bf16.msra.mxu0 0
  %2373 = vmatprep.subr.bf16.mxu0 0
  %2374 = vmatpush1.bf16.msra.mxu0 0
  %2375 = vmatprep.subr.bf16.mxu0 0
  %2376 = vmatpush1.bf16.msra.mxu0 0
  %2377 = vmatprep.subr.bf16.mxu0 0
  %2378 = vmatpush1.bf16.msra.mxu0 0
  %2379 = vmatprep.subr.bf16.mxu0 0
  %2380 = vmatpush1.bf16.msra.mxu0 0
  %2381 = vmatprep.subr.bf16.mxu0 0
  %2382 = vmatpush1.bf16.msra.mxu0 0
  %2383 = vmatprep.subr.bf16.mxu0 0
  %2384 = vmatpush1.bf16.msra.mxu0 0
  %2385 = vmatprep.mubr.bf16.mxu0 0
  %2386 = vmatmul.mubr.bf16.gmra.mrb[0].mxu0 %v2342
  %v2387 = vpop.f32.mrb[0].mxu0
  %v2388 = vadd.f32 0.0, %v2387
  %v2389 = vpop.f32.mrb[0].mxu0
  %v2390 = vadd.f32 0.0, %v2389
  %v2391 = vpop.f32.mrb[0].mxu0
  %v2392 = vpop.f32.mrb[0].mxu0
  %2393 = vdwg.mxu0
  %2394 = vmatprep.subr.bf16.mxu0 0
  %2395 = vmatpush1.bf16.msra.mxu0 %v2351
  %2396 = vmatprep.subr.bf16.mxu0 0
  %2397 = vmatpush1.bf16.msra.mxu0 0
  %2398 = vmatprep.subr.bf16.mxu0 0
  %2399 = vmatpush1.bf16.msra.mxu0 0
  %2400 = vmatprep.subr.bf16.mxu0 0
  %2401 = vmatpush1.bf16.msra.mxu0 0
  %2402 = vmatprep.subr.bf16.mxu0 0
  %2403 = vmatpush1.bf16.msra.mxu0 0
  %2404 = vmatprep.subr.bf16.mxu0 0
  %2405 = vmatpush1.bf16.msra.mxu0 0
  %2406 = vmatprep.subr.bf16.mxu0 0
  %2407 = vmatpush1.bf16.msra.mxu0 0
  %2408 = vmatprep.subr.bf16.mxu0 0
  %2409 = vmatpush1.bf16.msra.mxu0 0
  %2410 = vmatprep.subr.bf16.mxu0 0
  %2411 = vmatpush1.bf16.msra.mxu0 0
  %2412 = vmatprep.subr.bf16.mxu0 0
  %2413 = vmatpush1.bf16.msra.mxu0 0
  %2414 = vmatprep.subr.bf16.mxu0 0
  %2415 = vmatpush1.bf16.msra.mxu0 0
  %2416 = vmatprep.subr.bf16.mxu0 0
  %2417 = vmatpush1.bf16.msra.mxu0 0
  %2418 = vmatprep.subr.bf16.mxu0 0
  %2419 = vmatpush1.bf16.msra.mxu0 0
  %2420 = vmatprep.subr.bf16.mxu0 0
  %2421 = vmatpush1.bf16.msra.mxu0 0
  %2422 = vmatprep.subr.bf16.mxu0 0
  %2423 = vmatpush1.bf16.msra.mxu0 0
  %2424 = vmatprep.subr.bf16.mxu0 0
  %2425 = vmatpush1.bf16.msra.mxu0 0
  %2426 = vmatprep.mubr.bf16.mxu0 0
  %2427 = vmatmul.mubr.bf16.gmra.mrb[0].mxu0 %v2342
  %v2428 = vpop.f32.mrb[0].mxu0
  %v2429 = vadd.f32 0.0, %v2428
  %v2430 = vpop.f32.mrb[0].mxu0
  %v2431 = vpop.f32.mrb[0].mxu0
  %v2432 = vpop.f32.mrb[0].mxu0
  %2433 = vdwg.mxu0
  %v2434 = vadd.f32 %v2326, %v2388
  %v2435 = vadd.f32 %v2327, %v2390
  %v2436 = vadd.f32 %v2328, %v2429
  %v2437 = vadd.f32 %v2434, %v1207
  %v2438 = vadd.f32 %v2435, %v1207
  %v2439 = vadd.f32 %v2436, %v1207
  %v2440 = vmax.f32 %v2437, 0.0
  %v2441 = vmax.f32 %v2438, 0.0
  %v2442 = vmax.f32 %v2439, 0.0
  %s2443 = scalar_lea.vmem %s3, 16
  %2444 = vst.msk [vmem:[%s2443] sm:$0xff] %vm1215, %v2440
  %2446 = vrot.lane.b32.xlu0 %v2440, 124
  %v2447 = vpop.permute.xlu0 %2446
  %2449 = vst.msk [vmem:[%s2443] sm:$0xff] %vm1221, %v2447
  %2450 = vrot.lane.b32.xlu0 %v2440, 120
  %v2451 = vpop.permute.xlu0 %2450
  %2453 = vst.msk [vmem:[%s2443] sm:$0xff] %vm1226, %v2451
  %2454 = vrot.lane.b32.xlu0 %v2440, 116
  %v2455 = vpop.permute.xlu0 %2454
  %2457 = vst.msk [vmem:[%s2443] sm:$0xff] %vm1231, %v2455
  %2458 = vrot.lane.b32.xlu0 %v2440, 112
  %v2459 = vpop.permute.xlu0 %2458
  %2461 = vst.msk [vmem:[%s2443] sm:$0xff] %vm1236, %v2459
  %2462 = vrot.lane.b32.xlu0 %v2440, 108
  %v2463 = vpop.permute.xlu0 %2462
  %2465 = vst.msk [vmem:[%s2443] sm:$0xff] %vm1241, %v2463
  %2467 = vrot.lane.b32.xlu0 %v2440, 104
  %v2468 = vpop.permute.xlu0 %2467
  %2469 = vrot.lane.b32.xlu0 %v2441, 104
  %v2470 = vpop.permute.xlu0 %2469
  %v2471 = vsel %vm1248, %v2468, %v2470
  %2473 = vst.msk [vmem:[%s2443] sm:$0xff] %vm1251, %v2471
  %2474 = vrot.lane.b32.xlu0 %v2441, 100
  %v2475 = vpop.permute.xlu0 %2474
  %2477 = vst.msk [vmem:[%s2443] sm:$0xff] %vm1256, %v2475
  %2478 = vrot.lane.b32.xlu0 %v2441, 96
  %v2479 = vpop.permute.xlu0 %2478
  %2481 = vst.msk [vmem:[%s2443 + $0x8] sm:$0xff] %vm1215, %v2479
  %2482 = vrot.lane.b32.xlu0 %v2441, 92
  %v2483 = vpop.permute.xlu0 %2482
  %2485 = vst.msk [vmem:[%s2443 + $0x8] sm:$0xff] %vm1221, %v2483
  %2486 = vrot.lane.b32.xlu0 %v2441, 88
  %v2487 = vpop.permute.xlu0 %2486
  %2489 = vst.msk [vmem:[%s2443 + $0x8] sm:$0xff] %vm1226, %v2487
  %2490 = vrot.lane.b32.xlu0 %v2441, 84
  %v2491 = vpop.permute.xlu0 %2490
  %2493 = vst.msk [vmem:[%s2443 + $0x8] sm:$0xff] %vm1231, %v2491
  %2494 = vrot.lane.b32.xlu0 %v2441, 80
  %v2495 = vpop.permute.xlu0 %2494
  %2497 = vst.msk [vmem:[%s2443 + $0x8] sm:$0xff] %vm1236, %v2495
  %2499 = vrot.lane.b32.xlu0 %v2442, 76
  %v2500 = vpop.permute.xlu0 %2499
  %2502 = vst.msk [vmem:[%s2443 + $0x8] sm:$0xff] %vm1241, %v2500
  %2503 = vrot.lane.b32.xlu0 %v2442, 72
  %v2504 = vpop.permute.xlu0 %2503
  %2506 = vst.msk [vmem:[%s2443 + $0x8] sm:$0xff] %vm1251, %v2504
  %2507 = vrot.lane.b32.xlu0 %v2442, 68
  %v2508 = vpop.permute.xlu0 %2507
  %2510 = vst.msk [vmem:[%s2443 + $0x8] sm:$0xff] %vm1256, %v2508
  // Predicated region
  $region14: #{conv_relu.1} parent=0 // pred_check
    _
  $region15: #{conv_relu.1} parent=0 // pred_check_branch
    %2512 = sbr.rel (0) target = $region17
  $region16: #{conv_relu.1} parent=0 // pred_region
    _
  $region17: #{conv_relu.1} parent=0 // pred_fallthru
    _
  // Predicated region
  $region18: #{conv_relu.1} parent=0 // pred_check
    _
  $region19: #{conv_relu.1} parent=0 // pred_check_branch
    %2514 = sbr.rel (0) target = $region21
  $region20: #{conv_relu.1} parent=0 // pred_region
    _
  $region21: #{conv_relu.1} parent=0 // pred_fallthru
    _

</llo_original>
